<compile_context>
chip_gen: v7x
topology: tpu7x:2x2x1
jax: 0.10.0
libtpu: 0.0.40
codegen_flags: <defaults>
</compile_context>

<pallas_src>
import functools
import math

import jax
import jax.numpy as jnp
from jax.experimental import pallas as pl
from jax.experimental.pallas import tpu as pltpu

_INV_SQRT2 = 0.7071067811865476


def _gelu_exact(v):
    # PyTorch nn.GELU() default: exact erf-based GELU.
    return 0.5 * v * (1.0 + jax.lax.erf(v * _INV_SQRT2))


def _sigmoid(v):
    # Exact sigmoid (kernel is HBM-bound; the divide cost is hidden).
    return 1.0 / (1.0 + jnp.exp(-v))


def ffn_kernel(x_ref, ln_g_ref, ln_b_ref,
               ca_w1_ref, ca_b1_ref, ca_w2_ref, ca_b2_ref,
               pa_w1_ref, pa_b1_ref, pa_w2_ref,
               fc1_w_ref, fc1_b_ref, fc2_w_ref, fc2_b_ref,
               pa_b2_ref,                      # (1,) scalar in SMEM
               out_ref,                        # (1, out_dim, HW_pad) channels-first
               xn_ref, sum_ref,                # VMEM scratch
               *, tile, n_tiles, hw_valid, needs_mask):
    g = ln_g_ref[...]                          # (1, dim)
    b = ln_b_ref[...]                          # (1, dim)

    sum_ref[...] = jnp.zeros_like(sum_ref)

    # ---- pass 1: LayerNorm (channels on lanes), stash xn, pooled-sum accum ---
    @pl.loop(0, n_tiles)
    def _(t):
        off = pl.multiple_of(t * tile, tile)
        xs = x_ref[0, :, pl.ds(off, tile)]                 # (dim, TILE) chan-first
        xt = xs.T                                          # XLU -> (TILE, dim)
        mu = jnp.mean(xt, axis=-1, keepdims=True)
        xc = xt - mu
        var = jnp.mean(xc * xc, axis=-1, keepdims=True)
        xn = xc * jax.lax.rsqrt(var + 1e-6) * g + b        # (TILE, dim) f32
        xn_ref[pl.ds(off, tile), :] = xn
        if needs_mask:
            rows = off + jax.lax.broadcasted_iota(jnp.int32, (tile, 1), 0)
            xn = jnp.where(rows < hw_valid, xn, 0.0)
        sum_ref[...] += jnp.sum(xn, axis=0, keepdims=True)

    # ---- channel attention on the full-HW pooled mean (once per batch) -------
    pooled = sum_ref[...] * (1.0 / hw_valid)               # (1, dim) f32
    h_ca = _gelu_exact(
        jnp.dot(pooled, ca_w1_ref[...], preferred_element_type=jnp.float32)
        + ca_b1_ref[...])                                  # (1, PAD)
    ca = _sigmoid(
        jnp.dot(h_ca, ca_w2_ref[...], preferred_element_type=jnp.float32)
        + ca_b2_ref[...])                                  # (1, dim)

    pa_b2 = pa_b2_ref[0]

    # ---- pass 2: pixel attention + fused fc1 (K=2*dim) + fc2, store NCHW -----
    @pl.loop(0, n_tiles)
    def _(t):
        off = pl.multiple_of(t * tile, tile)
        xn = xn_ref[pl.ds(off, tile), :]                   # (TILE, dim) f32
        xn_bf = xn.astype(jnp.bfloat16)

        h_pa = _gelu_exact(
            jnp.dot(xn_bf, pa_w1_ref[...], preferred_element_type=jnp.float32)
            + pa_b1_ref[...])                              # (TILE, PAD) f32
        pa_logit = (jnp.sum(h_pa * pa_w2_ref[...], axis=-1, keepdims=True)
                    + pa_b2)                               # (TILE, 1)
        pa = _sigmoid(pa_logit)

        # fused fc1: single K=2*dim matmul against the shared weight
        lhs = jnp.concatenate([ca * xn, pa * xn], axis=-1).astype(jnp.bfloat16)
        h = _gelu_exact(
            jnp.dot(lhs, fc1_w_ref[...], preferred_element_type=jnp.float32)
            + fc1_b_ref[...])                              # (TILE, hidden) f32
        out = (jnp.dot(h.astype(jnp.bfloat16), fc2_w_ref[...],
                       preferred_element_type=jnp.float32)
               + fc2_b_ref[...])                           # (TILE, out_dim) f32
        # transpose back to channels-first and store lane-dense (TILE wide).
        out_ref[0, :, pl.ds(off, tile)] = out.T.astype(out_ref.dtype)


def _vmem_capacity_bytes():
    try:
        return int(pltpu.get_tpu_info().vmem_capacity_bytes)
    except Exception:
        return 64 * 1024 * 1024            # assume the smallest (v7x per-TC)


def ffn_pallas(x_nchw, params):
    """x_nchw: (N, dim, H, W) float32. Returns (N, out_dim, H, W) float32."""
    N, dim, H, W = x_nchw.shape
    HW = H * W
    hidden = params["fc1_w"].shape[1]
    out_dim = params["fc2_w"].shape[1]
    d8 = params["ca_w1"].shape[1]
    pad = ((d8 + 127) // 128) * 128

    vmem_cap = _vmem_capacity_bytes()
    # Bigger spatial tiles on 128-MiB parts (v5e/v6e), smaller on v7x (64 MiB).
    cands = (1024, 512, 256, 128) if vmem_cap >= (96 << 20) else (512, 256, 128)
    tile = next((c for c in cands if HW >= c), 128)
    hw_pad = ((HW + tile - 1) // tile) * tile
    n_tiles = hw_pad // tile
    needs_mask = hw_pad != HW

    # NCHW -> (N, dim, HW) is a free reshape; no wrapper transposes.
    x = x_nchw.reshape(N, dim, HW)
    if needs_mask:
        x = jnp.pad(x, ((0, 0), (0, 0), (0, hw_pad - HW)))

    # Shared bf16 MXU weights (no per-batch folded weights in HBM).
    fc1_w = params["fc1_w"].astype(jnp.bfloat16)            # (2*dim, hidden)
    fc2_w = params["fc2_w"].astype(jnp.bfloat16)            # (hidden, out_dim)

    # Pixel / channel attention weights: pad dim//8 hidden width to a lane-dense
    # 128; the width-1 second pa conv becomes a (1, PAD) row (VPU mul + sum).
    pa_w1p = jnp.zeros((dim, pad), jnp.bfloat16).at[:, :d8].set(
        params["pa_w1"].astype(jnp.bfloat16))
    pa_b1p = jnp.zeros((1, pad), jnp.float32).at[:, :d8].set(params["pa_b1"])
    pa_w2p = jnp.zeros((1, pad), jnp.float32).at[:, :d8].set(
        params["pa_w2"][:, 0][None, :])
    pa_b2 = params["pa_b2"].reshape((1,)).astype(jnp.float32)
    ca_w1p = jnp.zeros((dim, pad), jnp.float32).at[:, :d8].set(params["ca_w1"])
    ca_b1p = jnp.zeros((1, pad), jnp.float32).at[:, :d8].set(params["ca_b1"])
    ca_w2p = jnp.zeros((pad, dim), jnp.float32).at[:d8, :].set(params["ca_w2"])

    # VMEM budget: double-buffered per-batch x/out slabs + xn scratch + resident
    # weights + per-tile live temps.  Cap below physical VMEM with headroom.
    est = (2 * dim * hw_pad * 4 + 2 * out_dim * hw_pad * 4 + dim * hw_pad * 4
           + (2 * dim * hidden + hidden * out_dim + dim * pad) * 2
           + (2 * dim * pad + pad * dim) * 4
           + (2 * dim + hidden + out_dim + 2 * pad) * 4
           + tile * (4 * dim + pad + hidden + out_dim) * 4)
    vmem_limit = int(min(int(0.75 * vmem_cap),
                         max(32 * 1024 * 1024, 2 * est)))

    def _full(shape):
        nd = len(shape)
        return pl.BlockSpec(shape, lambda n, _nd=nd: (0,) * _nd)

    in_specs = [
        pl.BlockSpec((1, dim, hw_pad), lambda n: (n, 0, 0)),      # x (NCHW slab)
        _full(params["ln_g"].shape), _full(params["ln_b"].shape),
        _full(ca_w1p.shape), _full(ca_b1p.shape), _full(ca_w2p.shape),
        _full(params["ca_b2"].shape),
        _full(pa_w1p.shape), _full(pa_b1p.shape), _full(pa_w2p.shape),
        _full(fc1_w.shape), _full(params["fc1_b"].shape),
        _full(fc2_w.shape), _full(params["fc2_b"].shape),
        pl.BlockSpec(memory_space=pltpu.MemorySpace.SMEM),        # pa_b2 scalar
    ]
    out_specs = pl.BlockSpec((1, out_dim, hw_pad), lambda n: (n, 0, 0))

    kernel = functools.partial(ffn_kernel, tile=tile, n_tiles=n_tiles,
                               hw_valid=HW, needs_mask=needs_mask)

    out = pl.pallas_call(
        kernel,
        out_shape=jax.ShapeDtypeStruct((N, out_dim, hw_pad), jnp.float32),
        grid_spec=pltpu.PrefetchScalarGridSpec(
            num_scalar_prefetch=0,
            grid=(N,),
            in_specs=in_specs,
            out_specs=out_specs,
            scratch_shapes=[pltpu.VMEM((hw_pad, dim), jnp.float32),   # xn
                            pltpu.VMEM((1, dim), jnp.float32)],       # pooled sum
        ),
        compiler_params=pltpu.CompilerParams(
            dimension_semantics=("parallel",),
            vmem_limit_bytes=vmem_limit),
    )(x, params["ln_g"], params["ln_b"],
      ca_w1p, ca_b1p, ca_w2p, params["ca_b2"],
      pa_w1p, pa_b1p, pa_w2p,
      fc1_w, params["fc1_b"], fc2_w, params["fc2_b"], pa_b2)

    if needs_mask:
        out = out[:, :, :HW]
    return out.reshape(N, out_dim, H, W)


def ffn_reference(x_nchw, params):
    """Pure-JAX f32 reference of the PyTorch FFN forward (for validation)."""
    x = jnp.transpose(x_nchw, (0, 2, 3, 1))                 # NHWC
    mu = jnp.mean(x, axis=-1, keepdims=True)
    var = jnp.mean((x - mu) ** 2, axis=-1, keepdims=True)
    xn = (x - mu) / jnp.sqrt(var + 1e-6) * params["ln_g"][0] + params["ln_b"][0]

    gelu = _gelu_exact
    sig = jax.nn.sigmoid

    pooled = jnp.mean(xn, axis=(1, 2), keepdims=True)                 # (N,1,1,dim)
    ca = sig(gelu(pooled @ params["ca_w1"] + params["ca_b1"]) @ params["ca_w2"]
             + params["ca_b2"])                                       # (N,1,1,dim)
    pa = sig(gelu(xn @ params["pa_w1"] + params["pa_b1"]) @ params["pa_w2"]
             + params["pa_b2"])                                       # (N,H,W,1)

    xcat = jnp.concatenate([ca * xn, pa * xn], axis=-1)               # (N,H,W,2*dim)
    h = gelu(xcat @ params["fc1_w"] + params["fc1_b"])
    out = h @ params["fc2_w"] + params["fc2_b"]
    return jnp.transpose(out, (0, 3, 1, 2))


def make_params(key, dim, hidden_dim, out_dim):
    d8 = dim // 8
    ks = jax.random.split(key, 8)

    def w(k, shape, fan_in):
        return jax.random.normal(k, shape, jnp.float32) / math.sqrt(fan_in)

    return {
        "ln_g": jnp.ones((1, dim), jnp.float32),
        "ln_b": jnp.zeros((1, dim), jnp.float32),
        "ca_w1": w(ks[0], (dim, d8), dim),
        "ca_b1": jnp.full((1, d8), 0.01, jnp.float32),
        "ca_w2": w(ks[1], (d8, dim), d8),
        "ca_b2": jnp.full((1, dim), -0.02, jnp.float32),
        "pa_w1": w(ks[2], (dim, d8), dim),
        "pa_b1": jnp.full((1, d8), 0.03, jnp.float32),
        "pa_w2": w(ks[3], (d8, 1), d8),
        "pa_b2": jnp.full((1, 1), 0.0, jnp.float32),
        "fc1_w": w(ks[4], (2 * dim, hidden_dim), 2 * dim),
        "fc1_b": jnp.full((1, hidden_dim), 0.05, jnp.float32),
        "fc2_w": w(ks[5], (hidden_dim, out_dim), hidden_dim),
        "fc2_b": jnp.full((1, out_dim), -0.01, jnp.float32),
    }


if __name__ == "__main__":
    # Lane-dense small shapes: dim / hidden / out_dim multiples of 128.
    N, dim, H, W = 2, 128, 32, 32
    hidden_dim, out_dim = 256, 128

    key = jax.random.PRNGKey(0)
    kx, kp = jax.random.split(key)
    x = jax.random.normal(kx, (N, dim, H, W), jnp.float32)
    params = make_params(kp, dim, hidden_dim, out_dim)

    out = jax.block_until_ready(jax.jit(ffn_pallas)(x, params))
    ref = ffn_reference(x, params)

    assert out.shape == (N, out_dim, H, W)
    max_err = float(jnp.max(jnp.abs(out - ref)))
    # bf16 MXU inputs with f32 accumulation -> loosened tolerance vs f32 ref.
    assert jnp.allclose(out, ref, rtol=5e-2, atol=5e-2), max_err
    print("KERNEL_OK")
</pallas_src>

<mosaic_0001>
module attributes {stable_mosaic.version = 11 : i64} {
  func.func @ffn_kernel(%arg0: i32, %arg1: memref<1x128x1024xf32, #tpu.memory_space<vmem>>, %arg2: memref<1x128xf32, #tpu.memory_space<vmem>>, %arg3: memref<1x128xf32, #tpu.memory_space<vmem>>, %arg4: memref<128x128xf32, #tpu.memory_space<vmem>>, %arg5: memref<1x128xf32, #tpu.memory_space<vmem>>, %arg6: memref<128x128xf32, #tpu.memory_space<vmem>>, %arg7: memref<1x128xf32, #tpu.memory_space<vmem>>, %arg8: memref<128x128xbf16, #tpu.memory_space<vmem>>, %arg9: memref<1x128xf32, #tpu.memory_space<vmem>>, %arg10: memref<1x128xf32, #tpu.memory_space<vmem>>, %arg11: memref<256x256xbf16, #tpu.memory_space<vmem>>, %arg12: memref<1x256xf32, #tpu.memory_space<vmem>>, %arg13: memref<256x128xbf16, #tpu.memory_space<vmem>>, %arg14: memref<1x128xf32, #tpu.memory_space<vmem>>, %arg15: memref<1xf32, #tpu.memory_space<smem>>, %arg16: memref<1x128x1024xf32, #tpu.memory_space<vmem>>, %arg17: memref<1024x128xf32, #tpu.memory_space<vmem>>, %arg18: memref<1x128xf32, #tpu.memory_space<vmem>>) attributes {dimension_semantics = [#tpu.dimension_semantics<parallel>], iteration_bounds = array<i64: 2>, scalar_prefetch = 0 : i64, scratch_operands = 2 : i64, tpu.core_type = #tpu.core_type<tc>, window_params = [{transform_indices = @transform_0, window_bounds = array<i64: 1, 128, 1024>}, {pipeline_mode = #tpu.pipeline_mode<synchronous>, transform_indices = @transform_1, window_bounds = array<i64: 1, 128>}, {pipeline_mode = #tpu.pipeline_mode<synchronous>, transform_indices = @transform_2, window_bounds = array<i64: 1, 128>}, {pipeline_mode = #tpu.pipeline_mode<synchronous>, transform_indices = @transform_3, window_bounds = array<i64: 128, 128>}, {pipeline_mode = #tpu.pipeline_mode<synchronous>, transform_indices = @transform_4, window_bounds = array<i64: 1, 128>}, {pipeline_mode = #tpu.pipeline_mode<synchronous>, transform_indices = @transform_5, window_bounds = array<i64: 128, 128>}, {pipeline_mode = #tpu.pipeline_mode<synchronous>, transform_indices = @transform_6, window_bounds = array<i64: 1, 128>}, {pipeline_mode = #tpu.pipeline_mode<synchronous>, transform_indices = @transform_7, window_bounds = array<i64: 128, 128>}, {pipeline_mode = #tpu.pipeline_mode<synchronous>, transform_indices = @transform_8, window_bounds = array<i64: 1, 128>}, {pipeline_mode = #tpu.pipeline_mode<synchronous>, transform_indices = @transform_9, window_bounds = array<i64: 1, 128>}, {pipeline_mode = #tpu.pipeline_mode<synchronous>, transform_indices = @transform_10, window_bounds = array<i64: 256, 256>}, {pipeline_mode = #tpu.pipeline_mode<synchronous>, transform_indices = @transform_11, window_bounds = array<i64: 1, 256>}, {pipeline_mode = #tpu.pipeline_mode<synchronous>, transform_indices = @transform_12, window_bounds = array<i64: 256, 128>}, {pipeline_mode = #tpu.pipeline_mode<synchronous>, transform_indices = @transform_13, window_bounds = array<i64: 1, 128>}, {transform_indices = @transform_14, window_bounds = array<i64: 1>}, {transform_indices = @transform_15, window_bounds = array<i64: 1, 128, 1024>}]} {
    %c0 = arith.constant 0 : index
    %c0_0 = arith.constant 0 : index
    %0 = vector.load %arg2[%c0, %c0_0] : memref<1x128xf32, #tpu.memory_space<vmem>>, vector<1x128xf32>
    %c0_1 = arith.constant 0 : index
    %c0_2 = arith.constant 0 : index
    %1 = vector.load %arg3[%c0_1, %c0_2] : memref<1x128xf32, #tpu.memory_space<vmem>>, vector<1x128xf32>
    %cst = arith.constant 0.000000e+00 : f32
    %2 = vector.broadcast %cst : f32 to vector<1x128xf32>
    %c0_3 = arith.constant 0 : index
    %c0_4 = arith.constant 0 : index
    %3 = vector.load %arg18[%c0_3, %c0_4] : memref<1x128xf32, #tpu.memory_space<vmem>>, vector<1x128xf32>
    tpu.vector_store %arg18[%c0_3, %c0_4], %2 {strides = array<i32>} : memref<1x128xf32, #tpu.memory_space<vmem>>, vector<1x128xf32>,
    %c0_i32 = arith.constant 0 : i32
    %c2_i32 = arith.constant 2 : i32
    %4 = arith.addi %c0_i32, %c2_i32 : i32
    %c1_i32 = arith.constant 1 : i32
    scf.for %arg19 = %c0_i32 to %4 step %c1_i32  : i32 {
      %c1_i32_30 = arith.constant 1 : i32
      %33 = arith.muli %arg19, %c1_i32_30 : i32
      %c0_i32_31 = arith.constant 0 : i32
      %34 = arith.addi %c0_i32_31, %33 : i32
      %c512_i32 = arith.constant 512 : i32
      %35 = arith.muli %34, %c512_i32 : i32
      %36 = tpu.assume_multiple %35, 512 : i32
      %c0_32 = arith.constant 0 : index
      %c0_33 = arith.constant 0 : index
      %37 = arith.index_cast %36 : i32 to index
      %38 = vector.load %arg1[%c0_32, %c0_33, %37] : memref<1x128x1024xf32, #tpu.memory_space<vmem>>, vector<1x128x512xf32>
      %39 = vector.shape_cast %38 : vector<1x128x512xf32> to vector<128x512xf32>
      %40 = tpu.transpose %39, [1, 0] : vector<128x512xf32> -> vector<512x128xf32>
      %cst_34 = arith.constant dense<0.000000e+00> : vector<512xf32>
      %41 = vector.multi_reduction <add>, %40, %cst_34 [1] : vector<512x128xf32> to vector<512xf32>
      %42 = vector.shape_cast %41 : vector<512xf32> to vector<512x1xf32>
      %cst_35 = arith.constant 1.280000e+02 : f32
      %43 = vector.broadcast %cst_35 : f32 to vector<512x1xf32>
      %44 = arith.divf %42, %43 : vector<512x1xf32>
      %45 = vector.broadcast %44 : vector<512x1xf32> to vector<512x128xf32>
      %46 = arith.subf %40, %45 : vector<512x128xf32>
      %47 = arith.mulf %46, %46 : vector<512x128xf32>
      %cst_36 = arith.constant dense<0.000000e+00> : vector<512xf32>
      %48 = vector.multi_reduction <add>, %47, %cst_36 [1] : vector<512x128xf32> to vector<512xf32>
      %49 = vector.shape_cast %48 : vector<512xf32> to vector<512x1xf32>
      %cst_37 = arith.constant 1.280000e+02 : f32
      %50 = vector.broadcast %cst_37 : f32 to vector<512x1xf32>
      %51 = arith.divf %49, %50 : vector<512x1xf32>
      %cst_38 = arith.constant 9.99999997E-7 : f32
      %52 = vector.broadcast %cst_38 : f32 to vector<512x1xf32>
      %53 = arith.addf %51, %52 : vector<512x1xf32>
      %54 = math.rsqrt %53 : vector<512x1xf32>
      %55 = vector.broadcast %54 : vector<512x1xf32> to vector<512x128xf32>
      %56 = arith.mulf %46, %55 : vector<512x128xf32>
      %57 = vector.broadcast %0 : vector<1x128xf32> to vector<512x128xf32>
      %58 = arith.mulf %56, %57 : vector<512x128xf32>
      %59 = vector.broadcast %1 : vector<1x128xf32> to vector<512x128xf32>
      %60 = arith.addf %58, %59 : vector<512x128xf32>
      %61 = arith.index_cast %36 : i32 to index
      %c0_39 = arith.constant 0 : index
      %62 = vector.load %arg17[%61, %c0_39] : memref<1024x128xf32, #tpu.memory_space<vmem>>, vector<512x128xf32>
      tpu.vector_store %arg17[%61, %c0_39], %60 {strides = array<i32>} : memref<1024x128xf32, #tpu.memory_space<vmem>>, vector<512x128xf32>,
      %c0_40 = arith.constant 0 : index
      %c0_41 = arith.constant 0 : index
      %63 = vector.load %arg18[%c0_40, %c0_41] : memref<1x128xf32, #tpu.memory_space<vmem>>, vector<1x128xf32>
      %cst_42 = arith.constant dense<0.000000e+00> : vector<128xf32>
      %64 = vector.multi_reduction <add>, %60, %cst_42 [0] : vector<512x128xf32> to vector<128xf32>
      %65 = vector.shape_cast %64 : vector<128xf32> to vector<1x128xf32>
      %66 = arith.addf %63, %65 : vector<1x128xf32>
      %c0_43 = arith.constant 0 : index
      %c0_44 = arith.constant 0 : index
      %67 = vector.load %arg18[%c0_43, %c0_44] : memref<1x128xf32, #tpu.memory_space<vmem>>, vector<1x128xf32>
      tpu.vector_store %arg18[%c0_43, %c0_44], %66 {strides = array<i32>} : memref<1x128xf32, #tpu.memory_space<vmem>>, vector<1x128xf32>,
    }
    %c2_i32_5 = arith.constant 2 : i32
    %c0_6 = arith.constant 0 : index
    %c0_7 = arith.constant 0 : index
    %5 = vector.load %arg18[%c0_6, %c0_7] : memref<1x128xf32, #tpu.memory_space<vmem>>, vector<1x128xf32>
    %cst_8 = arith.constant 9.765625E-4 : f32
    %6 = vector.broadcast %cst_8 : f32 to vector<1x128xf32>
    %7 = arith.mulf %5, %6 : vector<1x128xf32>
    %c0_9 = arith.constant 0 : index
    %c0_10 = arith.constant 0 : index
    %8 = vector.load %arg4[%c0_9, %c0_10] : memref<128x128xf32, #tpu.memory_space<vmem>>, vector<128x128xf32>
    %cst_11 = arith.constant dense<0.000000e+00> : vector<1x128xf32>
    %9 = tpu.matmul %7, %8, %cst_11 {dimension_numbers = #tpu.dot_dimension_numbers<[1], [0], [0], [1], [0, 0, 1, 1], [], []>} : vector<1x128xf32>, vector<128x128xf32>, vector<1x128xf32> -> vector<1x128xf32>
    %c0_12 = arith.constant 0 : index
    %c0_13 = arith.constant 0 : index
    %10 = vector.load %arg5[%c0_12, %c0_13] : memref<1x128xf32, #tpu.memory_space<vmem>>, vector<1x128xf32>
    %11 = arith.addf %9, %10 : vector<1x128xf32>
    %cst_14 = arith.constant 5.000000e-01 : f32
    %12 = vector.broadcast %cst_14 : f32 to vector<1x128xf32>
    %13 = arith.mulf %12, %11 : vector<1x128xf32>
    %cst_15 = arith.constant 0.707106769 : f32
    %14 = vector.broadcast %cst_15 : f32 to vector<1x128xf32>
    %15 = arith.mulf %11, %14 : vector<1x128xf32>
    %16 = math.erf %15 : vector<1x128xf32>
    %cst_16 = arith.constant 1.000000e+00 : f32
    %17 = vector.broadcast %cst_16 : f32 to vector<1x128xf32>
    %18 = arith.addf %17, %16 : vector<1x128xf32>
    %19 = arith.mulf %13, %18 : vector<1x128xf32>
    %c0_17 = arith.constant 0 : index
    %c0_18 = arith.constant 0 : index
    %20 = vector.load %arg6[%c0_17, %c0_18] : memref<128x128xf32, #tpu.memory_space<vmem>>, vector<128x128xf32>
    %cst_19 = arith.constant dense<0.000000e+00> : vector<1x128xf32>
    %21 = tpu.matmul %19, %20, %cst_19 {dimension_numbers = #tpu.dot_dimension_numbers<[1], [0], [0], [1], [0, 0, 1, 1], [], []>} : vector<1x128xf32>, vector<128x128xf32>, vector<1x128xf32> -> vector<1x128xf32>
    %c0_20 = arith.constant 0 : index
    %c0_21 = arith.constant 0 : index
    %22 = vector.load %arg7[%c0_20, %c0_21] : memref<1x128xf32, #tpu.memory_space<vmem>>, vector<1x128xf32>
    %23 = arith.addf %21, %22 : vector<1x128xf32>
    %cst_22 = arith.constant 0.000000e+00 : f32
    %24 = vector.broadcast %cst_22 : f32 to vector<1x128xf32>
    %25 = arith.subf %24, %23 : vector<1x128xf32>
    %26 = math.exp %25 : vector<1x128xf32>
    %cst_23 = arith.constant 1.000000e+00 : f32
    %27 = vector.broadcast %cst_23 : f32 to vector<1x128xf32>
    %28 = arith.addf %27, %26 : vector<1x128xf32>
    %cst_24 = arith.constant 1.000000e+00 : f32
    %29 = vector.broadcast %cst_24 : f32 to vector<1x128xf32>
    %30 = arith.divf %29, %28 : vector<1x128xf32>
    %c0_25 = arith.constant 0 : index
    %31 = memref.load %arg15[%c0_25] : memref<1xf32, #tpu.memory_space<smem>>
    %c0_i32_26 = arith.constant 0 : i32
    %c2_i32_27 = arith.constant 2 : i32
    %32 = arith.addi %c0_i32_26, %c2_i32_27 : i32
    %c1_i32_28 = arith.constant 1 : i32
    scf.for %arg19 = %c0_i32_26 to %32 step %c1_i32_28  : i32 {
      %c1_i32_30 = arith.constant 1 : i32
      %33 = arith.muli %arg19, %c1_i32_30 : i32
      %c0_i32_31 = arith.constant 0 : i32
      %34 = arith.addi %c0_i32_31, %33 : i32
      %c512_i32 = arith.constant 512 : i32
      %35 = arith.muli %34, %c512_i32 : i32
      %36 = tpu.assume_multiple %35, 512 : i32
      %37 = arith.index_cast %36 : i32 to index
      %c0_32 = arith.constant 0 : index
      %38 = vector.load %arg17[%37, %c0_32] : memref<1024x128xf32, #tpu.memory_space<vmem>>, vector<512x128xf32>
      %39 = arith.truncf %38 : vector<512x128xf32> to vector<512x128xbf16>
      %c0_33 = arith.constant 0 : index
      %c0_34 = arith.constant 0 : index
      %40 = vector.load %arg8[%c0_33, %c0_34] : memref<128x128xbf16, #tpu.memory_space<vmem>>, vector<128x128xbf16>
      %cst_35 = arith.constant dense<0.000000e+00> : vector<512x128xf32>
      %41 = tpu.matmul %39, %40, %cst_35 {dimension_numbers = #tpu.dot_dimension_numbers<[1], [0], [0], [1], [0, 0, 1, 1], [], []>} : vector<512x128xbf16>, vector<128x128xbf16>, vector<512x128xf32> -> vector<512x128xf32>
      %c0_36 = arith.constant 0 : index
      %c0_37 = arith.constant 0 : index
      %42 = vector.load %arg9[%c0_36, %c0_37] : memref<1x128xf32, #tpu.memory_space<vmem>>, vector<1x128xf32>
      %43 = vector.broadcast %42 : vector<1x128xf32> to vector<512x128xf32>
      %44 = arith.addf %41, %43 : vector<512x128xf32>
      %cst_38 = arith.constant 5.000000e-01 : f32
      %45 = vector.broadcast %cst_38 : f32 to vector<512x128xf32>
      %46 = arith.mulf %45, %44 : vector<512x128xf32>
      %cst_39 = arith.constant 0.707106769 : f32
      %47 = vector.broadcast %cst_39 : f32 to vector<512x128xf32>
      %48 = arith.mulf %44, %47 : vector<512x128xf32>
      %49 = math.erf %48 : vector<512x128xf32>
      %cst_40 = arith.constant 1.000000e+00 : f32
      %50 = vector.broadcast %cst_40 : f32 to vector<512x128xf32>
      %51 = arith.addf %50, %49 : vector<512x128xf32>
      %52 = arith.mulf %46, %51 : vector<512x128xf32>
      %c0_41 = arith.constant 0 : index
      %c0_42 = arith.constant 0 : index
      %53 = vector.load %arg10[%c0_41, %c0_42] : memref<1x128xf32, #tpu.memory_space<vmem>>, vector<1x128xf32>
      %54 = vector.broadcast %53 : vector<1x128xf32> to vector<512x128xf32>
      %55 = arith.mulf %52, %54 : vector<512x128xf32>
      %cst_43 = arith.constant dense<0.000000e+00> : vector<512xf32>
      %56 = vector.multi_reduction <add>, %55, %cst_43 [1] : vector<512x128xf32> to vector<512xf32>
      %57 = vector.shape_cast %56 : vector<512xf32> to vector<512x1xf32>
      %58 = vector.broadcast %31 : f32 to vector<512x1xf32>
      %59 = arith.addf %57, %58 : vector<512x1xf32>
      %cst_44 = arith.constant 0.000000e+00 : f32
      %60 = vector.broadcast %cst_44 : f32 to vector<512x1xf32>
      %61 = arith.subf %60, %59 : vector<512x1xf32>
      %62 = math.exp %61 : vector<512x1xf32>
      %cst_45 = arith.constant 1.000000e+00 : f32
      %63 = vector.broadcast %cst_45 : f32 to vector<512x1xf32>
      %64 = arith.addf %63, %62 : vector<512x1xf32>
      %cst_46 = arith.constant 1.000000e+00 : f32
      %65 = vector.broadcast %cst_46 : f32 to vector<512x1xf32>
      %66 = arith.divf %65, %64 : vector<512x1xf32>
      %67 = vector.broadcast %30 : vector<1x128xf32> to vector<512x128xf32>
      %68 = arith.mulf %67, %38 : vector<512x128xf32>
      %69 = vector.broadcast %66 : vector<512x1xf32> to vector<512x128xf32>
      %70 = arith.mulf %69, %38 : vector<512x128xf32>
      %71 = tpu.concatenate %68, %70 in 1 : vector<512x128xf32>, vector<512x128xf32> -> vector<512x256xf32>
      %72 = arith.truncf %71 : vector<512x256xf32> to vector<512x256xbf16>
      %c0_47 = arith.constant 0 : index
      %c0_48 = arith.constant 0 : index
      %73 = vector.load %arg11[%c0_47, %c0_48] : memref<256x256xbf16, #tpu.memory_space<vmem>>, vector<256x256xbf16>
      %cst_49 = arith.constant dense<0.000000e+00> : vector<512x256xf32>
      %74 = tpu.matmul %72, %73, %cst_49 {dimension_numbers = #tpu.dot_dimension_numbers<[1], [0], [0], [1], [0, 0, 1, 1], [], []>} : vector<512x256xbf16>, vector<256x256xbf16>, vector<512x256xf32> -> vector<512x256xf32>
      %c0_50 = arith.constant 0 : index
      %c0_51 = arith.constant 0 : index
      %75 = vector.load %arg12[%c0_50, %c0_51] : memref<1x256xf32, #tpu.memory_space<vmem>>, vector<1x256xf32>
      %76 = vector.broadcast %75 : vector<1x256xf32> to vector<512x256xf32>
      %77 = arith.addf %74, %76 : vector<512x256xf32>
      %cst_52 = arith.constant 5.000000e-01 : f32
      %78 = vector.broadcast %cst_52 : f32 to vector<512x256xf32>
      %79 = arith.mulf %78, %77 : vector<512x256xf32>
      %cst_53 = arith.constant 0.707106769 : f32
      %80 = vector.broadcast %cst_53 : f32 to vector<512x256xf32>
      %81 = arith.mulf %77, %80 : vector<512x256xf32>
      %82 = math.erf %81 : vector<512x256xf32>
      %cst_54 = arith.constant 1.000000e+00 : f32
      %83 = vector.broadcast %cst_54 : f32 to vector<512x256xf32>
      %84 = arith.addf %83, %82 : vector<512x256xf32>
      %85 = arith.mulf %79, %84 : vector<512x256xf32>
      %86 = arith.truncf %85 : vector<512x256xf32> to vector<512x256xbf16>
      %c0_55 = arith.constant 0 : index
      %c0_56 = arith.constant 0 : index
      %87 = vector.load %arg13[%c0_55, %c0_56] : memref<256x128xbf16, #tpu.memory_space<vmem>>, vector<256x128xbf16>
      %cst_57 = arith.constant dense<0.000000e+00> : vector<512x128xf32>
      %88 = tpu.matmul %86, %87, %cst_57 {dimension_numbers = #tpu.dot_dimension_numbers<[1], [0], [0], [1], [0, 0, 1, 1], [], []>} : vector<512x256xbf16>, vector<256x128xbf16>, vector<512x128xf32> -> vector<512x128xf32>
      %c0_58 = arith.constant 0 : index
      %c0_59 = arith.constant 0 : index
      %89 = vector.load %arg14[%c0_58, %c0_59] : memref<1x128xf32, #tpu.memory_space<vmem>>, vector<1x128xf32>
      %90 = vector.broadcast %89 : vector<1x128xf32> to vector<512x128xf32>
      %91 = arith.addf %88, %90 : vector<512x128xf32>
      %92 = tpu.transpose %91, [1, 0] : vector<512x128xf32> -> vector<128x512xf32>
      %c0_60 = arith.constant 0 : index
      %c0_61 = arith.constant 0 : index
      %93 = arith.index_cast %36 : i32 to index
      %94 = vector.load %arg16[%c0_60, %c0_61, %93] : memref<1x128x1024xf32, #tpu.memory_space<vmem>>, vector<1x128x512xf32>
      %95 = vector.shape_cast %94 : vector<1x128x512xf32> to vector<128x512xf32>
      %96 = vector.shape_cast %92 : vector<128x512xf32> to vector<1x128x512xf32>
      tpu.vector_store %arg16[%c0_60, %c0_61, %93], %96 {strides = array<i32>} : memref<1x128x1024xf32, #tpu.memory_space<vmem>>, vector<1x128x512xf32>,
    }
    %c2_i32_29 = arith.constant 2 : i32
    return
  }
  func.func @transform_0(%arg0: i32) -> (i32, i32, i32) {
    %c0_i32 = arith.constant 0 : i32
    %c0_i32_0 = arith.constant 0 : i32
    %c0_i32_1 = arith.constant 0 : i32
    return %arg0, %c0_i32, %c0_i32_0 : i32, i32, i32
  }
  func.func @transform_1(%arg0: i32) -> (i32, i32) {
    %c0_i32 = arith.constant 0 : i32
    %c0_i32_0 = arith.constant 0 : i32
    %c0_i32_1 = arith.constant 0 : i32
    return %c0_i32, %c0_i32_0 : i32, i32
  }
  func.func @transform_2(%arg0: i32) -> (i32, i32) {
    %c0_i32 = arith.constant 0 : i32
    %c0_i32_0 = arith.constant 0 : i32
    %c0_i32_1 = arith.constant 0 : i32
    return %c0_i32, %c0_i32_0 : i32, i32
  }
  func.func @transform_3(%arg0: i32) -> (i32, i32) {
    %c0_i32 = arith.constant 0 : i32
    %c0_i32_0 = arith.constant 0 : i32
    %c0_i32_1 = arith.constant 0 : i32
    return %c0_i32, %c0_i32_0 : i32, i32
  }
  func.func @transform_4(%arg0: i32) -> (i32, i32) {
    %c0_i32 = arith.constant 0 : i32
    %c0_i32_0 = arith.constant 0 : i32
    %c0_i32_1 = arith.constant 0 : i32
    return %c0_i32, %c0_i32_0 : i32, i32
  }
  func.func @transform_5(%arg0: i32) -> (i32, i32) {
    %c0_i32 = arith.constant 0 : i32
    %c0_i32_0 = arith.constant 0 : i32
    %c0_i32_1 = arith.constant 0 : i32
    return %c0_i32, %c0_i32_0 : i32, i32
  }
  func.func @transform_6(%arg0: i32) -> (i32, i32) {
    %c0_i32 = arith.constant 0 : i32
    %c0_i32_0 = arith.constant 0 : i32
    %c0_i32_1 = arith.constant 0 : i32
    return %c0_i32, %c0_i32_0 : i32, i32
  }
  func.func @transform_7(%arg0: i32) -> (i32, i32) {
    %c0_i32 = arith.constant 0 : i32
    %c0_i32_0 = arith.constant 0 : i32
    %c0_i32_1 = arith.constant 0 : i32
    return %c0_i32, %c0_i32_0 : i32, i32
  }
  func.func @transform_8(%arg0: i32) -> (i32, i32) {
    %c0_i32 = arith.constant 0 : i32
    %c0_i32_0 = arith.constant 0 : i32
    %c0_i32_1 = arith.constant 0 : i32
    return %c0_i32, %c0_i32_0 : i32, i32
  }
  func.func @transform_9(%arg0: i32) -> (i32, i32) {
    %c0_i32 = arith.constant 0 : i32
    %c0_i32_0 = arith.constant 0 : i32
    %c0_i32_1 = arith.constant 0 : i32
    return %c0_i32, %c0_i32_0 : i32, i32
  }
  func.func @transform_10(%arg0: i32) -> (i32, i32) {
    %c0_i32 = arith.constant 0 : i32
    %c0_i32_0 = arith.constant 0 : i32
    %c0_i32_1 = arith.constant 0 : i32
    return %c0_i32, %c0_i32_0 : i32, i32
  }
  func.func @transform_11(%arg0: i32) -> (i32, i32) {
    %c0_i32 = arith.constant 0 : i32
    %c0_i32_0 = arith.constant 0 : i32
    %c0_i32_1 = arith.constant 0 : i32
    return %c0_i32, %c0_i32_0 : i32, i32
  }
  func.func @transform_12(%arg0: i32) -> (i32, i32) {
    %c0_i32 = arith.constant 0 : i32
    %c0_i32_0 = arith.constant 0 : i32
    %c0_i32_1 = arith.constant 0 : i32
    return %c0_i32, %c0_i32_0 : i32, i32
  }
  func.func @transform_13(%arg0: i32) -> (i32, i32) {
    %c0_i32 = arith.constant 0 : i32
    %c0_i32_0 = arith.constant 0 : i32
    %c0_i32_1 = arith.constant 0 : i32
    return %c0_i32, %c0_i32_0 : i32, i32
  }
  func.func @transform_14(%arg0: i32) -> i32 {
    %c0_i32 = arith.constant 0 : i32
    %c0_i32_0 = arith.constant 0 : i32
    return %c0_i32 : i32
  }
  func.func @transform_15(%arg0: i32) -> (i32, i32, i32) {
    %c0_i32 = arith.constant 0 : i32
    %c0_i32_0 = arith.constant 0 : i32
    %c0_i32_1 = arith.constant 0 : i32
    return %arg0, %c0_i32, %c0_i32_0 : i32, i32, i32
  }
}

</mosaic_0001>

<llo_original>
// kernel: ffn_pallas.1
$region0: #{ffn_pallas.1}
  #allocation0 [shape = 'u32[]', space=smem, size = 0x4, offset = 0x4, fixed_abs, tag = 'smem constant byte address 0x4 - core index']
  #allocation1 [shape = 'u32[144,128]{1,0:T(1,128)}', space=vmem, size = 0x12000, scoped, tag = 'internal scratch']
  #allocation2 [shape = 'f32[1024,128]{1,0:T(8,128)}', space=vmem, size = 0x80000, scoped, tag = 'scratch operand']
  #allocation3 [shape = 'f32[1,128]{1,0:T(1,128)}', space=vmem, size = 0x200, scoped, tag = 'scratch operand']
  #allocation4 [shape = 'f32[1]{0:T(128)S(6)}', space=smem, size = 0x200, scoped, tag = 'scoped memory for ffn_pallas.1']
  %s0 = inlined_call_operand.vmem [shape: f32[2,128,1024], index: 0, kind: input, shape index: {}]
  %s1 = inlined_call_operand.vmem [shape: f32[1,128], index: 1, kind: input, shape index: {}]
  %s2 = inlined_call_operand.vmem [shape: f32[1,128], index: 2, kind: input, shape index: {}]
  %s3 = inlined_call_operand.vmem [shape: f32[128,128], index: 3, kind: input, shape index: {}]
  %s4 = inlined_call_operand.vmem [shape: f32[1,128], index: 4, kind: input, shape index: {}]
  %s5 = inlined_call_operand.vmem [shape: f32[128,128], index: 5, kind: input, shape index: {}]
  %s6 = inlined_call_operand.vmem [shape: f32[1,128], index: 6, kind: input, shape index: {}]
  %s7 = inlined_call_operand.vmem [shape: bf16[128,128], index: 7, kind: input, shape index: {}]
  %s8 = inlined_call_operand.vmem [shape: f32[1,128], index: 8, kind: input, shape index: {}]
  %s9 = inlined_call_operand.vmem [shape: f32[1,128], index: 9, kind: input, shape index: {}]
  %s10 = inlined_call_operand.vmem [shape: bf16[256,256], index: 10, kind: input, shape index: {}]
  %s11 = inlined_call_operand.vmem [shape: f32[1,256], index: 11, kind: input, shape index: {}]
  %s12 = inlined_call_operand.vmem [shape: bf16[256,128], index: 12, kind: input, shape index: {}]
  %s13 = inlined_call_operand.vmem [shape: f32[1,128], index: 13, kind: input, shape index: {}]
  %s14 = inlined_call_operand.<no memory space> [shape: f32[1], index: 14, kind: input, shape index: {}]
  %s15 = inlined_call_operand.vmem [shape: f32[2,128,1024], index: 15, kind: output, shape index: {}]
  %s16 = sld [smem:[#allocation0]]
  $region107: #{ffn_pallas.1} parent=0
    _
  %s18 = ssub.s32 1, %s16
  %s19 = scalar_select 0, %s18, %s16
  %20 = sst [smem:[#allocation4]] %s14
  loop: start=0, step=1, limit=4
  $region2: #{ffn_pallas.1} parent=0 // loop_pre_header
    _
  $region3: #{ffn_pallas.1} parent=0 // loop_header
    %s22 = sphi 0, %s26
    %p23 = scmp.ge.s32.totalorder %s22, 4
    %s32 = sphi 0, %s34
    %s35 = sphi 0, %s32
    %s36 = sphi 0, %s35
    %s52 = sphi 0, %s36
    %s56 = sphi 0, %s56
    %s58 = sphi 0, %s56
    %s59 = sphi 0, %s58
    %s73 = sphi 0, %s59
    %s77 = sphi 0, %s77
    %s79 = sphi 0, %s77
    %s80 = sphi 0, %s79
    %s94 = sphi 0, %s80
    %s98 = sphi 0, %s98
    %s100 = sphi 0, %s98
    %s101 = sphi 0, %s100
    %s115 = sphi 0, %s101
    %s119 = sphi 0, %s119
    %s121 = sphi 0, %s119
    %s122 = sphi 0, %s121
    %s136 = sphi 0, %s122
    %s140 = sphi 0, %s140
    %s142 = sphi 0, %s140
    %s143 = sphi 0, %s142
    %s157 = sphi 0, %s143
    %s161 = sphi 0, %s161
    %s163 = sphi 0, %s161
    %s164 = sphi 0, %s163
    %s178 = sphi 0, %s164
    %s182 = sphi 0, %s182
    %s184 = sphi 0, %s182
    %s185 = sphi 0, %s184
    %s199 = sphi 0, %s185
    %s203 = sphi 0, %s203
    %s205 = sphi 0, %s203
    %s206 = sphi 0, %s205
    %s220 = sphi 0, %s206
    %s224 = sphi 0, %s224
    %s226 = sphi 0, %s224
    %s227 = sphi 0, %s226
    %s241 = sphi 0, %s227
    %s245 = sphi 0, %s245
    %s247 = sphi 0, %s245
    %s248 = sphi 0, %s247
    %s262 = sphi 0, %s248
    %s266 = sphi 0, %s266
    %s268 = sphi 0, %s266
    %s269 = sphi 0, %s268
    %s283 = sphi 0, %s269
    %s287 = sphi 0, %s287
    %s289 = sphi 0, %s287
    %s290 = sphi 0, %s289
    %s304 = sphi 0, %s290
    %s308 = sphi 0, %s308
    %s310 = sphi 0, %s308
    %s311 = sphi 0, %s310
    %s325 = sphi 0, %s311
    %s329 = sphi 0, %s329
    %s331 = sphi 0, %s329
    %s332 = sphi 0, %s331
    %s346 = sphi 0, %s332
    %s352 = sphi 0, %s354
    %s355 = sphi 0, %s352
    %s356 = sphi 0, %s355
    %s372 = sphi 0, %s356
  $region4: #{ffn_pallas.1} parent=0 // loop_header_branch
    %25 = sbr.rel (%p23) target = $region8
  $region5: #{ffn_pallas.1} parent=0 // loop_body
    %s27 = ssub.s32 %s22, 1
    %s28 = ssub.s32 %s22, 2
    %s29 = sadd.s32 %s22, 1
    %s30 = ssub.s32 %s22, %s29
    %p31 = scmp.eq.s32.totalorder %s30, 0
    %s33 = sadd.s32 %s32, 1
    %s34 = scalar_select %p31, %s32, %s33
    %p37 = pneg %p31
    %p38 = scmp.eq.s32.totalorder %s22, 1
    %p39 = por %p37, %p38
    %p40 = scmp.ne.s32.totalorder %s32, %s35
    %p41 = scmp.eq.s32.totalorder %s22, 0
    %p42 = por %p40, %p41
    %p43 = scmp.ne.s32.totalorder %s32, %s35
    %p44 = scmp.eq.s32.totalorder %s27, 1
    %p45 = por %p43, %p44
    %p46 = scmp.ne.s32.totalorder %s35, %s36
    %p47 = scmp.eq.s32.totalorder %s27, 0
    %p48 = por %p46, %p47
    %p49 = scmp.ne.s32.totalorder %s35, %s36
    %p50 = scmp.eq.s32.totalorder %s28, 1
    %p51 = por %p49, %p50
    %p53 = scmp.ne.s32.totalorder %s36, %s52
    %p54 = scmp.eq.s32.totalorder %s28, 0
    %p55 = por %p53, %p54
    %s57 = sadd.s32 %s56, 1
    %p60 = scmp.eq.s32.totalorder %s22, 1
    %p61 = scmp.ne.s32.totalorder %s56, %s58
    %p62 = scmp.eq.s32.totalorder %s22, 0
    %p63 = por %p61, %p62
    %p64 = scmp.ne.s32.totalorder %s56, %s58
    %p65 = scmp.eq.s32.totalorder %s27, 1
    %p66 = por %p64, %p65
    %p67 = scmp.ne.s32.totalorder %s58, %s59
    %p68 = scmp.eq.s32.totalorder %s27, 0
    %p69 = por %p67, %p68
    %p70 = scmp.ne.s32.totalorder %s58, %s59
    %p71 = scmp.eq.s32.totalorder %s28, 1
    %p72 = por %p70, %p71
    %p74 = scmp.ne.s32.totalorder %s59, %s73
    %p75 = scmp.eq.s32.totalorder %s28, 0
    %p76 = por %p74, %p75
    %s78 = sadd.s32 %s77, 1
    %p81 = scmp.eq.s32.totalorder %s22, 1
    %p82 = scmp.ne.s32.totalorder %s77, %s79
    %p83 = scmp.eq.s32.totalorder %s22, 0
    %p84 = por %p82, %p83
    %p85 = scmp.ne.s32.totalorder %s77, %s79
    %p86 = scmp.eq.s32.totalorder %s27, 1
    %p87 = por %p85, %p86
    %p88 = scmp.ne.s32.totalorder %s79, %s80
    %p89 = scmp.eq.s32.totalorder %s27, 0
    %p90 = por %p88, %p89
    %p91 = scmp.ne.s32.totalorder %s79, %s80
    %p92 = scmp.eq.s32.totalorder %s28, 1
    %p93 = por %p91, %p92
    %p95 = scmp.ne.s32.totalorder %s80, %s94
    %p96 = scmp.eq.s32.totalorder %s28, 0
    %p97 = por %p95, %p96
    %s99 = sadd.s32 %s98, 1
    %p102 = scmp.eq.s32.totalorder %s22, 1
    %p103 = scmp.ne.s32.totalorder %s98, %s100
    %p104 = scmp.eq.s32.totalorder %s22, 0
    %p105 = por %p103, %p104
    %p106 = scmp.ne.s32.totalorder %s98, %s100
    %p107 = scmp.eq.s32.totalorder %s27, 1
    %p108 = por %p106, %p107
    %p109 = scmp.ne.s32.totalorder %s100, %s101
    %p110 = scmp.eq.s32.totalorder %s27, 0
    %p111 = por %p109, %p110
    %p112 = scmp.ne.s32.totalorder %s100, %s101
    %p113 = scmp.eq.s32.totalorder %s28, 1
    %p114 = por %p112, %p113
    %p116 = scmp.ne.s32.totalorder %s101, %s115
    %p117 = scmp.eq.s32.totalorder %s28, 0
    %p118 = por %p116, %p117
    %s120 = sadd.s32 %s119, 1
    %p123 = scmp.eq.s32.totalorder %s22, 1
    %p124 = scmp.ne.s32.totalorder %s119, %s121
    %p125 = scmp.eq.s32.totalorder %s22, 0
    %p126 = por %p124, %p125
    %p127 = scmp.ne.s32.totalorder %s119, %s121
    %p128 = scmp.eq.s32.totalorder %s27, 1
    %p129 = por %p127, %p128
    %p130 = scmp.ne.s32.totalorder %s121, %s122
    %p131 = scmp.eq.s32.totalorder %s27, 0
    %p132 = por %p130, %p131
    %p133 = scmp.ne.s32.totalorder %s121, %s122
    %p134 = scmp.eq.s32.totalorder %s28, 1
    %p135 = por %p133, %p134
    %p137 = scmp.ne.s32.totalorder %s122, %s136
    %p138 = scmp.eq.s32.totalorder %s28, 0
    %p139 = por %p137, %p138
    %s141 = sadd.s32 %s140, 1
    %p144 = scmp.eq.s32.totalorder %s22, 1
    %p145 = scmp.ne.s32.totalorder %s140, %s142
    %p146 = scmp.eq.s32.totalorder %s22, 0
    %p147 = por %p145, %p146
    %p148 = scmp.ne.s32.totalorder %s140, %s142
    %p149 = scmp.eq.s32.totalorder %s27, 1
    %p150 = por %p148, %p149
    %p151 = scmp.ne.s32.totalorder %s142, %s143
    %p152 = scmp.eq.s32.totalorder %s27, 0
    %p153 = por %p151, %p152
    %p154 = scmp.ne.s32.totalorder %s142, %s143
    %p155 = scmp.eq.s32.totalorder %s28, 1
    %p156 = por %p154, %p155
    %p158 = scmp.ne.s32.totalorder %s143, %s157
    %p159 = scmp.eq.s32.totalorder %s28, 0
    %p160 = por %p158, %p159
    %s162 = sadd.s32 %s161, 1
    %p165 = scmp.eq.s32.totalorder %s22, 1
    %p166 = scmp.ne.s32.totalorder %s161, %s163
    %p167 = scmp.eq.s32.totalorder %s22, 0
    %p168 = por %p166, %p167
    %p169 = scmp.ne.s32.totalorder %s161, %s163
    %p170 = scmp.eq.s32.totalorder %s27, 1
    %p171 = por %p169, %p170
    %p172 = scmp.ne.s32.totalorder %s163, %s164
    %p173 = scmp.eq.s32.totalorder %s27, 0
    %p174 = por %p172, %p173
    %p175 = scmp.ne.s32.totalorder %s163, %s164
    %p176 = scmp.eq.s32.totalorder %s28, 1
    %p177 = por %p175, %p176
    %p179 = scmp.ne.s32.totalorder %s164, %s178
    %p180 = scmp.eq.s32.totalorder %s28, 0
    %p181 = por %p179, %p180
    %s183 = sadd.s32 %s182, 1
    %p186 = scmp.eq.s32.totalorder %s22, 1
    %p187 = scmp.ne.s32.totalorder %s182, %s184
    %p188 = scmp.eq.s32.totalorder %s22, 0
    %p189 = por %p187, %p188
    %p190 = scmp.ne.s32.totalorder %s182, %s184
    %p191 = scmp.eq.s32.totalorder %s27, 1
    %p192 = por %p190, %p191
    %p193 = scmp.ne.s32.totalorder %s184, %s185
    %p194 = scmp.eq.s32.totalorder %s27, 0
    %p195 = por %p193, %p194
    %p196 = scmp.ne.s32.totalorder %s184, %s185
    %p197 = scmp.eq.s32.totalorder %s28, 1
    %p198 = por %p196, %p197
    %p200 = scmp.ne.s32.totalorder %s185, %s199
    %p201 = scmp.eq.s32.totalorder %s28, 0
    %p202 = por %p200, %p201
    %s204 = sadd.s32 %s203, 1
    %p207 = scmp.eq.s32.totalorder %s22, 1
    %p208 = scmp.ne.s32.totalorder %s203, %s205
    %p209 = scmp.eq.s32.totalorder %s22, 0
    %p210 = por %p208, %p209
    %p211 = scmp.ne.s32.totalorder %s203, %s205
    %p212 = scmp.eq.s32.totalorder %s27, 1
    %p213 = por %p211, %p212
    %p214 = scmp.ne.s32.totalorder %s205, %s206
    %p215 = scmp.eq.s32.totalorder %s27, 0
    %p216 = por %p214, %p215
    %p217 = scmp.ne.s32.totalorder %s205, %s206
    %p218 = scmp.eq.s32.totalorder %s28, 1
    %p219 = por %p217, %p218
    %p221 = scmp.ne.s32.totalorder %s206, %s220
    %p222 = scmp.eq.s32.totalorder %s28, 0
    %p223 = por %p221, %p222
    %s225 = sadd.s32 %s224, 1
    %p228 = scmp.eq.s32.totalorder %s22, 1
    %p229 = scmp.ne.s32.totalorder %s224, %s226
    %p230 = scmp.eq.s32.totalorder %s22, 0
    %p231 = por %p229, %p230
    %p232 = scmp.ne.s32.totalorder %s224, %s226
    %p233 = scmp.eq.s32.totalorder %s27, 1
    %p234 = por %p232, %p233
    %p235 = scmp.ne.s32.totalorder %s226, %s227
    %p236 = scmp.eq.s32.totalorder %s27, 0
    %p237 = por %p235, %p236
    %p238 = scmp.ne.s32.totalorder %s226, %s227
    %p239 = scmp.eq.s32.totalorder %s28, 1
    %p240 = por %p238, %p239
    %p242 = scmp.ne.s32.totalorder %s227, %s241
    %p243 = scmp.eq.s32.totalorder %s28, 0
    %p244 = por %p242, %p243
    %s246 = sadd.s32 %s245, 1
    %p249 = scmp.eq.s32.totalorder %s22, 1
    %p250 = scmp.ne.s32.totalorder %s245, %s247
    %p251 = scmp.eq.s32.totalorder %s22, 0
    %p252 = por %p250, %p251
    %p253 = scmp.ne.s32.totalorder %s245, %s247
    %p254 = scmp.eq.s32.totalorder %s27, 1
    %p255 = por %p253, %p254
    %p256 = scmp.ne.s32.totalorder %s247, %s248
    %p257 = scmp.eq.s32.totalorder %s27, 0
    %p258 = por %p256, %p257
    %p259 = scmp.ne.s32.totalorder %s247, %s248
    %p260 = scmp.eq.s32.totalorder %s28, 1
    %p261 = por %p259, %p260
    %p263 = scmp.ne.s32.totalorder %s248, %s262
    %p264 = scmp.eq.s32.totalorder %s28, 0
    %p265 = por %p263, %p264
    %s267 = sadd.s32 %s266, 1
    %p270 = scmp.eq.s32.totalorder %s22, 1
    %p271 = scmp.ne.s32.totalorder %s266, %s268
    %p272 = scmp.eq.s32.totalorder %s22, 0
    %p273 = por %p271, %p272
    %p274 = scmp.ne.s32.totalorder %s266, %s268
    %p275 = scmp.eq.s32.totalorder %s27, 1
    %p276 = por %p274, %p275
    %p277 = scmp.ne.s32.totalorder %s268, %s269
    %p278 = scmp.eq.s32.totalorder %s27, 0
    %p279 = por %p277, %p278
    %p280 = scmp.ne.s32.totalorder %s268, %s269
    %p281 = scmp.eq.s32.totalorder %s28, 1
    %p282 = por %p280, %p281
    %p284 = scmp.ne.s32.totalorder %s269, %s283
    %p285 = scmp.eq.s32.totalorder %s28, 0
    %p286 = por %p284, %p285
    %s288 = sadd.s32 %s287, 1
    %p291 = scmp.eq.s32.totalorder %s22, 1
    %p292 = scmp.ne.s32.totalorder %s287, %s289
    %p293 = scmp.eq.s32.totalorder %s22, 0
    %p294 = por %p292, %p293
    %p295 = scmp.ne.s32.totalorder %s287, %s289
    %p296 = scmp.eq.s32.totalorder %s27, 1
    %p297 = por %p295, %p296
    %p298 = scmp.ne.s32.totalorder %s289, %s290
    %p299 = scmp.eq.s32.totalorder %s27, 0
    %p300 = por %p298, %p299
    %p301 = scmp.ne.s32.totalorder %s289, %s290
    %p302 = scmp.eq.s32.totalorder %s28, 1
    %p303 = por %p301, %p302
    %p305 = scmp.ne.s32.totalorder %s290, %s304
    %p306 = scmp.eq.s32.totalorder %s28, 0
    %p307 = por %p305, %p306
    %s309 = sadd.s32 %s308, 1
    %p312 = scmp.eq.s32.totalorder %s22, 1
    %p313 = scmp.ne.s32.totalorder %s308, %s310
    %p314 = scmp.eq.s32.totalorder %s22, 0
    %p315 = por %p313, %p314
    %p316 = scmp.ne.s32.totalorder %s308, %s310
    %p317 = scmp.eq.s32.totalorder %s27, 1
    %p318 = por %p316, %p317
    %p319 = scmp.ne.s32.totalorder %s310, %s311
    %p320 = scmp.eq.s32.totalorder %s27, 0
    %p321 = por %p319, %p320
    %p322 = scmp.ne.s32.totalorder %s310, %s311
    %p323 = scmp.eq.s32.totalorder %s28, 1
    %p324 = por %p322, %p323
    %p326 = scmp.ne.s32.totalorder %s311, %s325
    %p327 = scmp.eq.s32.totalorder %s28, 0
    %p328 = por %p326, %p327
    %s330 = sadd.s32 %s329, 1
    %p333 = scmp.eq.s32.totalorder %s22, 1
    %p334 = scmp.ne.s32.totalorder %s329, %s331
    %p335 = scmp.eq.s32.totalorder %s22, 0
    %p336 = por %p334, %p335
    %p337 = scmp.ne.s32.totalorder %s329, %s331
    %p338 = scmp.eq.s32.totalorder %s27, 1
    %p339 = por %p337, %p338
    %p340 = scmp.ne.s32.totalorder %s331, %s332
    %p341 = scmp.eq.s32.totalorder %s27, 0
    %p342 = por %p340, %p341
    %p343 = scmp.ne.s32.totalorder %s331, %s332
    %p344 = scmp.eq.s32.totalorder %s28, 1
    %p345 = por %p343, %p344
    %p347 = scmp.ne.s32.totalorder %s332, %s346
    %p348 = scmp.eq.s32.totalorder %s28, 0
    %p349 = por %p347, %p348
    %s350 = ssub.s32 %s22, %s29
    %p351 = scmp.eq.s32.totalorder %s350, 0
    %s353 = sadd.s32 %s352, 1
    %s354 = scalar_select %p351, %s352, %s353
    %p357 = pneg %p351
    %p358 = scmp.eq.s32.totalorder %s22, 1
    %p359 = por %p357, %p358
    %p360 = scmp.ne.s32.totalorder %s352, %s355
    %p361 = scmp.eq.s32.totalorder %s22, 0
    %p362 = por %p360, %p361
    %p363 = scmp.ne.s32.totalorder %s352, %s355
    %p364 = scmp.eq.s32.totalorder %s27, 1
    %p365 = por %p363, %p364
    %p366 = scmp.ne.s32.totalorder %s355, %s356
    %p367 = scmp.eq.s32.totalorder %s27, 0
    %p368 = por %p366, %p367
    %p369 = scmp.ne.s32.totalorder %s355, %s356
    %p370 = scmp.eq.s32.totalorder %s28, 1
    %p371 = por %p369, %p370
    %p373 = scmp.ne.s32.totalorder %s356, %s372
    %p374 = scmp.eq.s32.totalorder %s28, 0
    %p375 = por %p373, %p374
    %p376 = scmp.le.s32.totalorder 1, %s22
    %p377 = scmp.lt.s32.totalorder %s22, 3
    %p378 = pnand %p376, %p377
    %p379 = pneg %p378
    // Predicated region
    $region9: #{ffn_pallas.1} parent=5 // pred_check
      _
    $region10: #{ffn_pallas.1} parent=5 // pred_check_branch
      %381 = sbr.rel (%p378) target = $region12
    $region11: #{ffn_pallas.1} parent=5 // pred_region
      %s382 = ssub.s32 %s22, 1
      // Predicated region
      $region13: #{ffn_pallas.1} parent=11 // pred_check
        %p383 = pneg %p69
      $region14: #{ffn_pallas.1} parent=11 // pred_check_branch
        %385 = sbr.rel (%p383) target = $region16
      $region15: #{ffn_pallas.1} parent=11 // pred_region
        _
      $region16: #{ffn_pallas.1} parent=11 // pred_fallthru
        _
      // Predicated region
      $region17: #{ffn_pallas.1} parent=11 // pred_check
        %p386 = pneg %p90
      $region18: #{ffn_pallas.1} parent=11 // pred_check_branch
        %388 = sbr.rel (%p386) target = $region20
      $region19: #{ffn_pallas.1} parent=11 // pred_region
        _
      $region20: #{ffn_pallas.1} parent=11 // pred_fallthru
        _
      // Predicated region
      $region21: #{ffn_pallas.1} parent=11 // pred_check
        %p389 = pneg %p111
      $region22: #{ffn_pallas.1} parent=11 // pred_check_branch
        %391 = sbr.rel (%p389) target = $region24
      $region23: #{ffn_pallas.1} parent=11 // pred_region
        _
      $region24: #{ffn_pallas.1} parent=11 // pred_fallthru
        _
      // Predicated region
      $region25: #{ffn_pallas.1} parent=11 // pred_check
        %p392 = pneg %p132
      $region26: #{ffn_pallas.1} parent=11 // pred_check_branch
        %394 = sbr.rel (%p392) target = $region28
      $region27: #{ffn_pallas.1} parent=11 // pred_region
        _
      $region28: #{ffn_pallas.1} parent=11 // pred_fallthru
        _
      // Predicated region
      $region29: #{ffn_pallas.1} parent=11 // pred_check
        %p395 = pneg %p153
      $region30: #{ffn_pallas.1} parent=11 // pred_check_branch
        %397 = sbr.rel (%p395) target = $region32
      $region31: #{ffn_pallas.1} parent=11 // pred_region
        _
      $region32: #{ffn_pallas.1} parent=11 // pred_fallthru
        _
      // Predicated region
      $region33: #{ffn_pallas.1} parent=11 // pred_check
        %p398 = pneg %p174
      $region34: #{ffn_pallas.1} parent=11 // pred_check_branch
        %400 = sbr.rel (%p398) target = $region36
      $region35: #{ffn_pallas.1} parent=11 // pred_region
        _
      $region36: #{ffn_pallas.1} parent=11 // pred_fallthru
        _
      // Predicated region
      $region37: #{ffn_pallas.1} parent=11 // pred_check
        %p401 = pneg %p195
      $region38: #{ffn_pallas.1} parent=11 // pred_check_branch
        %403 = sbr.rel (%p401) target = $region40
      $region39: #{ffn_pallas.1} parent=11 // pred_region
        _
      $region40: #{ffn_pallas.1} parent=11 // pred_fallthru
        _
      // Predicated region
      $region41: #{ffn_pallas.1} parent=11 // pred_check
        %p404 = pneg %p216
      $region42: #{ffn_pallas.1} parent=11 // pred_check_branch
        %406 = sbr.rel (%p404) target = $region44
      $region43: #{ffn_pallas.1} parent=11 // pred_region
        _
      $region44: #{ffn_pallas.1} parent=11 // pred_fallthru
        _
      // Predicated region
      $region45: #{ffn_pallas.1} parent=11 // pred_check
        %p407 = pneg %p237
      $region46: #{ffn_pallas.1} parent=11 // pred_check_branch
        %409 = sbr.rel (%p407) target = $region48
      $region47: #{ffn_pallas.1} parent=11 // pred_region
        _
      $region48: #{ffn_pallas.1} parent=11 // pred_fallthru
        _
      // Predicated region
      $region49: #{ffn_pallas.1} parent=11 // pred_check
        %p410 = pneg %p258
      $region50: #{ffn_pallas.1} parent=11 // pred_check_branch
        %412 = sbr.rel (%p410) target = $region52
      $region51: #{ffn_pallas.1} parent=11 // pred_region
        _
      $region52: #{ffn_pallas.1} parent=11 // pred_fallthru
        _
      // Predicated region
      $region53: #{ffn_pallas.1} parent=11 // pred_check
        %p413 = pneg %p279
      $region54: #{ffn_pallas.1} parent=11 // pred_check_branch
        %415 = sbr.rel (%p413) target = $region56
      $region55: #{ffn_pallas.1} parent=11 // pred_region
        _
      $region56: #{ffn_pallas.1} parent=11 // pred_fallthru
        _
      // Predicated region
      $region57: #{ffn_pallas.1} parent=11 // pred_check
        %p416 = pneg %p300
      $region58: #{ffn_pallas.1} parent=11 // pred_check_branch
        %418 = sbr.rel (%p416) target = $region60
      $region59: #{ffn_pallas.1} parent=11 // pred_region
        _
      $region60: #{ffn_pallas.1} parent=11 // pred_fallthru
        _
      // Predicated region
      $region61: #{ffn_pallas.1} parent=11 // pred_check
        %p419 = pneg %p321
      $region62: #{ffn_pallas.1} parent=11 // pred_check_branch
        %421 = sbr.rel (%p419) target = $region64
      $region63: #{ffn_pallas.1} parent=11 // pred_region
        _
      $region64: #{ffn_pallas.1} parent=11 // pred_fallthru
        _
      // Predicated region
      $region65: #{ffn_pallas.1} parent=11 // pred_check
        %p422 = pneg %p342
      $region66: #{ffn_pallas.1} parent=11 // pred_check_branch
        %424 = sbr.rel (%p422) target = $region68
      $region67: #{ffn_pallas.1} parent=11 // pred_region
        _
      $region68: #{ffn_pallas.1} parent=11 // pred_fallthru
        _
    $region12: #{ffn_pallas.1} parent=5 // pred_fallthru
      _
    %p425 = scmp.lt.s32.totalorder %s22, 2
    // Predicated region
    $region69: #{ffn_pallas.1} parent=5 // pred_check
      %p426 = pneg %p425
    $region70: #{ffn_pallas.1} parent=5 // pred_check_branch
      %428 = sbr.rel (%p426) target = $region72
    $region71: #{ffn_pallas.1} parent=5 // pred_region
      // Predicated region
      $region73: #{ffn_pallas.1} parent=71 // pred_check
        %p429 = pneg %p42
      $region74: #{ffn_pallas.1} parent=71 // pred_check_branch
        %431 = sbr.rel (%p429) target = $region76
      $region75: #{ffn_pallas.1} parent=71 // pred_region
        %p432 = scmp.lt.s32.totalorder %s22, 1
        %s433 = scalar_select %p432, %s22, 1
        %s434 = smul.addr %s433, 128
        %s435 = smul.addr %s434, 8
        %s436 = scalar_lea.vmem %s0, %s435
      $region76: #{ffn_pallas.1} parent=71 // pred_fallthru
        _
    $region72: #{ffn_pallas.1} parent=5 // pred_fallthru
      _
    %p437 = scmp.le.s32.totalorder 1, %s22
    %p438 = scmp.lt.s32.totalorder %s22, 3
    %p439 = pnand %p437, %p438
    %p440 = pneg %p439
    // Predicated region
    $region77: #{ffn_pallas.1} parent=5 // pred_check
      _
    $region78: #{ffn_pallas.1} parent=5 // pred_check_branch
      %442 = sbr.rel (%p439) target = $region80
    $region79: #{ffn_pallas.1} parent=5 // pred_region
      %s443 = ssub.s32 %s22, 1
      %p444 = scmp.lt.s32.totalorder %s27, 1
      %s445 = scalar_select %p444, %s27, 1
      %s446 = smul.addr %s445, 128
      %s447 = smul.addr %s446, 8
      %s448 = scalar_lea.vmem %s0, %s447
      %p449 = pneg %p48
      %p450 = pneg %p45
      %p451 = pneg %p69
      %p452 = pneg %p66
      %p453 = pneg %p90
      %p454 = pneg %p87
      %p455 = pneg %p111
      %p456 = pneg %p108
      %p457 = pneg %p132
      %p458 = pneg %p129
      %p459 = pneg %p153
      %p460 = pneg %p150
      %p461 = pneg %p174
      %p462 = pneg %p171
      %p463 = pneg %p195
      %p464 = pneg %p192
      %p465 = pneg %p216
      %p466 = pneg %p213
      %p467 = pneg %p237
      %p468 = pneg %p234
      %p469 = pneg %p258
      %p470 = pneg %p255
      %p471 = pneg %p279
      %p472 = pneg %p276
      %p473 = pneg %p300
      %p474 = pneg %p297
      %p475 = pneg %p321
      %p476 = pneg %p318
      %p477 = pneg %p342
      %p478 = pneg %p339
      %p479 = pneg %p368
      %p480 = pneg %p365
      %p481 = scmp.lt.s32.totalorder %s27, 1
      %s482 = scalar_select %p481, %s27, 1
      %s483 = smul.addr %s482, 128
      %s484 = smul.addr %s483, 8
      %s485 = scalar_lea.vmem %s15, %s484
      %p486 = scmp.lt.s32.totalorder %s27, 1
      %s487 = scalar_select %p486, %s27, 1
      %s488 = smul.addr %s487, 128
      %s489 = smul.addr %s488, 8
      %s490 = scalar_lea.vmem %s0, %s489
      %p491 = scmp.lt.s32.totalorder %s27, 1
      %s492 = scalar_select %p491, %s27, 1
      %s493 = smul.addr %s492, 128
      %s494 = smul.addr %s493, 8
      %s495 = scalar_lea.vmem %s15, %s494
      %v497 = vld [vmem:[%s1] sm:$0x1]
      %v498 = vld [vmem:[%s2] sm:$0x1]
      %499 = vst [vmem:[#allocation3] sm:$0x1] 0.0
      loop: start=0, step=1, limit=2
      $region81: #{ffn_pallas.1} parent=79 // loop_pre_header
        _
      $region82: #{ffn_pallas.1} parent=79 // loop_header
        %s501 = sphi 0, %s505
        %p502 = scmp.ge.s32.totalorder %s501, 2
      $region83: #{ffn_pallas.1} parent=79 // loop_header_branch
        %504 = sbr.rel (%p502) target = $region87
      $region84: #{ffn_pallas.1} parent=79 // loop_body
        %s506 = smul.u32 %s501, 512
        %s507 = sshra.s32 %s506, 7
        %s508 = sand.u32 %s506, 127
        %s509 = smul.addr %s507, 8
        %s510 = scalar_lea.vmem %s490, %s509
        %v511 = vld [vmem:[%s510] sm:$0xff]
        %v512 = vld [vmem:[%s510 + $0x8] sm:$0xff]
        %v513 = vld [vmem:[%s510 + $0x10] sm:$0xff]
        %v514 = vld [vmem:[%s510 + $0x18] sm:$0xff]
        %v515 = vld [vmem:[%s510 + $0x40] sm:$0xff]
        %v516 = vld [vmem:[%s510 + $0x48] sm:$0xff]
        %v517 = vld [vmem:[%s510 + $0x50] sm:$0xff]
        %v518 = vld [vmem:[%s510 + $0x58] sm:$0xff]
        %v519 = vld [vmem:[%s510 + $0x80] sm:$0xff]
        %v520 = vld [vmem:[%s510 + $0x88] sm:$0xff]
        %v521 = vld [vmem:[%s510 + $0x90] sm:$0xff]
        %v522 = vld [vmem:[%s510 + $0x98] sm:$0xff]
        %v523 = vld [vmem:[%s510 + $0xc0] sm:$0xff]
        %v524 = vld [vmem:[%s510 + $0xc8] sm:$0xff]
        %v525 = vld [vmem:[%s510 + $0xd0] sm:$0xff]
        %v526 = vld [vmem:[%s510 + $0xd8] sm:$0xff]
        %v527 = vld [vmem:[%s510 + $0x100] sm:$0xff]
        %v528 = vld [vmem:[%s510 + $0x108] sm:$0xff]
        %v529 = vld [vmem:[%s510 + $0x110] sm:$0xff]
        %v530 = vld [vmem:[%s510 + $0x118] sm:$0xff]
        %v531 = vld [vmem:[%s510 + $0x140] sm:$0xff]
        %v532 = vld [vmem:[%s510 + $0x148] sm:$0xff]
        %v533 = vld [vmem:[%s510 + $0x150] sm:$0xff]
        %v534 = vld [vmem:[%s510 + $0x158] sm:$0xff]
        %v535 = vld [vmem:[%s510 + $0x180] sm:$0xff]
        %v536 = vld [vmem:[%s510 + $0x188] sm:$0xff]
        %v537 = vld [vmem:[%s510 + $0x190] sm:$0xff]
        %v538 = vld [vmem:[%s510 + $0x198] sm:$0xff]
        %v539 = vld [vmem:[%s510 + $0x1c0] sm:$0xff]
        %v540 = vld [vmem:[%s510 + $0x1c8] sm:$0xff]
        %v541 = vld [vmem:[%s510 + $0x1d0] sm:$0xff]
        %v542 = vld [vmem:[%s510 + $0x1d8] sm:$0xff]
        %v543 = vld [vmem:[%s510 + $0x200] sm:$0xff]
        %v544 = vld [vmem:[%s510 + $0x208] sm:$0xff]
        %v545 = vld [vmem:[%s510 + $0x210] sm:$0xff]
        %v546 = vld [vmem:[%s510 + $0x218] sm:$0xff]
        %v547 = vld [vmem:[%s510 + $0x240] sm:$0xff]
        %v548 = vld [vmem:[%s510 + $0x248] sm:$0xff]
        %v549 = vld [vmem:[%s510 + $0x250] sm:$0xff]
        %v550 = vld [vmem:[%s510 + $0x258] sm:$0xff]
        %v551 = vld [vmem:[%s510 + $0x280] sm:$0xff]
        %v552 = vld [vmem:[%s510 + $0x288] sm:$0xff]
        %v553 = vld [vmem:[%s510 + $0x290] sm:$0xff]
        %v554 = vld [vmem:[%s510 + $0x298] sm:$0xff]
        %v555 = vld [vmem:[%s510 + $0x2c0] sm:$0xff]
        %v556 = vld [vmem:[%s510 + $0x2c8] sm:$0xff]
        %v557 = vld [vmem:[%s510 + $0x2d0] sm:$0xff]
        %v558 = vld [vmem:[%s510 + $0x2d8] sm:$0xff]
        %v559 = vld [vmem:[%s510 + $0x300] sm:$0xff]
        %v560 = vld [vmem:[%s510 + $0x308] sm:$0xff]
        %v561 = vld [vmem:[%s510 + $0x310] sm:$0xff]
        %v562 = vld [vmem:[%s510 + $0x318] sm:$0xff]
        %v563 = vld [vmem:[%s510 + $0x340] sm:$0xff]
        %v564 = vld [vmem:[%s510 + $0x348] sm:$0xff]
        %v565 = vld [vmem:[%s510 + $0x350] sm:$0xff]
        %v566 = vld [vmem:[%s510 + $0x358] sm:$0xff]
        %v567 = vld [vmem:[%s510 + $0x380] sm:$0xff]
        %v568 = vld [vmem:[%s510 + $0x388] sm:$0xff]
        %v569 = vld [vmem:[%s510 + $0x390] sm:$0xff]
        %v570 = vld [vmem:[%s510 + $0x398] sm:$0xff]
        %v571 = vld [vmem:[%s510 + $0x3c0] sm:$0xff]
        %v572 = vld [vmem:[%s510 + $0x3c8] sm:$0xff]
        %v573 = vld [vmem:[%s510 + $0x3d0] sm:$0xff]
        %v574 = vld [vmem:[%s510 + $0x3d8] sm:$0xff]
        %575 = vxpose.xlu0.b32.start [1/16] %v511, 128
        %576 = vxpose.xlu0.b32.cont [2/16] %v515, 128
        %577 = vxpose.xlu0.b32.cont [3/16] %v519, 128
        %578 = vxpose.xlu0.b32.cont [4/16] %v523, 128
        %579 = vxpose.xlu0.b32.cont [5/16] %v527, 128
        %580 = vxpose.xlu0.b32.cont [6/16] %v531, 128
        %581 = vxpose.xlu0.b32.cont [7/16] %v535, 128
        %582 = vxpose.xlu0.b32.cont [8/16] %v539, 128
        %583 = vxpose.xlu0.b32.cont [9/16] %v543, 128
        %584 = vxpose.xlu0.b32.cont [10/16] %v547, 128
        %585 = vxpose.xlu0.b32.cont [11/16] %v551, 128
        %586 = vxpose.xlu0.b32.cont [12/16] %v555, 128
        %587 = vxpose.xlu0.b32.cont [13/16] %v559, 128
        %588 = vxpose.xlu0.b32.cont [14/16] %v563, 128
        %589 = vxpose.xlu0.b32.cont [15/16] %v567, 128
        %590 = vxpose.xlu0.b32.end [16/16] %v571, 128
        %v591 = vpop.trf.xlu0
        %v592 = vpop.trf.xlu0
        %v593 = vpop.trf.xlu0
        %v594 = vpop.trf.xlu0
        %v595 = vpop.trf.xlu0
        %v596 = vpop.trf.xlu0
        %v597 = vpop.trf.xlu0
        %v598 = vpop.trf.xlu0
        %v599 = vpop.trf.xlu0
        %v600 = vpop.trf.xlu0
        %v601 = vpop.trf.xlu0
        %v602 = vpop.trf.xlu0
        %v603 = vpop.trf.xlu0
        %v604 = vpop.trf.xlu0
        %v605 = vpop.trf.xlu0
        %v606 = vpop.trf.xlu0
        %607 = vxpose.xlu0.b32.start [1/16] %v512, 128
        %608 = vxpose.xlu0.b32.cont [2/16] %v516, 128
        %609 = vxpose.xlu0.b32.cont [3/16] %v520, 128
        %610 = vxpose.xlu0.b32.cont [4/16] %v524, 128
        %611 = vxpose.xlu0.b32.cont [5/16] %v528, 128
        %612 = vxpose.xlu0.b32.cont [6/16] %v532, 128
        %613 = vxpose.xlu0.b32.cont [7/16] %v536, 128
        %614 = vxpose.xlu0.b32.cont [8/16] %v540, 128
        %615 = vxpose.xlu0.b32.cont [9/16] %v544, 128
        %616 = vxpose.xlu0.b32.cont [10/16] %v548, 128
        %617 = vxpose.xlu0.b32.cont [11/16] %v552, 128
        %618 = vxpose.xlu0.b32.cont [12/16] %v556, 128
        %619 = vxpose.xlu0.b32.cont [13/16] %v560, 128
        %620 = vxpose.xlu0.b32.cont [14/16] %v564, 128
        %621 = vxpose.xlu0.b32.cont [15/16] %v568, 128
        %622 = vxpose.xlu0.b32.end [16/16] %v572, 128
        %v623 = vpop.trf.xlu0
        %v624 = vpop.trf.xlu0
        %v625 = vpop.trf.xlu0
        %v626 = vpop.trf.xlu0
        %v627 = vpop.trf.xlu0
        %v628 = vpop.trf.xlu0
        %v629 = vpop.trf.xlu0
        %v630 = vpop.trf.xlu0
        %v631 = vpop.trf.xlu0
        %v632 = vpop.trf.xlu0
        %v633 = vpop.trf.xlu0
        %v634 = vpop.trf.xlu0
        %v635 = vpop.trf.xlu0
        %v636 = vpop.trf.xlu0
        %v637 = vpop.trf.xlu0
        %v638 = vpop.trf.xlu0
        %639 = vxpose.xlu0.b32.start [1/16] %v513, 128
        %640 = vxpose.xlu0.b32.cont [2/16] %v517, 128
        %641 = vxpose.xlu0.b32.cont [3/16] %v521, 128
        %642 = vxpose.xlu0.b32.cont [4/16] %v525, 128
        %643 = vxpose.xlu0.b32.cont [5/16] %v529, 128
        %644 = vxpose.xlu0.b32.cont [6/16] %v533, 128
        %645 = vxpose.xlu0.b32.cont [7/16] %v537, 128
        %646 = vxpose.xlu0.b32.cont [8/16] %v541, 128
        %647 = vxpose.xlu0.b32.cont [9/16] %v545, 128
        %648 = vxpose.xlu0.b32.cont [10/16] %v549, 128
        %649 = vxpose.xlu0.b32.cont [11/16] %v553, 128
        %650 = vxpose.xlu0.b32.cont [12/16] %v557, 128
        %651 = vxpose.xlu0.b32.cont [13/16] %v561, 128
        %652 = vxpose.xlu0.b32.cont [14/16] %v565, 128
        %653 = vxpose.xlu0.b32.cont [15/16] %v569, 128
        %654 = vxpose.xlu0.b32.end [16/16] %v573, 128
        %v655 = vpop.trf.xlu0
        %v656 = vpop.trf.xlu0
        %v657 = vpop.trf.xlu0
        %v658 = vpop.trf.xlu0
        %v659 = vpop.trf.xlu0
        %v660 = vpop.trf.xlu0
        %v661 = vpop.trf.xlu0
        %v662 = vpop.trf.xlu0
        %v663 = vpop.trf.xlu0
        %v664 = vpop.trf.xlu0
        %v665 = vpop.trf.xlu0
        %v666 = vpop.trf.xlu0
        %v667 = vpop.trf.xlu0
        %v668 = vpop.trf.xlu0
        %v669 = vpop.trf.xlu0
        %v670 = vpop.trf.xlu0
        %671 = vxpose.xlu0.b32.start [1/16] %v514, 128
        %672 = vxpose.xlu0.b32.cont [2/16] %v518, 128
        %673 = vxpose.xlu0.b32.cont [3/16] %v522, 128
        %674 = vxpose.xlu0.b32.cont [4/16] %v526, 128
        %675 = vxpose.xlu0.b32.cont [5/16] %v530, 128
        %676 = vxpose.xlu0.b32.cont [6/16] %v534, 128
        %677 = vxpose.xlu0.b32.cont [7/16] %v538, 128
        %678 = vxpose.xlu0.b32.cont [8/16] %v542, 128
        %679 = vxpose.xlu0.b32.cont [9/16] %v546, 128
        %680 = vxpose.xlu0.b32.cont [10/16] %v550, 128
        %681 = vxpose.xlu0.b32.cont [11/16] %v554, 128
        %682 = vxpose.xlu0.b32.cont [12/16] %v558, 128
        %683 = vxpose.xlu0.b32.cont [13/16] %v562, 128
        %684 = vxpose.xlu0.b32.cont [14/16] %v566, 128
        %685 = vxpose.xlu0.b32.cont [15/16] %v570, 128
        %686 = vxpose.xlu0.b32.end [16/16] %v574, 128
        %v687 = vpop.trf.xlu0
        %v688 = vpop.trf.xlu0
        %v689 = vpop.trf.xlu0
        %v690 = vpop.trf.xlu0
        %v691 = vpop.trf.xlu0
        %v692 = vpop.trf.xlu0
        %v693 = vpop.trf.xlu0
        %v694 = vpop.trf.xlu0
        %v695 = vpop.trf.xlu0
        %v696 = vpop.trf.xlu0
        %v697 = vpop.trf.xlu0
        %v698 = vpop.trf.xlu0
        %v699 = vpop.trf.xlu0
        %v700 = vpop.trf.xlu0
        %v701 = vpop.trf.xlu0
        %v702 = vpop.trf.xlu0
        %703 = vadd.xlane.f32.xlu0 %v591
        %v704 = vpop.xlane.xlu0 %703
        %705 = vadd.xlane.f32.xlu0 %v592
        %v706 = vpop.xlane.xlu0 %705
        %707 = vadd.xlane.f32.xlu0 %v593
        %v708 = vpop.xlane.xlu0 %707
        %709 = vadd.xlane.f32.xlu0 %v594
        %v710 = vpop.xlane.xlu0 %709
        %711 = vadd.xlane.f32.xlu0 %v595
        %v712 = vpop.xlane.xlu0 %711
        %713 = vadd.xlane.f32.xlu0 %v596
        %v714 = vpop.xlane.xlu0 %713
        %715 = vadd.xlane.f32.xlu0 %v597
        %v716 = vpop.xlane.xlu0 %715
        %717 = vadd.xlane.f32.xlu0 %v598
        %v718 = vpop.xlane.xlu0 %717
        %719 = vadd.xlane.f32.xlu0 %v599
        %v720 = vpop.xlane.xlu0 %719
        %721 = vadd.xlane.f32.xlu0 %v600
        %v722 = vpop.xlane.xlu0 %721
        %723 = vadd.xlane.f32.xlu0 %v601
        %v724 = vpop.xlane.xlu0 %723
        %725 = vadd.xlane.f32.xlu0 %v602
        %v726 = vpop.xlane.xlu0 %725
        %727 = vadd.xlane.f32.xlu0 %v603
        %v728 = vpop.xlane.xlu0 %727
        %729 = vadd.xlane.f32.xlu0 %v604
        %v730 = vpop.xlane.xlu0 %729
        %731 = vadd.xlane.f32.xlu0 %v605
        %v732 = vpop.xlane.xlu0 %731
        %733 = vadd.xlane.f32.xlu0 %v606
        %v734 = vpop.xlane.xlu0 %733
        %735 = vadd.xlane.f32.xlu0 %v623
        %v736 = vpop.xlane.xlu0 %735
        %737 = vadd.xlane.f32.xlu0 %v624
        %v738 = vpop.xlane.xlu0 %737
        %739 = vadd.xlane.f32.xlu0 %v625
        %v740 = vpop.xlane.xlu0 %739
        %741 = vadd.xlane.f32.xlu0 %v626
        %v742 = vpop.xlane.xlu0 %741
        %743 = vadd.xlane.f32.xlu0 %v627
        %v744 = vpop.xlane.xlu0 %743
        %745 = vadd.xlane.f32.xlu0 %v628
        %v746 = vpop.xlane.xlu0 %745
        %747 = vadd.xlane.f32.xlu0 %v629
        %v748 = vpop.xlane.xlu0 %747
        %749 = vadd.xlane.f32.xlu0 %v630
        %v750 = vpop.xlane.xlu0 %749
        %751 = vadd.xlane.f32.xlu0 %v631
        %v752 = vpop.xlane.xlu0 %751
        %753 = vadd.xlane.f32.xlu0 %v632
        %v754 = vpop.xlane.xlu0 %753
        %755 = vadd.xlane.f32.xlu0 %v633
        %v756 = vpop.xlane.xlu0 %755
        %757 = vadd.xlane.f32.xlu0 %v634
        %v758 = vpop.xlane.xlu0 %757
        %759 = vadd.xlane.f32.xlu0 %v635
        %v760 = vpop.xlane.xlu0 %759
        %761 = vadd.xlane.f32.xlu0 %v636
        %v762 = vpop.xlane.xlu0 %761
        %763 = vadd.xlane.f32.xlu0 %v637
        %v764 = vpop.xlane.xlu0 %763
        %765 = vadd.xlane.f32.xlu0 %v638
        %v766 = vpop.xlane.xlu0 %765
        %767 = vadd.xlane.f32.xlu0 %v655
        %v768 = vpop.xlane.xlu0 %767
        %769 = vadd.xlane.f32.xlu0 %v656
        %v770 = vpop.xlane.xlu0 %769
        %771 = vadd.xlane.f32.xlu0 %v657
        %v772 = vpop.xlane.xlu0 %771
        %773 = vadd.xlane.f32.xlu0 %v658
        %v774 = vpop.xlane.xlu0 %773
        %775 = vadd.xlane.f32.xlu0 %v659
        %v776 = vpop.xlane.xlu0 %775
        %777 = vadd.xlane.f32.xlu0 %v660
        %v778 = vpop.xlane.xlu0 %777
        %779 = vadd.xlane.f32.xlu0 %v661
        %v780 = vpop.xlane.xlu0 %779
        %781 = vadd.xlane.f32.xlu0 %v662
        %v782 = vpop.xlane.xlu0 %781
        %783 = vadd.xlane.f32.xlu0 %v663
        %v784 = vpop.xlane.xlu0 %783
        %785 = vadd.xlane.f32.xlu0 %v664
        %v786 = vpop.xlane.xlu0 %785
        %787 = vadd.xlane.f32.xlu0 %v665
        %v788 = vpop.xlane.xlu0 %787
        %789 = vadd.xlane.f32.xlu0 %v666
        %v790 = vpop.xlane.xlu0 %789
        %791 = vadd.xlane.f32.xlu0 %v667
        %v792 = vpop.xlane.xlu0 %791
        %793 = vadd.xlane.f32.xlu0 %v668
        %v794 = vpop.xlane.xlu0 %793
        %795 = vadd.xlane.f32.xlu0 %v669
        %v796 = vpop.xlane.xlu0 %795
        %797 = vadd.xlane.f32.xlu0 %v670
        %v798 = vpop.xlane.xlu0 %797
        %799 = vadd.xlane.f32.xlu0 %v687
        %v800 = vpop.xlane.xlu0 %799
        %801 = vadd.xlane.f32.xlu0 %v688
        %v802 = vpop.xlane.xlu0 %801
        %803 = vadd.xlane.f32.xlu0 %v689
        %v804 = vpop.xlane.xlu0 %803
        %805 = vadd.xlane.f32.xlu0 %v690
        %v806 = vpop.xlane.xlu0 %805
        %807 = vadd.xlane.f32.xlu0 %v691
        %v808 = vpop.xlane.xlu0 %807
        %809 = vadd.xlane.f32.xlu0 %v692
        %v810 = vpop.xlane.xlu0 %809
        %811 = vadd.xlane.f32.xlu0 %v693
        %v812 = vpop.xlane.xlu0 %811
        %813 = vadd.xlane.f32.xlu0 %v694
        %v814 = vpop.xlane.xlu0 %813
        %815 = vadd.xlane.f32.xlu0 %v695
        %v816 = vpop.xlane.xlu0 %815
        %817 = vadd.xlane.f32.xlu0 %v696
        %v818 = vpop.xlane.xlu0 %817
        %819 = vadd.xlane.f32.xlu0 %v697
        %v820 = vpop.xlane.xlu0 %819
        %821 = vadd.xlane.f32.xlu0 %v698
        %v822 = vpop.xlane.xlu0 %821
        %823 = vadd.xlane.f32.xlu0 %v699
        %v824 = vpop.xlane.xlu0 %823
        %825 = vadd.xlane.f32.xlu0 %v700
        %v826 = vpop.xlane.xlu0 %825
        %827 = vadd.xlane.f32.xlu0 %v701
        %v828 = vpop.xlane.xlu0 %827
        %829 = vadd.xlane.f32.xlu0 %v702
        %v830 = vpop.xlane.xlu0 %829
        %v831 = vrcp.pop 128.0
        %v832 = vmul.f32 %v704, %v831
        %v833 = vmul.f32 %v706, %v831
        %v834 = vmul.f32 %v708, %v831
        %v835 = vmul.f32 %v710, %v831
        %v836 = vmul.f32 %v712, %v831
        %v837 = vmul.f32 %v714, %v831
        %v838 = vmul.f32 %v716, %v831
        %v839 = vmul.f32 %v718, %v831
        %v840 = vmul.f32 %v720, %v831
        %v841 = vmul.f32 %v722, %v831
        %v842 = vmul.f32 %v724, %v831
        %v843 = vmul.f32 %v726, %v831
        %v844 = vmul.f32 %v728, %v831
        %v845 = vmul.f32 %v730, %v831
        %v846 = vmul.f32 %v732, %v831
        %v847 = vmul.f32 %v734, %v831
        %v848 = vmul.f32 %v736, %v831
        %v849 = vmul.f32 %v738, %v831
        %v850 = vmul.f32 %v740, %v831
        %v851 = vmul.f32 %v742, %v831
        %v852 = vmul.f32 %v744, %v831
        %v853 = vmul.f32 %v746, %v831
        %v854 = vmul.f32 %v748, %v831
        %v855 = vmul.f32 %v750, %v831
        %v856 = vmul.f32 %v752, %v831
        %v857 = vmul.f32 %v754, %v831
        %v858 = vmul.f32 %v756, %v831
        %v859 = vmul.f32 %v758, %v831
        %v860 = vmul.f32 %v760, %v831
        %v861 = vmul.f32 %v762, %v831
        %v862 = vmul.f32 %v764, %v831
        %v863 = vmul.f32 %v766, %v831
        %v864 = vmul.f32 %v768, %v831
        %v865 = vmul.f32 %v770, %v831
        %v866 = vmul.f32 %v772, %v831
        %v867 = vmul.f32 %v774, %v831
        %v868 = vmul.f32 %v776, %v831
        %v869 = vmul.f32 %v778, %v831
        %v870 = vmul.f32 %v780, %v831
        %v871 = vmul.f32 %v782, %v831
        %v872 = vmul.f32 %v784, %v831
        %v873 = vmul.f32 %v786, %v831
        %v874 = vmul.f32 %v788, %v831
        %v875 = vmul.f32 %v790, %v831
        %v876 = vmul.f32 %v792, %v831
        %v877 = vmul.f32 %v794, %v831
        %v878 = vmul.f32 %v796, %v831
        %v879 = vmul.f32 %v798, %v831
        %v880 = vmul.f32 %v800, %v831
        %v881 = vmul.f32 %v802, %v831
        %v882 = vmul.f32 %v804, %v831
        %v883 = vmul.f32 %v806, %v831
        %v884 = vmul.f32 %v808, %v831
        %v885 = vmul.f32 %v810, %v831
        %v886 = vmul.f32 %v812, %v831
        %v887 = vmul.f32 %v814, %v831
        %v888 = vmul.f32 %v816, %v831
        %v889 = vmul.f32 %v818, %v831
        %v890 = vmul.f32 %v820, %v831
        %v891 = vmul.f32 %v822, %v831
        %v892 = vmul.f32 %v824, %v831
        %v893 = vmul.f32 %v826, %v831
        %v894 = vmul.f32 %v828, %v831
        %v895 = vmul.f32 %v830, %v831
        %v896 = vsub.f32 %v591, %v832
        %v897 = vsub.f32 %v592, %v833
        %v898 = vsub.f32 %v593, %v834
        %v899 = vsub.f32 %v594, %v835
        %v900 = vsub.f32 %v595, %v836
        %v901 = vsub.f32 %v596, %v837
        %v902 = vsub.f32 %v597, %v838
        %v903 = vsub.f32 %v598, %v839
        %v904 = vsub.f32 %v599, %v840
        %v905 = vsub.f32 %v600, %v841
        %v906 = vsub.f32 %v601, %v842
        %v907 = vsub.f32 %v602, %v843
        %v908 = vsub.f32 %v603, %v844
        %v909 = vsub.f32 %v604, %v845
        %v910 = vsub.f32 %v605, %v846
        %v911 = vsub.f32 %v606, %v847
        %v912 = vsub.f32 %v623, %v848
        %v913 = vsub.f32 %v624, %v849
        %v914 = vsub.f32 %v625, %v850
        %v915 = vsub.f32 %v626, %v851
        %v916 = vsub.f32 %v627, %v852
        %v917 = vsub.f32 %v628, %v853
        %v918 = vsub.f32 %v629, %v854
        %v919 = vsub.f32 %v630, %v855
        %v920 = vsub.f32 %v631, %v856
        %v921 = vsub.f32 %v632, %v857
        %v922 = vsub.f32 %v633, %v858
        %v923 = vsub.f32 %v634, %v859
        %v924 = vsub.f32 %v635, %v860
        %v925 = vsub.f32 %v636, %v861
        %v926 = vsub.f32 %v637, %v862
        %v927 = vsub.f32 %v638, %v863
        %v928 = vsub.f32 %v655, %v864
        %v929 = vsub.f32 %v656, %v865
        %v930 = vsub.f32 %v657, %v866
        %v931 = vsub.f32 %v658, %v867
        %v932 = vsub.f32 %v659, %v868
        %v933 = vsub.f32 %v660, %v869
        %v934 = vsub.f32 %v661, %v870
        %v935 = vsub.f32 %v662, %v871
        %v936 = vsub.f32 %v663, %v872
        %v937 = vsub.f32 %v664, %v873
        %v938 = vsub.f32 %v665, %v874
        %v939 = vsub.f32 %v666, %v875
        %v940 = vsub.f32 %v667, %v876
        %v941 = vsub.f32 %v668, %v877
        %v942 = vsub.f32 %v669, %v878
        %v943 = vsub.f32 %v670, %v879
        %v944 = vsub.f32 %v687, %v880
        %v945 = vsub.f32 %v688, %v881
        %v946 = vsub.f32 %v689, %v882
        %v947 = vsub.f32 %v690, %v883
        %v948 = vsub.f32 %v691, %v884
        %v949 = vsub.f32 %v692, %v885
        %v950 = vsub.f32 %v693, %v886
        %v951 = vsub.f32 %v694, %v887
        %v952 = vsub.f32 %v695, %v888
        %v953 = vsub.f32 %v696, %v889
        %v954 = vsub.f32 %v697, %v890
        %v955 = vsub.f32 %v698, %v891
        %v956 = vsub.f32 %v699, %v892
        %v957 = vsub.f32 %v700, %v893
        %v958 = vsub.f32 %v701, %v894
        %v959 = vsub.f32 %v702, %v895
        %v960 = vmul.f32 %v896, %v896
        %v961 = vmul.f32 %v897, %v897
        %v962 = vmul.f32 %v898, %v898
        %v963 = vmul.f32 %v899, %v899
        %v964 = vmul.f32 %v900, %v900
        %v965 = vmul.f32 %v901, %v901
        %v966 = vmul.f32 %v902, %v902
        %v967 = vmul.f32 %v903, %v903
        %v968 = vmul.f32 %v904, %v904
        %v969 = vmul.f32 %v905, %v905
        %v970 = vmul.f32 %v906, %v906
        %v971 = vmul.f32 %v907, %v907
        %v972 = vmul.f32 %v908, %v908
        %v973 = vmul.f32 %v909, %v909
        %v974 = vmul.f32 %v910, %v910
        %v975 = vmul.f32 %v911, %v911
        %v976 = vmul.f32 %v912, %v912
        %v977 = vmul.f32 %v913, %v913
        %v978 = vmul.f32 %v914, %v914
        %v979 = vmul.f32 %v915, %v915
        %v980 = vmul.f32 %v916, %v916
        %v981 = vmul.f32 %v917, %v917
        %v982 = vmul.f32 %v918, %v918
        %v983 = vmul.f32 %v919, %v919
        %v984 = vmul.f32 %v920, %v920
        %v985 = vmul.f32 %v921, %v921
        %v986 = vmul.f32 %v922, %v922
        %v987 = vmul.f32 %v923, %v923
        %v988 = vmul.f32 %v924, %v924
        %v989 = vmul.f32 %v925, %v925
        %v990 = vmul.f32 %v926, %v926
        %v991 = vmul.f32 %v927, %v927
        %v992 = vmul.f32 %v928, %v928
        %v993 = vmul.f32 %v929, %v929
        %v994 = vmul.f32 %v930, %v930
        %v995 = vmul.f32 %v931, %v931
        %v996 = vmul.f32 %v932, %v932
        %v997 = vmul.f32 %v933, %v933
        %v998 = vmul.f32 %v934, %v934
        %v999 = vmul.f32 %v935, %v935
        %v1000 = vmul.f32 %v936, %v936
        %v1001 = vmul.f32 %v937, %v937
        %v1002 = vmul.f32 %v938, %v938
        %v1003 = vmul.f32 %v939, %v939
        %v1004 = vmul.f32 %v940, %v940
        %v1005 = vmul.f32 %v941, %v941
        %v1006 = vmul.f32 %v942, %v942
        %v1007 = vmul.f32 %v943, %v943
        %v1008 = vmul.f32 %v944, %v944
        %v1009 = vmul.f32 %v945, %v945
        %v1010 = vmul.f32 %v946, %v946
        %v1011 = vmul.f32 %v947, %v947
        %v1012 = vmul.f32 %v948, %v948
        %v1013 = vmul.f32 %v949, %v949
        %v1014 = vmul.f32 %v950, %v950
        %v1015 = vmul.f32 %v951, %v951
        %v1016 = vmul.f32 %v952, %v952
        %v1017 = vmul.f32 %v953, %v953
        %v1018 = vmul.f32 %v954, %v954
        %v1019 = vmul.f32 %v955, %v955
        %v1020 = vmul.f32 %v956, %v956
        %v1021 = vmul.f32 %v957, %v957
        %v1022 = vmul.f32 %v958, %v958
        %v1023 = vmul.f32 %v959, %v959
        %1024 = vadd.xlane.f32.xlu0 %v960
        %v1025 = vpop.xlane.xlu0 %1024
        %1026 = vadd.xlane.f32.xlu0 %v961
        %v1027 = vpop.xlane.xlu0 %1026
        %1028 = vadd.xlane.f32.xlu0 %v962
        %v1029 = vpop.xlane.xlu0 %1028
        %1030 = vadd.xlane.f32.xlu0 %v963
        %v1031 = vpop.xlane.xlu0 %1030
        %1032 = vadd.xlane.f32.xlu0 %v964
        %v1033 = vpop.xlane.xlu0 %1032
        %1034 = vadd.xlane.f32.xlu0 %v965
        %v1035 = vpop.xlane.xlu0 %1034
        %1036 = vadd.xlane.f32.xlu0 %v966
        %v1037 = vpop.xlane.xlu0 %1036
        %1038 = vadd.xlane.f32.xlu0 %v967
        %v1039 = vpop.xlane.xlu0 %1038
        %1040 = vadd.xlane.f32.xlu0 %v968
        %v1041 = vpop.xlane.xlu0 %1040
        %1042 = vadd.xlane.f32.xlu0 %v969
        %v1043 = vpop.xlane.xlu0 %1042
        %1044 = vadd.xlane.f32.xlu0 %v970
        %v1045 = vpop.xlane.xlu0 %1044
        %1046 = vadd.xlane.f32.xlu0 %v971
        %v1047 = vpop.xlane.xlu0 %1046
        %1048 = vadd.xlane.f32.xlu0 %v972
        %v1049 = vpop.xlane.xlu0 %1048
        %1050 = vadd.xlane.f32.xlu0 %v973
        %v1051 = vpop.xlane.xlu0 %1050
        %1052 = vadd.xlane.f32.xlu0 %v974
        %v1053 = vpop.xlane.xlu0 %1052
        %1054 = vadd.xlane.f32.xlu0 %v975
        %v1055 = vpop.xlane.xlu0 %1054
        %1056 = vadd.xlane.f32.xlu0 %v976
        %v1057 = vpop.xlane.xlu0 %1056
        %1058 = vadd.xlane.f32.xlu0 %v977
        %v1059 = vpop.xlane.xlu0 %1058
        %1060 = vadd.xlane.f32.xlu0 %v978
        %v1061 = vpop.xlane.xlu0 %1060
        %1062 = vadd.xlane.f32.xlu0 %v979
        %v1063 = vpop.xlane.xlu0 %1062
        %1064 = vadd.xlane.f32.xlu0 %v980
        %v1065 = vpop.xlane.xlu0 %1064
        %1066 = vadd.xlane.f32.xlu0 %v981
        %v1067 = vpop.xlane.xlu0 %1066
        %1068 = vadd.xlane.f32.xlu0 %v982
        %v1069 = vpop.xlane.xlu0 %1068
        %1070 = vadd.xlane.f32.xlu0 %v983
        %v1071 = vpop.xlane.xlu0 %1070
        %1072 = vadd.xlane.f32.xlu0 %v984
        %v1073 = vpop.xlane.xlu0 %1072
        %1074 = vadd.xlane.f32.xlu0 %v985
        %v1075 = vpop.xlane.xlu0 %1074
        %1076 = vadd.xlane.f32.xlu0 %v986
        %v1077 = vpop.xlane.xlu0 %1076
        %1078 = vadd.xlane.f32.xlu0 %v987
        %v1079 = vpop.xlane.xlu0 %1078
        %1080 = vadd.xlane.f32.xlu0 %v988
        %v1081 = vpop.xlane.xlu0 %1080
        %1082 = vadd.xlane.f32.xlu0 %v989
        %v1083 = vpop.xlane.xlu0 %1082
        %1084 = vadd.xlane.f32.xlu0 %v990
        %v1085 = vpop.xlane.xlu0 %1084
        %1086 = vadd.xlane.f32.xlu0 %v991
        %v1087 = vpop.xlane.xlu0 %1086
        %1088 = vadd.xlane.f32.xlu0 %v992
        %v1089 = vpop.xlane.xlu0 %1088
        %1090 = vadd.xlane.f32.xlu0 %v993
        %v1091 = vpop.xlane.xlu0 %1090
        %1092 = vadd.xlane.f32.xlu0 %v994
        %v1093 = vpop.xlane.xlu0 %1092
        %1094 = vadd.xlane.f32.xlu0 %v995
        %v1095 = vpop.xlane.xlu0 %1094
        %1096 = vadd.xlane.f32.xlu0 %v996
        %v1097 = vpop.xlane.xlu0 %1096
        %1098 = vadd.xlane.f32.xlu0 %v997
        %v1099 = vpop.xlane.xlu0 %1098
        %1100 = vadd.xlane.f32.xlu0 %v998
        %v1101 = vpop.xlane.xlu0 %1100
        %1102 = vadd.xlane.f32.xlu0 %v999
        %v1103 = vpop.xlane.xlu0 %1102
        %1104 = vadd.xlane.f32.xlu0 %v1000
        %v1105 = vpop.xlane.xlu0 %1104
        %1106 = vadd.xlane.f32.xlu0 %v1001
        %v1107 = vpop.xlane.xlu0 %1106
        %1108 = vadd.xlane.f32.xlu0 %v1002
        %v1109 = vpop.xlane.xlu0 %1108
        %1110 = vadd.xlane.f32.xlu0 %v1003
        %v1111 = vpop.xlane.xlu0 %1110
        %1112 = vadd.xlane.f32.xlu0 %v1004
        %v1113 = vpop.xlane.xlu0 %1112
        %1114 = vadd.xlane.f32.xlu0 %v1005
        %v1115 = vpop.xlane.xlu0 %1114
        %1116 = vadd.xlane.f32.xlu0 %v1006
        %v1117 = vpop.xlane.xlu0 %1116
        %1118 = vadd.xlane.f32.xlu0 %v1007
        %v1119 = vpop.xlane.xlu0 %1118
        %1120 = vadd.xlane.f32.xlu0 %v1008
        %v1121 = vpop.xlane.xlu0 %1120
        %1122 = vadd.xlane.f32.xlu0 %v1009
        %v1123 = vpop.xlane.xlu0 %1122
        %1124 = vadd.xlane.f32.xlu0 %v1010
        %v1125 = vpop.xlane.xlu0 %1124
        %1126 = vadd.xlane.f32.xlu0 %v1011
        %v1127 = vpop.xlane.xlu0 %1126
        %1128 = vadd.xlane.f32.xlu0 %v1012
        %v1129 = vpop.xlane.xlu0 %1128
        %1130 = vadd.xlane.f32.xlu0 %v1013
        %v1131 = vpop.xlane.xlu0 %1130
        %1132 = vadd.xlane.f32.xlu0 %v1014
        %v1133 = vpop.xlane.xlu0 %1132
        %1134 = vadd.xlane.f32.xlu0 %v1015
        %v1135 = vpop.xlane.xlu0 %1134
        %1136 = vadd.xlane.f32.xlu0 %v1016
        %v1137 = vpop.xlane.xlu0 %1136
        %1138 = vadd.xlane.f32.xlu0 %v1017
        %v1139 = vpop.xlane.xlu0 %1138
        %1140 = vadd.xlane.f32.xlu0 %v1018
        %v1141 = vpop.xlane.xlu0 %1140
        %1142 = vadd.xlane.f32.xlu0 %v1019
        %v1143 = vpop.xlane.xlu0 %1142
        %1144 = vadd.xlane.f32.xlu0 %v1020
        %v1145 = vpop.xlane.xlu0 %1144
        %1146 = vadd.xlane.f32.xlu0 %v1021
        %v1147 = vpop.xlane.xlu0 %1146
        %1148 = vadd.xlane.f32.xlu0 %v1022
        %v1149 = vpop.xlane.xlu0 %1148
        %1150 = vadd.xlane.f32.xlu0 %v1023
        %v1151 = vpop.xlane.xlu0 %1150
        %v1152 = vmul.f32 %v1025, %v831
        %v1153 = vmul.f32 %v1027, %v831
        %v1154 = vmul.f32 %v1029, %v831
        %v1155 = vmul.f32 %v1031, %v831
        %v1156 = vmul.f32 %v1033, %v831
        %v1157 = vmul.f32 %v1035, %v831
        %v1158 = vmul.f32 %v1037, %v831
        %v1159 = vmul.f32 %v1039, %v831
        %v1160 = vmul.f32 %v1041, %v831
        %v1161 = vmul.f32 %v1043, %v831
        %v1162 = vmul.f32 %v1045, %v831
        %v1163 = vmul.f32 %v1047, %v831
        %v1164 = vmul.f32 %v1049, %v831
        %v1165 = vmul.f32 %v1051, %v831
        %v1166 = vmul.f32 %v1053, %v831
        %v1167 = vmul.f32 %v1055, %v831
        %v1168 = vmul.f32 %v1057, %v831
        %v1169 = vmul.f32 %v1059, %v831
        %v1170 = vmul.f32 %v1061, %v831
        %v1171 = vmul.f32 %v1063, %v831
        %v1172 = vmul.f32 %v1065, %v831
        %v1173 = vmul.f32 %v1067, %v831
        %v1174 = vmul.f32 %v1069, %v831
        %v1175 = vmul.f32 %v1071, %v831
        %v1176 = vmul.f32 %v1073, %v831
        %v1177 = vmul.f32 %v1075, %v831
        %v1178 = vmul.f32 %v1077, %v831
        %v1179 = vmul.f32 %v1079, %v831
        %v1180 = vmul.f32 %v1081, %v831
        %v1181 = vmul.f32 %v1083, %v831
        %v1182 = vmul.f32 %v1085, %v831
        %v1183 = vmul.f32 %v1087, %v831
        %v1184 = vmul.f32 %v1089, %v831
        %v1185 = vmul.f32 %v1091, %v831
        %v1186 = vmul.f32 %v1093, %v831
        %v1187 = vmul.f32 %v1095, %v831
        %v1188 = vmul.f32 %v1097, %v831
        %v1189 = vmul.f32 %v1099, %v831
        %v1190 = vmul.f32 %v1101, %v831
        %v1191 = vmul.f32 %v1103, %v831
        %v1192 = vmul.f32 %v1105, %v831
        %v1193 = vmul.f32 %v1107, %v831
        %v1194 = vmul.f32 %v1109, %v831
        %v1195 = vmul.f32 %v1111, %v831
        %v1196 = vmul.f32 %v1113, %v831
        %v1197 = vmul.f32 %v1115, %v831
        %v1198 = vmul.f32 %v1117, %v831
        %v1199 = vmul.f32 %v1119, %v831
        %v1200 = vmul.f32 %v1121, %v831
        %v1201 = vmul.f32 %v1123, %v831
        %v1202 = vmul.f32 %v1125, %v831
        %v1203 = vmul.f32 %v1127, %v831
        %v1204 = vmul.f32 %v1129, %v831
        %v1205 = vmul.f32 %v1131, %v831
        %v1206 = vmul.f32 %v1133, %v831
        %v1207 = vmul.f32 %v1135, %v831
        %v1208 = vmul.f32 %v1137, %v831
        %v1209 = vmul.f32 %v1139, %v831
        %v1210 = vmul.f32 %v1141, %v831
        %v1211 = vmul.f32 %v1143, %v831
        %v1212 = vmul.f32 %v1145, %v831
        %v1213 = vmul.f32 %v1147, %v831
        %v1214 = vmul.f32 %v1149, %v831
        %v1215 = vmul.f32 %v1151, %v831
        %v1216 = vadd.f32 %v1152, 1e-06
        %v1217 = vadd.f32 %v1153, 1e-06
        %v1218 = vadd.f32 %v1154, 1e-06
        %v1219 = vadd.f32 %v1155, 1e-06
        %v1220 = vadd.f32 %v1156, 1e-06
        %v1221 = vadd.f32 %v1157, 1e-06
        %v1222 = vadd.f32 %v1158, 1e-06
        %v1223 = vadd.f32 %v1159, 1e-06
        %v1224 = vadd.f32 %v1160, 1e-06
        %v1225 = vadd.f32 %v1161, 1e-06
        %v1226 = vadd.f32 %v1162, 1e-06
        %v1227 = vadd.f32 %v1163, 1e-06
        %v1228 = vadd.f32 %v1164, 1e-06
        %v1229 = vadd.f32 %v1165, 1e-06
        %v1230 = vadd.f32 %v1166, 1e-06
        %v1231 = vadd.f32 %v1167, 1e-06
        %v1232 = vadd.f32 %v1168, 1e-06
        %v1233 = vadd.f32 %v1169, 1e-06
        %v1234 = vadd.f32 %v1170, 1e-06
        %v1235 = vadd.f32 %v1171, 1e-06
        %v1236 = vadd.f32 %v1172, 1e-06
        %v1237 = vadd.f32 %v1173, 1e-06
        %v1238 = vadd.f32 %v1174, 1e-06
        %v1239 = vadd.f32 %v1175, 1e-06
        %v1240 = vadd.f32 %v1176, 1e-06
        %v1241 = vadd.f32 %v1177, 1e-06
        %v1242 = vadd.f32 %v1178, 1e-06
        %v1243 = vadd.f32 %v1179, 1e-06
        %v1244 = vadd.f32 %v1180, 1e-06
        %v1245 = vadd.f32 %v1181, 1e-06
        %v1246 = vadd.f32 %v1182, 1e-06
        %v1247 = vadd.f32 %v1183, 1e-06
        %v1248 = vadd.f32 %v1184, 1e-06
        %v1249 = vadd.f32 %v1185, 1e-06
        %v1250 = vadd.f32 %v1186, 1e-06
        %v1251 = vadd.f32 %v1187, 1e-06
        %v1252 = vadd.f32 %v1188, 1e-06
        %v1253 = vadd.f32 %v1189, 1e-06
        %v1254 = vadd.f32 %v1190, 1e-06
        %v1255 = vadd.f32 %v1191, 1e-06
        %v1256 = vadd.f32 %v1192, 1e-06
        %v1257 = vadd.f32 %v1193, 1e-06
        %v1258 = vadd.f32 %v1194, 1e-06
        %v1259 = vadd.f32 %v1195, 1e-06
        %v1260 = vadd.f32 %v1196, 1e-06
        %v1261 = vadd.f32 %v1197, 1e-06
        %v1262 = vadd.f32 %v1198, 1e-06
        %v1263 = vadd.f32 %v1199, 1e-06
        %v1264 = vadd.f32 %v1200, 1e-06
        %v1265 = vadd.f32 %v1201, 1e-06
        %v1266 = vadd.f32 %v1202, 1e-06
        %v1267 = vadd.f32 %v1203, 1e-06
        %v1268 = vadd.f32 %v1204, 1e-06
        %v1269 = vadd.f32 %v1205, 1e-06
        %v1270 = vadd.f32 %v1206, 1e-06
        %v1271 = vadd.f32 %v1207, 1e-06
        %v1272 = vadd.f32 %v1208, 1e-06
        %v1273 = vadd.f32 %v1209, 1e-06
        %v1274 = vadd.f32 %v1210, 1e-06
        %v1275 = vadd.f32 %v1211, 1e-06
        %v1276 = vadd.f32 %v1212, 1e-06
        %v1277 = vadd.f32 %v1213, 1e-06
        %v1278 = vadd.f32 %v1214, 1e-06
        %v1279 = vadd.f32 %v1215, 1e-06
        %v1280 = vrsqrt.pop %v1216
        %v1281 = vrsqrt.pop %v1217
        %v1282 = vrsqrt.pop %v1218
        %v1283 = vrsqrt.pop %v1219
        %v1284 = vrsqrt.pop %v1220
        %v1285 = vrsqrt.pop %v1221
        %v1286 = vrsqrt.pop %v1222
        %v1287 = vrsqrt.pop %v1223
        %v1288 = vrsqrt.pop %v1224
        %v1289 = vrsqrt.pop %v1225
        %v1290 = vrsqrt.pop %v1226
        %v1291 = vrsqrt.pop %v1227
        %v1292 = vrsqrt.pop %v1228
        %v1293 = vrsqrt.pop %v1229
        %v1294 = vrsqrt.pop %v1230
        %v1295 = vrsqrt.pop %v1231
        %v1296 = vrsqrt.pop %v1232
        %v1297 = vrsqrt.pop %v1233
        %v1298 = vrsqrt.pop %v1234
        %v1299 = vrsqrt.pop %v1235
        %v1300 = vrsqrt.pop %v1236
        %v1301 = vrsqrt.pop %v1237
        %v1302 = vrsqrt.pop %v1238
        %v1303 = vrsqrt.pop %v1239
        %v1304 = vrsqrt.pop %v1240
        %v1305 = vrsqrt.pop %v1241
        %v1306 = vrsqrt.pop %v1242
        %v1307 = vrsqrt.pop %v1243
        %v1308 = vrsqrt.pop %v1244
        %v1309 = vrsqrt.pop %v1245
        %v1310 = vrsqrt.pop %v1246
        %v1311 = vrsqrt.pop %v1247
        %v1312 = vrsqrt.pop %v1248
        %v1313 = vrsqrt.pop %v1249
        %v1314 = vrsqrt.pop %v1250
        %v1315 = vrsqrt.pop %v1251
        %v1316 = vrsqrt.pop %v1252
        %v1317 = vrsqrt.pop %v1253
        %v1318 = vrsqrt.pop %v1254
        %v1319 = vrsqrt.pop %v1255
        %v1320 = vrsqrt.pop %v1256
        %v1321 = vrsqrt.pop %v1257
        %v1322 = vrsqrt.pop %v1258
        %v1323 = vrsqrt.pop %v1259
        %v1324 = vrsqrt.pop %v1260
        %v1325 = vrsqrt.pop %v1261
        %v1326 = vrsqrt.pop %v1262
        %v1327 = vrsqrt.pop %v1263
        %v1328 = vrsqrt.pop %v1264
        %v1329 = vrsqrt.pop %v1265
        %v1330 = vrsqrt.pop %v1266
        %v1331 = vrsqrt.pop %v1267
        %v1332 = vrsqrt.pop %v1268
        %v1333 = vrsqrt.pop %v1269
        %v1334 = vrsqrt.pop %v1270
        %v1335 = vrsqrt.pop %v1271
        %v1336 = vrsqrt.pop %v1272
        %v1337 = vrsqrt.pop %v1273
        %v1338 = vrsqrt.pop %v1274
        %v1339 = vrsqrt.pop %v1275
        %v1340 = vrsqrt.pop %v1276
        %v1341 = vrsqrt.pop %v1277
        %v1342 = vrsqrt.pop %v1278
        %v1343 = vrsqrt.pop %v1279
        %v1344 = vmul.f32 %v896, %v1280
        %v1345 = vmul.f32 %v897, %v1281
        %v1346 = vmul.f32 %v898, %v1282
        %v1347 = vmul.f32 %v899, %v1283
        %v1348 = vmul.f32 %v900, %v1284
        %v1349 = vmul.f32 %v901, %v1285
        %v1350 = vmul.f32 %v902, %v1286
        %v1351 = vmul.f32 %v903, %v1287
        %v1352 = vmul.f32 %v904, %v1288
        %v1353 = vmul.f32 %v905, %v1289
        %v1354 = vmul.f32 %v906, %v1290
        %v1355 = vmul.f32 %v907, %v1291
        %v1356 = vmul.f32 %v908, %v1292
        %v1357 = vmul.f32 %v909, %v1293
        %v1358 = vmul.f32 %v910, %v1294
        %v1359 = vmul.f32 %v911, %v1295
        %v1360 = vmul.f32 %v912, %v1296
        %v1361 = vmul.f32 %v913, %v1297
        %v1362 = vmul.f32 %v914, %v1298
        %v1363 = vmul.f32 %v915, %v1299
        %v1364 = vmul.f32 %v916, %v1300
        %v1365 = vmul.f32 %v917, %v1301
        %v1366 = vmul.f32 %v918, %v1302
        %v1367 = vmul.f32 %v919, %v1303
        %v1368 = vmul.f32 %v920, %v1304
        %v1369 = vmul.f32 %v921, %v1305
        %v1370 = vmul.f32 %v922, %v1306
        %v1371 = vmul.f32 %v923, %v1307
        %v1372 = vmul.f32 %v924, %v1308
        %v1373 = vmul.f32 %v925, %v1309
        %v1374 = vmul.f32 %v926, %v1310
        %v1375 = vmul.f32 %v927, %v1311
        %v1376 = vmul.f32 %v928, %v1312
        %v1377 = vmul.f32 %v929, %v1313
        %v1378 = vmul.f32 %v930, %v1314
        %v1379 = vmul.f32 %v931, %v1315
        %v1380 = vmul.f32 %v932, %v1316
        %v1381 = vmul.f32 %v933, %v1317
        %v1382 = vmul.f32 %v934, %v1318
        %v1383 = vmul.f32 %v935, %v1319
        %v1384 = vmul.f32 %v936, %v1320
        %v1385 = vmul.f32 %v937, %v1321
        %v1386 = vmul.f32 %v938, %v1322
        %v1387 = vmul.f32 %v939, %v1323
        %v1388 = vmul.f32 %v940, %v1324
        %v1389 = vmul.f32 %v941, %v1325
        %v1390 = vmul.f32 %v942, %v1326
        %v1391 = vmul.f32 %v943, %v1327
        %v1392 = vmul.f32 %v944, %v1328
        %v1393 = vmul.f32 %v945, %v1329
        %v1394 = vmul.f32 %v946, %v1330
        %v1395 = vmul.f32 %v947, %v1331
        %v1396 = vmul.f32 %v948, %v1332
        %v1397 = vmul.f32 %v949, %v1333
        %v1398 = vmul.f32 %v950, %v1334
        %v1399 = vmul.f32 %v951, %v1335
        %v1400 = vmul.f32 %v952, %v1336
        %v1401 = vmul.f32 %v953, %v1337
        %v1402 = vmul.f32 %v954, %v1338
        %v1403 = vmul.f32 %v955, %v1339
        %v1404 = vmul.f32 %v956, %v1340
        %v1405 = vmul.f32 %v957, %v1341
        %v1406 = vmul.f32 %v958, %v1342
        %v1407 = vmul.f32 %v959, %v1343
        %v1409 = vlaneseq
        %v1410 = vshrl.u32 %v1409, 7
        %v1411 = vsub.s32 0, %v1410
        %v1412 = vrot.slane %v497, %v1411
        %v1414 = vmul.f32 %v1344, %v1412
        %v1415 = vmul.f32 %v1345, %v1412
        %v1416 = vmul.f32 %v1346, %v1412
        %v1417 = vmul.f32 %v1347, %v1412
        %v1418 = vmul.f32 %v1348, %v1412
        %v1419 = vmul.f32 %v1349, %v1412
        %v1420 = vmul.f32 %v1350, %v1412
        %v1421 = vmul.f32 %v1351, %v1412
        %v1422 = vmul.f32 %v1352, %v1412
        %v1423 = vmul.f32 %v1353, %v1412
        %v1424 = vmul.f32 %v1354, %v1412
        %v1425 = vmul.f32 %v1355, %v1412
        %v1426 = vmul.f32 %v1356, %v1412
        %v1427 = vmul.f32 %v1357, %v1412
        %v1428 = vmul.f32 %v1358, %v1412
        %v1429 = vmul.f32 %v1359, %v1412
        %v1430 = vmul.f32 %v1360, %v1412
        %v1431 = vmul.f32 %v1361, %v1412
        %v1432 = vmul.f32 %v1362, %v1412
        %v1433 = vmul.f32 %v1363, %v1412
        %v1434 = vmul.f32 %v1364, %v1412
        %v1435 = vmul.f32 %v1365, %v1412
        %v1436 = vmul.f32 %v1366, %v1412
        %v1437 = vmul.f32 %v1367, %v1412
        %v1438 = vmul.f32 %v1368, %v1412
        %v1439 = vmul.f32 %v1369, %v1412
        %v1440 = vmul.f32 %v1370, %v1412
        %v1441 = vmul.f32 %v1371, %v1412
        %v1442 = vmul.f32 %v1372, %v1412
        %v1443 = vmul.f32 %v1373, %v1412
        %v1444 = vmul.f32 %v1374, %v1412
        %v1445 = vmul.f32 %v1375, %v1412
        %v1446 = vmul.f32 %v1376, %v1412
        %v1447 = vmul.f32 %v1377, %v1412
        %v1448 = vmul.f32 %v1378, %v1412
        %v1449 = vmul.f32 %v1379, %v1412
        %v1450 = vmul.f32 %v1380, %v1412
        %v1451 = vmul.f32 %v1381, %v1412
        %v1452 = vmul.f32 %v1382, %v1412
        %v1453 = vmul.f32 %v1383, %v1412
        %v1454 = vmul.f32 %v1384, %v1412
        %v1455 = vmul.f32 %v1385, %v1412
        %v1456 = vmul.f32 %v1386, %v1412
        %v1457 = vmul.f32 %v1387, %v1412
        %v1458 = vmul.f32 %v1388, %v1412
        %v1459 = vmul.f32 %v1389, %v1412
        %v1460 = vmul.f32 %v1390, %v1412
        %v1461 = vmul.f32 %v1391, %v1412
        %v1462 = vmul.f32 %v1392, %v1412
        %v1463 = vmul.f32 %v1393, %v1412
        %v1464 = vmul.f32 %v1394, %v1412
        %v1465 = vmul.f32 %v1395, %v1412
        %v1466 = vmul.f32 %v1396, %v1412
        %v1467 = vmul.f32 %v1397, %v1412
        %v1468 = vmul.f32 %v1398, %v1412
        %v1469 = vmul.f32 %v1399, %v1412
        %v1470 = vmul.f32 %v1400, %v1412
        %v1471 = vmul.f32 %v1401, %v1412
        %v1472 = vmul.f32 %v1402, %v1412
        %v1473 = vmul.f32 %v1403, %v1412
        %v1474 = vmul.f32 %v1404, %v1412
        %v1475 = vmul.f32 %v1405, %v1412
        %v1476 = vmul.f32 %v1406, %v1412
        %v1477 = vmul.f32 %v1407, %v1412
        %v1479 = vlaneseq
        %v1480 = vshrl.u32 %v1479, 7
        %v1481 = vsub.s32 0, %v1480
        %v1482 = vrot.slane %v498, %v1481
        %v1484 = vadd.f32 %v1414, %v1482
        %v1485 = vadd.f32 %v1415, %v1482
        %v1486 = vadd.f32 %v1416, %v1482
        %v1487 = vadd.f32 %v1417, %v1482
        %v1488 = vadd.f32 %v1418, %v1482
        %v1489 = vadd.f32 %v1419, %v1482
        %v1490 = vadd.f32 %v1420, %v1482
        %v1491 = vadd.f32 %v1421, %v1482
        %v1492 = vadd.f32 %v1422, %v1482
        %v1493 = vadd.f32 %v1423, %v1482
        %v1494 = vadd.f32 %v1424, %v1482
        %v1495 = vadd.f32 %v1425, %v1482
        %v1496 = vadd.f32 %v1426, %v1482
        %v1497 = vadd.f32 %v1427, %v1482
        %v1498 = vadd.f32 %v1428, %v1482
        %v1499 = vadd.f32 %v1429, %v1482
        %v1500 = vadd.f32 %v1430, %v1482
        %v1501 = vadd.f32 %v1431, %v1482
        %v1502 = vadd.f32 %v1432, %v1482
        %v1503 = vadd.f32 %v1433, %v1482
        %v1504 = vadd.f32 %v1434, %v1482
        %v1505 = vadd.f32 %v1435, %v1482
        %v1506 = vadd.f32 %v1436, %v1482
        %v1507 = vadd.f32 %v1437, %v1482
        %v1508 = vadd.f32 %v1438, %v1482
        %v1509 = vadd.f32 %v1439, %v1482
        %v1510 = vadd.f32 %v1440, %v1482
        %v1511 = vadd.f32 %v1441, %v1482
        %v1512 = vadd.f32 %v1442, %v1482
        %v1513 = vadd.f32 %v1443, %v1482
        %v1514 = vadd.f32 %v1444, %v1482
        %v1515 = vadd.f32 %v1445, %v1482
        %v1516 = vadd.f32 %v1446, %v1482
        %v1517 = vadd.f32 %v1447, %v1482
        %v1518 = vadd.f32 %v1448, %v1482
        %v1519 = vadd.f32 %v1449, %v1482
        %v1520 = vadd.f32 %v1450, %v1482
        %v1521 = vadd.f32 %v1451, %v1482
        %v1522 = vadd.f32 %v1452, %v1482
        %v1523 = vadd.f32 %v1453, %v1482
        %v1524 = vadd.f32 %v1454, %v1482
        %v1525 = vadd.f32 %v1455, %v1482
        %v1526 = vadd.f32 %v1456, %v1482
        %v1527 = vadd.f32 %v1457, %v1482
        %v1528 = vadd.f32 %v1458, %v1482
        %v1529 = vadd.f32 %v1459, %v1482
        %v1530 = vadd.f32 %v1460, %v1482
        %v1531 = vadd.f32 %v1461, %v1482
        %v1532 = vadd.f32 %v1462, %v1482
        %v1533 = vadd.f32 %v1463, %v1482
        %v1534 = vadd.f32 %v1464, %v1482
        %v1535 = vadd.f32 %v1465, %v1482
        %v1536 = vadd.f32 %v1466, %v1482
        %v1537 = vadd.f32 %v1467, %v1482
        %v1538 = vadd.f32 %v1468, %v1482
        %v1539 = vadd.f32 %v1469, %v1482
        %v1540 = vadd.f32 %v1470, %v1482
        %v1541 = vadd.f32 %v1471, %v1482
        %v1542 = vadd.f32 %v1472, %v1482
        %v1543 = vadd.f32 %v1473, %v1482
        %v1544 = vadd.f32 %v1474, %v1482
        %v1545 = vadd.f32 %v1475, %v1482
        %v1546 = vadd.f32 %v1476, %v1482
        %v1547 = vadd.f32 %v1477, %v1482
        %s1548 = scalar_lea.vmem [#allocation2], %s506
        %1549 = vst [vmem:[%s1548] sm:$0xff] %v1484
        %1550 = vst [vmem:[%s1548 + $0x8] sm:$0xff] %v1485
        %1551 = vst [vmem:[%s1548 + $0x10] sm:$0xff] %v1486
        %1552 = vst [vmem:[%s1548 + $0x18] sm:$0xff] %v1487
        %1553 = vst [vmem:[%s1548 + $0x20] sm:$0xff] %v1488
        %1554 = vst [vmem:[%s1548 + $0x28] sm:$0xff] %v1489
        %1555 = vst [vmem:[%s1548 + $0x30] sm:$0xff] %v1490
        %1556 = vst [vmem:[%s1548 + $0x38] sm:$0xff] %v1491
        %1557 = vst [vmem:[%s1548 + $0x40] sm:$0xff] %v1492
        %1558 = vst [vmem:[%s1548 + $0x48] sm:$0xff] %v1493
        %1559 = vst [vmem:[%s1548 + $0x50] sm:$0xff] %v1494
        %1560 = vst [vmem:[%s1548 + $0x58] sm:$0xff] %v1495
        %1561 = vst [vmem:[%s1548 + $0x60] sm:$0xff] %v1496
        %1562 = vst [vmem:[%s1548 + $0x68] sm:$0xff] %v1497
        %1563 = vst [vmem:[%s1548 + $0x70] sm:$0xff] %v1498
        %1564 = vst [vmem:[%s1548 + $0x78] sm:$0xff] %v1499
        %1565 = vst [vmem:[%s1548 + $0x80] sm:$0xff] %v1500
        %1566 = vst [vmem:[%s1548 + $0x88] sm:$0xff] %v1501
        %1567 = vst [vmem:[%s1548 + $0x90] sm:$0xff] %v1502
        %1568 = vst [vmem:[%s1548 + $0x98] sm:$0xff] %v1503
        %1569 = vst [vmem:[%s1548 + $0xa0] sm:$0xff] %v1504
        %1570 = vst [vmem:[%s1548 + $0xa8] sm:$0xff] %v1505
        %1571 = vst [vmem:[%s1548 + $0xb0] sm:$0xff] %v1506
        %1572 = vst [vmem:[%s1548 + $0xb8] sm:$0xff] %v1507
        %1573 = vst [vmem:[%s1548 + $0xc0] sm:$0xff] %v1508
        %1574 = vst [vmem:[%s1548 + $0xc8] sm:$0xff] %v1509
        %1575 = vst [vmem:[%s1548 + $0xd0] sm:$0xff] %v1510
        %1576 = vst [vmem:[%s1548 + $0xd8] sm:$0xff] %v1511
        %1577 = vst [vmem:[%s1548 + $0xe0] sm:$0xff] %v1512
        %1578 = vst [vmem:[%s1548 + $0xe8] sm:$0xff] %v1513
        %1579 = vst [vmem:[%s1548 + $0xf0] sm:$0xff] %v1514
        %1580 = vst [vmem:[%s1548 + $0xf8] sm:$0xff] %v1515
        %1581 = vst [vmem:[%s1548 + $0x100] sm:$0xff] %v1516
        %1582 = vst [vmem:[%s1548 + $0x108] sm:$0xff] %v1517
        %1583 = vst [vmem:[%s1548 + $0x110] sm:$0xff] %v1518
        %1584 = vst [vmem:[%s1548 + $0x118] sm:$0xff] %v1519
        %1585 = vst [vmem:[%s1548 + $0x120] sm:$0xff] %v1520
        %1586 = vst [vmem:[%s1548 + $0x128] sm:$0xff] %v1521
        %1587 = vst [vmem:[%s1548 + $0x130] sm:$0xff] %v1522
        %1588 = vst [vmem:[%s1548 + $0x138] sm:$0xff] %v1523
        %1589 = vst [vmem:[%s1548 + $0x140] sm:$0xff] %v1524
        %1590 = vst [vmem:[%s1548 + $0x148] sm:$0xff] %v1525
        %1591 = vst [vmem:[%s1548 + $0x150] sm:$0xff] %v1526
        %1592 = vst [vmem:[%s1548 + $0x158] sm:$0xff] %v1527
        %1593 = vst [vmem:[%s1548 + $0x160] sm:$0xff] %v1528
        %1594 = vst [vmem:[%s1548 + $0x168] sm:$0xff] %v1529
        %1595 = vst [vmem:[%s1548 + $0x170] sm:$0xff] %v1530
        %1596 = vst [vmem:[%s1548 + $0x178] sm:$0xff] %v1531
        %1597 = vst [vmem:[%s1548 + $0x180] sm:$0xff] %v1532
        %1598 = vst [vmem:[%s1548 + $0x188] sm:$0xff] %v1533
        %1599 = vst [vmem:[%s1548 + $0x190] sm:$0xff] %v1534
        %1600 = vst [vmem:[%s1548 + $0x198] sm:$0xff] %v1535
        %1601 = vst [vmem:[%s1548 + $0x1a0] sm:$0xff] %v1536
        %1602 = vst [vmem:[%s1548 + $0x1a8] sm:$0xff] %v1537
        %1603 = vst [vmem:[%s1548 + $0x1b0] sm:$0xff] %v1538
        %1604 = vst [vmem:[%s1548 + $0x1b8] sm:$0xff] %v1539
        %1605 = vst [vmem:[%s1548 + $0x1c0] sm:$0xff] %v1540
        %1606 = vst [vmem:[%s1548 + $0x1c8] sm:$0xff] %v1541
        %1607 = vst [vmem:[%s1548 + $0x1d0] sm:$0xff] %v1542
        %1608 = vst [vmem:[%s1548 + $0x1d8] sm:$0xff] %v1543
        %1609 = vst [vmem:[%s1548 + $0x1e0] sm:$0xff] %v1544
        %1610 = vst [vmem:[%s1548 + $0x1e8] sm:$0xff] %v1545
        %1611 = vst [vmem:[%s1548 + $0x1f0] sm:$0xff] %v1546
        %1612 = vst [vmem:[%s1548 + $0x1f8] sm:$0xff] %v1547
        %v1613 = vld [vmem:[#allocation3] sm:$0x1]
        %v1614 = vadd.f32 %v1484, %v1485
        %v1615 = vadd.f32 %v1614, %v1486
        %v1616 = vadd.f32 %v1615, %v1487
        %v1617 = vadd.f32 %v1616, %v1488
        %v1618 = vadd.f32 %v1617, %v1489
        %v1619 = vadd.f32 %v1618, %v1490
        %v1620 = vadd.f32 %v1619, %v1491
        %v1621 = vadd.f32 %v1620, %v1492
        %v1622 = vadd.f32 %v1621, %v1493
        %v1623 = vadd.f32 %v1622, %v1494
        %v1624 = vadd.f32 %v1623, %v1495
        %v1625 = vadd.f32 %v1624, %v1496
        %v1626 = vadd.f32 %v1625, %v1497
        %v1627 = vadd.f32 %v1626, %v1498
        %v1628 = vadd.f32 %v1627, %v1499
        %v1629 = vadd.f32 %v1628, %v1500
        %v1630 = vadd.f32 %v1629, %v1501
        %v1631 = vadd.f32 %v1630, %v1502
        %v1632 = vadd.f32 %v1631, %v1503
        %v1633 = vadd.f32 %v1632, %v1504
        %v1634 = vadd.f32 %v1633, %v1505
        %v1635 = vadd.f32 %v1634, %v1506
        %v1636 = vadd.f32 %v1635, %v1507
        %v1637 = vadd.f32 %v1636, %v1508
        %v1638 = vadd.f32 %v1637, %v1509
        %v1639 = vadd.f32 %v1638, %v1510
        %v1640 = vadd.f32 %v1639, %v1511
        %v1641 = vadd.f32 %v1640, %v1512
        %v1642 = vadd.f32 %v1641, %v1513
        %v1643 = vadd.f32 %v1642, %v1514
        %v1644 = vadd.f32 %v1643, %v1515
        %v1645 = vadd.f32 %v1644, %v1516
        %v1646 = vadd.f32 %v1645, %v1517
        %v1647 = vadd.f32 %v1646, %v1518
        %v1648 = vadd.f32 %v1647, %v1519
        %v1649 = vadd.f32 %v1648, %v1520
        %v1650 = vadd.f32 %v1649, %v1521
        %v1651 = vadd.f32 %v1650, %v1522
        %v1652 = vadd.f32 %v1651, %v1523
        %v1653 = vadd.f32 %v1652, %v1524
        %v1654 = vadd.f32 %v1653, %v1525
        %v1655 = vadd.f32 %v1654, %v1526
        %v1656 = vadd.f32 %v1655, %v1527
        %v1657 = vadd.f32 %v1656, %v1528
        %v1658 = vadd.f32 %v1657, %v1529
        %v1659 = vadd.f32 %v1658, %v1530
        %v1660 = vadd.f32 %v1659, %v1531
        %v1661 = vadd.f32 %v1660, %v1532
        %v1662 = vadd.f32 %v1661, %v1533
        %v1663 = vadd.f32 %v1662, %v1534
        %v1664 = vadd.f32 %v1663, %v1535
        %v1665 = vadd.f32 %v1664, %v1536
        %v1666 = vadd.f32 %v1665, %v1537
        %v1667 = vadd.f32 %v1666, %v1538
        %v1668 = vadd.f32 %v1667, %v1539
        %v1669 = vadd.f32 %v1668, %v1540
        %v1670 = vadd.f32 %v1669, %v1541
        %v1671 = vadd.f32 %v1670, %v1542
        %v1672 = vadd.f32 %v1671, %v1543
        %v1673 = vadd.f32 %v1672, %v1544
        %v1674 = vadd.f32 %v1673, %v1545
        %v1675 = vadd.f32 %v1674, %v1546
        %v1676 = vadd.f32 %v1675, %v1547
        %v1677 = vrot.slane %v1676, 4
        %v1678 = vadd.f32 %v1676, %v1677
        %v1679 = vrot.slane %v1678, 2
        %v1680 = vadd.f32 %v1678, %v1679
        %v1681 = vrot.slane %v1680, 1
        %v1682 = vadd.f32 %v1680, %v1681
        %v1683 = vadd.f32 %v1613, %v1682
        %1684 = vst [vmem:[#allocation3] sm:$0x1] %v1683
      $region85: #{ffn_pallas.1} parent=79 // loop_footer
        %s505 = sadd.s32 1, %s501
      $region86: #{ffn_pallas.1} parent=79 // loop_footer_branch
        %500 = sbr.rel target = $region82
      $region87: #{ffn_pallas.1} parent=79 // loop_exit
        _
      %v1685 = vld [vmem:[#allocation3] sm:$0x1]
      %v1686 = vmul.f32 %v1685, 0.0009765625
      %v1687 = vld [vmem:[%s3] sm:$0xff]
      %v1688 = vld [vmem:[%s3 + $0x8] sm:$0xff]
      %v1689 = vld [vmem:[%s3 + $0x10] sm:$0xff]
      %v1690 = vld [vmem:[%s3 + $0x18] sm:$0xff]
      %v1691 = vld [vmem:[%s3 + $0x20] sm:$0xff]
      %v1692 = vld [vmem:[%s3 + $0x28] sm:$0xff]
      %v1693 = vld [vmem:[%s3 + $0x30] sm:$0xff]
      %v1694 = vld [vmem:[%s3 + $0x38] sm:$0xff]
      %v1695 = vld [vmem:[%s3 + $0x40] sm:$0xff]
      %v1696 = vld [vmem:[%s3 + $0x48] sm:$0xff]
      %v1697 = vld [vmem:[%s3 + $0x50] sm:$0xff]
      %v1698 = vld [vmem:[%s3 + $0x58] sm:$0xff]
      %v1699 = vld [vmem:[%s3 + $0x60] sm:$0xff]
      %v1700 = vld [vmem:[%s3 + $0x68] sm:$0xff]
      %v1701 = vld [vmem:[%s3 + $0x70] sm:$0xff]
      %v1702 = vld [vmem:[%s3 + $0x78] sm:$0xff]
      %v1703 = vld [vmem:[%s4] sm:$0x1]
      %1704 = vmatprep.subr.mxu0 0.0
      %1705 = vmatpush1.msra.mxu0 %v1687
      %1706 = vmatprep.subr.mxu0 0.0
      %1707 = vmatpush1.msra.mxu0 %v1688
      %1708 = vmatprep.subr.mxu0 0.0
      %1709 = vmatpush1.msra.mxu0 %v1689
      %1710 = vmatprep.subr.mxu0 0.0
      %1711 = vmatpush1.msra.mxu0 %v1690
      %1712 = vmatprep.subr.mxu0 0.0
      %1713 = vmatpush1.msra.mxu0 %v1691
      %1714 = vmatprep.subr.mxu0 0.0
      %1715 = vmatpush1.msra.mxu0 %v1692
      %1716 = vmatprep.subr.mxu0 0.0
      %1717 = vmatpush1.msra.mxu0 %v1693
      %1718 = vmatprep.subr.mxu0 0.0
      %1719 = vmatpush1.msra.mxu0 %v1694
      %1720 = vmatprep.subr.mxu0 0.0
      %1721 = vmatpush1.msra.mxu0 %v1695
      %1722 = vmatprep.subr.mxu0 0.0
      %1723 = vmatpush1.msra.mxu0 %v1696
      %1724 = vmatprep.subr.mxu0 0.0
      %1725 = vmatpush1.msra.mxu0 %v1697
      %1726 = vmatprep.subr.mxu0 0.0
      %1727 = vmatpush1.msra.mxu0 %v1698
      %1728 = vmatprep.subr.mxu0 0.0
      %1729 = vmatpush1.msra.mxu0 %v1699
      %1730 = vmatprep.subr.mxu0 0.0
      %1731 = vmatpush1.msra.mxu0 %v1700
      %1732 = vmatprep.subr.mxu0 0.0
      %1733 = vmatpush1.msra.mxu0 %v1701
      %1734 = vmatprep.subr.mxu0 0.0
      %1735 = vmatpush1.msra.mxu0 %v1702
      %1736 = vmatprep.subr.mxu0 0.0
      %1737 = vmatpush1.msra.mxu0 0.0
      %1738 = vmatprep.subr.mxu0 0.0
      %1739 = vmatpush1.msra.mxu0 0.0
      %1740 = vmatprep.subr.mxu0 0.0
      %1741 = vmatpush1.msra.mxu0 0.0
      %1742 = vmatprep.subr.mxu0 0.0
      %1743 = vmatpush1.msra.mxu0 0.0
      %1744 = vmatprep.subr.mxu0 0.0
      %1745 = vmatpush1.msra.mxu0 0.0
      %1746 = vmatprep.subr.mxu0 0.0
      %1747 = vmatpush1.msra.mxu0 0.0
      %1748 = vmatprep.subr.mxu0 0.0
      %1749 = vmatpush1.msra.mxu0 0.0
      %1750 = vmatprep.subr.mxu0 0.0
      %1751 = vmatpush1.msra.mxu0 0.0
      %1752 = vmatprep.subr.mxu0 0.0
      %1753 = vmatpush1.msra.mxu0 0.0
      %1754 = vmatprep.subr.mxu0 0.0
      %1755 = vmatpush1.msra.mxu0 0.0
      %1756 = vmatprep.subr.mxu0 0.0
      %1757 = vmatpush1.msra.mxu0 0.0
      %1758 = vmatprep.subr.mxu0 0.0
      %1759 = vmatpush1.msra.mxu0 0.0
      %1760 = vmatprep.subr.mxu0 0.0
      %1761 = vmatpush1.msra.mxu0 0.0
      %1762 = vmatprep.subr.mxu0 0.0
      %1763 = vmatpush1.msra.mxu0 0.0
      %1764 = vmatprep.subr.mxu0 0.0
      %1765 = vmatpush1.msra.mxu0 0.0
      %1766 = vmatprep.subr.mxu0 0.0
      %1767 = vmatpush1.msra.mxu0 0.0
      %1768 = vmatprep.mubr.f32.mxu0 0.0
      %1769 = vmatmul.mubr.f32.gmra.mrb[0].mxu0 %v1686
      %v1770 = vpop.f32.mrb[0].mxu0
      %v1771 = vadd.f32 %v1703, %v1770
      %v1772 = vpop.f32.mrb[0].mxu0
      %1773 = vdwg.mxu0
      %v1774 = vmul.f32 %v1771, 0.5
      %v1775 = vmul.f32 %v1771, 0.70710677
      %v1776 = verf.f32.pop %v1775
      %v1777 = vadd.f32 %v1776, 1.0
      %v1778 = vmul.f32 %v1774, %v1777
      %v1779 = vld [vmem:[%s5] sm:$0xff]
      %v1780 = vld [vmem:[%s5 + $0x8] sm:$0xff]
      %v1781 = vld [vmem:[%s5 + $0x10] sm:$0xff]
      %v1782 = vld [vmem:[%s5 + $0x18] sm:$0xff]
      %v1783 = vld [vmem:[%s5 + $0x20] sm:$0xff]
      %v1784 = vld [vmem:[%s5 + $0x28] sm:$0xff]
      %v1785 = vld [vmem:[%s5 + $0x30] sm:$0xff]
      %v1786 = vld [vmem:[%s5 + $0x38] sm:$0xff]
      %v1787 = vld [vmem:[%s5 + $0x40] sm:$0xff]
      %v1788 = vld [vmem:[%s5 + $0x48] sm:$0xff]
      %v1789 = vld [vmem:[%s5 + $0x50] sm:$0xff]
      %v1790 = vld [vmem:[%s5 + $0x58] sm:$0xff]
      %v1791 = vld [vmem:[%s5 + $0x60] sm:$0xff]
      %v1792 = vld [vmem:[%s5 + $0x68] sm:$0xff]
      %v1793 = vld [vmem:[%s5 + $0x70] sm:$0xff]
      %v1794 = vld [vmem:[%s5 + $0x78] sm:$0xff]
      %v1795 = vld [vmem:[%s6] sm:$0x1]
      %1796 = vmatprep.subr.mxu0 0.0
      %1797 = vmatpush1.msra.mxu0 %v1779
      %1798 = vmatprep.subr.mxu0 0.0
      %1799 = vmatpush1.msra.mxu0 %v1780
      %1800 = vmatprep.subr.mxu0 0.0
      %1801 = vmatpush1.msra.mxu0 %v1781
      %1802 = vmatprep.subr.mxu0 0.0
      %1803 = vmatpush1.msra.mxu0 %v1782
      %1804 = vmatprep.subr.mxu0 0.0
      %1805 = vmatpush1.msra.mxu0 %v1783
      %1806 = vmatprep.subr.mxu0 0.0
      %1807 = vmatpush1.msra.mxu0 %v1784
      %1808 = vmatprep.subr.mxu0 0.0
      %1809 = vmatpush1.msra.mxu0 %v1785
      %1810 = vmatprep.subr.mxu0 0.0
      %1811 = vmatpush1.msra.mxu0 %v1786
      %1812 = vmatprep.subr.mxu0 0.0
      %1813 = vmatpush1.msra.mxu0 %v1787
      %1814 = vmatprep.subr.mxu0 0.0
      %1815 = vmatpush1.msra.mxu0 %v1788
      %1816 = vmatprep.subr.mxu0 0.0
      %1817 = vmatpush1.msra.mxu0 %v1789
      %1818 = vmatprep.subr.mxu0 0.0
      %1819 = vmatpush1.msra.mxu0 %v1790
      %1820 = vmatprep.subr.mxu0 0.0
      %1821 = vmatpush1.msra.mxu0 %v1791
      %1822 = vmatprep.subr.mxu0 0.0
      %1823 = vmatpush1.msra.mxu0 %v1792
      %1824 = vmatprep.subr.mxu0 0.0
      %1825 = vmatpush1.msra.mxu0 %v1793
      %1826 = vmatprep.subr.mxu0 0.0
      %1827 = vmatpush1.msra.mxu0 %v1794
      %1828 = vmatprep.subr.mxu0 0.0
      %1829 = vmatpush1.msra.mxu0 0.0
      %1830 = vmatprep.subr.mxu0 0.0
      %1831 = vmatpush1.msra.mxu0 0.0
      %1832 = vmatprep.subr.mxu0 0.0
      %1833 = vmatpush1.msra.mxu0 0.0
      %1834 = vmatprep.subr.mxu0 0.0
      %1835 = vmatpush1.msra.mxu0 0.0
      %1836 = vmatprep.subr.mxu0 0.0
      %1837 = vmatpush1.msra.mxu0 0.0
      %1838 = vmatprep.subr.mxu0 0.0
      %1839 = vmatpush1.msra.mxu0 0.0
      %1840 = vmatprep.subr.mxu0 0.0
      %1841 = vmatpush1.msra.mxu0 0.0
      %1842 = vmatprep.subr.mxu0 0.0
      %1843 = vmatpush1.msra.mxu0 0.0
      %1844 = vmatprep.subr.mxu0 0.0
      %1845 = vmatpush1.msra.mxu0 0.0
      %1846 = vmatprep.subr.mxu0 0.0
      %1847 = vmatpush1.msra.mxu0 0.0
      %1848 = vmatprep.subr.mxu0 0.0
      %1849 = vmatpush1.msra.mxu0 0.0
      %1850 = vmatprep.subr.mxu0 0.0
      %1851 = vmatpush1.msra.mxu0 0.0
      %1852 = vmatprep.subr.mxu0 0.0
      %1853 = vmatpush1.msra.mxu0 0.0
      %1854 = vmatprep.subr.mxu0 0.0
      %1855 = vmatpush1.msra.mxu0 0.0
      %1856 = vmatprep.subr.mxu0 0.0
      %1857 = vmatpush1.msra.mxu0 0.0
      %1858 = vmatprep.subr.mxu0 0.0
      %1859 = vmatpush1.msra.mxu0 0.0
      %1860 = vmatprep.mubr.f32.mxu0 0.0
      %1861 = vmatmul.mubr.f32.gmra.mrb[0].mxu0 %v1778
      %v1862 = vpop.f32.mrb[0].mxu0
      %v1863 = vadd.f32 %v1795, %v1862
      %v1864 = vpop.f32.mrb[0].mxu0
      %1865 = vdwg.mxu0
      %v1866 = vsub.f32 0.0, %v1863
      %v1867 = vmul.f32 %v1866, 1.442695
      %v1868 = vpow.pop %v1867
      %v1869 = vadd.f32 %v1868, 1.0
      %v1870 = vrcp.pop %v1869
      %v1871 = vmul.f32 1.0, %v1870
      %s1872 = sld [smem:[#allocation4]]
      loop: start=0, step=1, limit=2
      $region88: #{ffn_pallas.1} parent=79 // loop_pre_header
        _
      $region89: #{ffn_pallas.1} parent=79 // loop_header
        %s1874 = sphi 0, %s1878
        %p1875 = scmp.ge.s32.totalorder %s1874, 2
      $region90: #{ffn_pallas.1} parent=79 // loop_header_branch
        %1877 = sbr.rel (%p1875) target = $region94
      $region91: #{ffn_pallas.1} parent=79 // loop_body
        %s1879 = smul.u32 %s1874, 512
        %s1880 = scalar_lea.vmem [#allocation2], %s1879
        %v1881 = vld [vmem:[%s1880] sm:$0xff]
        %v1882 = vld [vmem:[%s1880 + $0x8] sm:$0xff]
        %v1883 = vld [vmem:[%s1880 + $0x10] sm:$0xff]
        %v1884 = vld [vmem:[%s1880 + $0x18] sm:$0xff]
        %v1885 = vld [vmem:[%s1880 + $0x20] sm:$0xff]
        %v1886 = vld [vmem:[%s1880 + $0x28] sm:$0xff]
        %v1887 = vld [vmem:[%s1880 + $0x30] sm:$0xff]
        %v1888 = vld [vmem:[%s1880 + $0x38] sm:$0xff]
        %v1889 = vld [vmem:[%s1880 + $0x40] sm:$0xff]
        %v1890 = vld [vmem:[%s1880 + $0x48] sm:$0xff]
        %v1891 = vld [vmem:[%s1880 + $0x50] sm:$0xff]
        %v1892 = vld [vmem:[%s1880 + $0x58] sm:$0xff]
        %v1893 = vld [vmem:[%s1880 + $0x60] sm:$0xff]
        %v1894 = vld [vmem:[%s1880 + $0x68] sm:$0xff]
        %v1895 = vld [vmem:[%s1880 + $0x70] sm:$0xff]
        %v1896 = vld [vmem:[%s1880 + $0x78] sm:$0xff]
        %v1897 = vld [vmem:[%s1880 + $0x80] sm:$0xff]
        %v1898 = vld [vmem:[%s1880 + $0x88] sm:$0xff]
        %v1899 = vld [vmem:[%s1880 + $0x90] sm:$0xff]
        %v1900 = vld [vmem:[%s1880 + $0x98] sm:$0xff]
        %v1901 = vld [vmem:[%s1880 + $0xa0] sm:$0xff]
        %v1902 = vld [vmem:[%s1880 + $0xa8] sm:$0xff]
        %v1903 = vld [vmem:[%s1880 + $0xb0] sm:$0xff]
        %v1904 = vld [vmem:[%s1880 + $0xb8] sm:$0xff]
        %v1905 = vld [vmem:[%s1880 + $0xc0] sm:$0xff]
        %v1906 = vld [vmem:[%s1880 + $0xc8] sm:$0xff]
        %v1907 = vld [vmem:[%s1880 + $0xd0] sm:$0xff]
        %v1908 = vld [vmem:[%s1880 + $0xd8] sm:$0xff]
        %v1909 = vld [vmem:[%s1880 + $0xe0] sm:$0xff]
        %v1910 = vld [vmem:[%s1880 + $0xe8] sm:$0xff]
        %v1911 = vld [vmem:[%s1880 + $0xf0] sm:$0xff]
        %v1912 = vld [vmem:[%s1880 + $0xf8] sm:$0xff]
        %v1913 = vld [vmem:[%s1880 + $0x100] sm:$0xff]
        %v1914 = vld [vmem:[%s1880 + $0x108] sm:$0xff]
        %v1915 = vld [vmem:[%s1880 + $0x110] sm:$0xff]
        %v1916 = vld [vmem:[%s1880 + $0x118] sm:$0xff]
        %v1917 = vld [vmem:[%s1880 + $0x120] sm:$0xff]
        %v1918 = vld [vmem:[%s1880 + $0x128] sm:$0xff]
        %v1919 = vld [vmem:[%s1880 + $0x130] sm:$0xff]
        %v1920 = vld [vmem:[%s1880 + $0x138] sm:$0xff]
        %v1921 = vld [vmem:[%s1880 + $0x140] sm:$0xff]
        %v1922 = vld [vmem:[%s1880 + $0x148] sm:$0xff]
        %v1923 = vld [vmem:[%s1880 + $0x150] sm:$0xff]
        %v1924 = vld [vmem:[%s1880 + $0x158] sm:$0xff]
        %v1925 = vld [vmem:[%s1880 + $0x160] sm:$0xff]
        %v1926 = vld [vmem:[%s1880 + $0x168] sm:$0xff]
        %v1927 = vld [vmem:[%s1880 + $0x170] sm:$0xff]
        %v1928 = vld [vmem:[%s1880 + $0x178] sm:$0xff]
        %v1929 = vld [vmem:[%s1880 + $0x180] sm:$0xff]
        %v1930 = vld [vmem:[%s1880 + $0x188] sm:$0xff]
        %v1931 = vld [vmem:[%s1880 + $0x190] sm:$0xff]
        %v1932 = vld [vmem:[%s1880 + $0x198] sm:$0xff]
        %v1933 = vld [vmem:[%s1880 + $0x1a0] sm:$0xff]
        %v1934 = vld [vmem:[%s1880 + $0x1a8] sm:$0xff]
        %v1935 = vld [vmem:[%s1880 + $0x1b0] sm:$0xff]
        %v1936 = vld [vmem:[%s1880 + $0x1b8] sm:$0xff]
        %v1937 = vld [vmem:[%s1880 + $0x1c0] sm:$0xff]
        %v1938 = vld [vmem:[%s1880 + $0x1c8] sm:$0xff]
        %v1939 = vld [vmem:[%s1880 + $0x1d0] sm:$0xff]
        %v1940 = vld [vmem:[%s1880 + $0x1d8] sm:$0xff]
        %v1941 = vld [vmem:[%s1880 + $0x1e0] sm:$0xff]
        %v1942 = vld [vmem:[%s1880 + $0x1e8] sm:$0xff]
        %v1943 = vld [vmem:[%s1880 + $0x1f0] sm:$0xff]
        %v1944 = vld [vmem:[%s1880 + $0x1f8] sm:$0xff]
        %v1945 = vpack.c.bf16 %v1882, %v1881
        %v1946 = vpack.c.bf16 %v1884, %v1883
        %v1947 = vpack.c.bf16 %v1886, %v1885
        %v1948 = vpack.c.bf16 %v1888, %v1887
        %v1949 = vpack.c.bf16 %v1890, %v1889
        %v1950 = vpack.c.bf16 %v1892, %v1891
        %v1951 = vpack.c.bf16 %v1894, %v1893
        %v1952 = vpack.c.bf16 %v1896, %v1895
        %v1953 = vpack.c.bf16 %v1898, %v1897
        %v1954 = vpack.c.bf16 %v1900, %v1899
        %v1955 = vpack.c.bf16 %v1902, %v1901
        %v1956 = vpack.c.bf16 %v1904, %v1903
        %v1957 = vpack.c.bf16 %v1906, %v1905
        %v1958 = vpack.c.bf16 %v1908, %v1907
        %v1959 = vpack.c.bf16 %v1910, %v1909
        %v1960 = vpack.c.bf16 %v1912, %v1911
        %v1961 = vpack.c.bf16 %v1914, %v1913
        %v1962 = vpack.c.bf16 %v1916, %v1915
        %v1963 = vpack.c.bf16 %v1918, %v1917
        %v1964 = vpack.c.bf16 %v1920, %v1919
        %v1965 = vpack.c.bf16 %v1922, %v1921
        %v1966 = vpack.c.bf16 %v1924, %v1923
        %v1967 = vpack.c.bf16 %v1926, %v1925
        %v1968 = vpack.c.bf16 %v1928, %v1927
        %v1969 = vpack.c.bf16 %v1930, %v1929
        %v1970 = vpack.c.bf16 %v1932, %v1931
        %v1971 = vpack.c.bf16 %v1934, %v1933
        %v1972 = vpack.c.bf16 %v1936, %v1935
        %v1973 = vpack.c.bf16 %v1938, %v1937
        %v1974 = vpack.c.bf16 %v1940, %v1939
        %v1975 = vpack.c.bf16 %v1942, %v1941
        %v1976 = vpack.c.bf16 %v1944, %v1943
        %v1977 = vld [vmem:[%s7] sm:$0xf]
        %v1978 = vld [vmem:[%s7 + $0x4] sm:$0xf]
        %v1979 = vld [vmem:[%s7 + $0x8] sm:$0xf]
        %v1980 = vld [vmem:[%s7 + $0xc] sm:$0xf]
        %v1981 = vld [vmem:[%s7 + $0x10] sm:$0xf]
        %v1982 = vld [vmem:[%s7 + $0x14] sm:$0xf]
        %v1983 = vld [vmem:[%s7 + $0x18] sm:$0xf]
        %v1984 = vld [vmem:[%s7 + $0x1c] sm:$0xf]
        %v1985 = vld [vmem:[%s7 + $0x20] sm:$0xf]
        %v1986 = vld [vmem:[%s7 + $0x24] sm:$0xf]
        %v1987 = vld [vmem:[%s7 + $0x28] sm:$0xf]
        %v1988 = vld [vmem:[%s7 + $0x2c] sm:$0xf]
        %v1989 = vld [vmem:[%s7 + $0x30] sm:$0xf]
        %v1990 = vld [vmem:[%s7 + $0x34] sm:$0xf]
        %v1991 = vld [vmem:[%s7 + $0x38] sm:$0xf]
        %v1992 = vld [vmem:[%s7 + $0x3c] sm:$0xf]
        %v1993 = vld [vmem:[%s8] sm:$0x1]
        %v1995 = vlaneseq
        %v1996 = vshrl.u32 %v1995, 7
        %v1997 = vsub.s32 0, %v1996
        %v1998 = vrot.slane %v1993, %v1997
        %v2016 = vunpack.c.l.b16 %v1977
        %v2017 = vunpack.c.l.b16 %v1978
        %v2018 = vunpack.c.l.b16 %v1979
        %v2019 = vunpack.c.l.b16 %v1980
        %v2020 = vunpack.c.l.b16 %v1981
        %v2021 = vunpack.c.l.b16 %v1982
        %v2022 = vunpack.c.l.b16 %v1983
        %v2023 = vunpack.c.l.b16 %v1984
        %v2024 = vunpack.c.l.b16 %v1985
        %v2025 = vunpack.c.l.b16 %v1986
        %v2026 = vunpack.c.l.b16 %v1987
        %v2027 = vunpack.c.l.b16 %v1988
        %v2028 = vunpack.c.l.b16 %v1989
        %v2029 = vunpack.c.l.b16 %v1990
        %v2030 = vunpack.c.l.b16 %v1991
        %v2031 = vunpack.c.l.b16 %v1992
        %v2032 = vpack.c.b16 %v2017, %v2016
        %v2033 = vpack.c.b16 %v2019, %v2018
        %v2034 = vpack.c.b16 %v2021, %v2020
        %v2035 = vpack.c.b16 %v2023, %v2022
        %v2036 = vpack.c.b16 %v2025, %v2024
        %v2037 = vpack.c.b16 %v2027, %v2026
        %v2038 = vpack.c.b16 %v2029, %v2028
        %v2039 = vpack.c.b16 %v2031, %v2030
        %2048 = vmatprep.subr.bf16.mxu0 0
        %2049 = vmatpush1.bf16.msra.mxu0 %v2032
        %2050 = vmatprep.subr.bf16.mxu0 0
        %2051 = vmatpush1.bf16.msra.mxu0 %v2033
        %2052 = vmatprep.subr.bf16.mxu0 0
        %2053 = vmatpush1.bf16.msra.mxu0 %v2034
        %2054 = vmatprep.subr.bf16.mxu0 0
        %2055 = vmatpush1.bf16.msra.mxu0 %v2035
        %2056 = vmatprep.subr.bf16.mxu0 0
        %2057 = vmatpush1.bf16.msra.mxu0 %v2036
        %2058 = vmatprep.subr.bf16.mxu0 0
        %2059 = vmatpush1.bf16.msra.mxu0 %v2037
        %2060 = vmatprep.subr.bf16.mxu0 0
        %2061 = vmatpush1.bf16.msra.mxu0 %v2038
        %2062 = vmatprep.subr.bf16.mxu0 0
        %2063 = vmatpush1.bf16.msra.mxu0 %v2039
        %2064 = vmatprep.subr.bf16.mxu0 0
        %2065 = vmatpush1.bf16.msra.mxu0 0
        %2066 = vmatprep.subr.bf16.mxu0 0
        %2067 = vmatpush1.bf16.msra.mxu0 0
        %2068 = vmatprep.subr.bf16.mxu0 0
        %2069 = vmatpush1.bf16.msra.mxu0 0
        %2070 = vmatprep.subr.bf16.mxu0 0
        %2071 = vmatpush1.bf16.msra.mxu0 0
        %2072 = vmatprep.subr.bf16.mxu0 0
        %2073 = vmatpush1.bf16.msra.mxu0 0
        %2074 = vmatprep.subr.bf16.mxu0 0
        %2075 = vmatpush1.bf16.msra.mxu0 0
        %2076 = vmatprep.subr.bf16.mxu0 0
        %2077 = vmatpush1.bf16.msra.mxu0 0
        %2078 = vmatprep.subr.bf16.mxu0 0
        %2079 = vmatpush1.bf16.msra.mxu0 0
        %2080 = vmatprep.mubr.bf16.mxu0 0
        %2081 = vmatmul.mubr.bf16.gmra.mrb[0].mxu0 %v1945
        %v2082 = vpop.f32.mrb[0].mxu0
        %v2083 = vadd.f32 %v1998, %v2082
        %v2084 = vpop.f32.mrb[0].mxu0
        %v2085 = vpop.f32.mrb[0].mxu0
        %v2086 = vadd.f32 %v1998, %v2085
        %v2087 = vpop.f32.mrb[0].mxu0
        %2088 = vmatprep.mubr.bf16.mxu0 0
        %2089 = vmatmul.mubr.bf16.gmra.mrb[0].mxu0 %v1946
        %v2090 = vpop.f32.mrb[0].mxu0
        %v2091 = vadd.f32 %v1998, %v2090
        %v2092 = vpop.f32.mrb[0].mxu0
        %v2093 = vpop.f32.mrb[0].mxu0
        %v2094 = vadd.f32 %v1998, %v2093
        %v2095 = vpop.f32.mrb[0].mxu0
        %2096 = vmatprep.mubr.bf16.mxu0 0
        %2097 = vmatmul.mubr.bf16.gmra.mrb[0].mxu0 %v1947
        %v2098 = vpop.f32.mrb[0].mxu0
        %v2099 = vadd.f32 %v1998, %v2098
        %v2100 = vpop.f32.mrb[0].mxu0
        %v2101 = vpop.f32.mrb[0].mxu0
        %v2102 = vadd.f32 %v1998, %v2101
        %v2103 = vpop.f32.mrb[0].mxu0
        %2104 = vmatprep.mubr.bf16.mxu0 0
        %2105 = vmatmul.mubr.bf16.gmra.mrb[0].mxu0 %v1948
        %v2106 = vpop.f32.mrb[0].mxu0
        %v2107 = vadd.f32 %v1998, %v2106
        %v2108 = vpop.f32.mrb[0].mxu0
        %v2109 = vpop.f32.mrb[0].mxu0
        %v2110 = vadd.f32 %v1998, %v2109
        %v2111 = vpop.f32.mrb[0].mxu0
        %2112 = vmatprep.mubr.bf16.mxu0 0
        %2113 = vmatmul.mubr.bf16.gmra.mrb[0].mxu0 %v1949
        %v2114 = vpop.f32.mrb[0].mxu0
        %v2115 = vadd.f32 %v1998, %v2114
        %v2116 = vpop.f32.mrb[0].mxu0
        %v2117 = vpop.f32.mrb[0].mxu0
        %v2118 = vadd.f32 %v1998, %v2117
        %v2119 = vpop.f32.mrb[0].mxu0
        %2120 = vmatprep.mubr.bf16.mxu0 0
        %2121 = vmatmul.mubr.bf16.gmra.mrb[0].mxu0 %v1950
        %v2122 = vpop.f32.mrb[0].mxu0
        %v2123 = vadd.f32 %v1998, %v2122
        %v2124 = vpop.f32.mrb[0].mxu0
        %v2125 = vpop.f32.mrb[0].mxu0
        %v2126 = vadd.f32 %v1998, %v2125
        %v2127 = vpop.f32.mrb[0].mxu0
        %2128 = vmatprep.mubr.bf16.mxu0 0
        %2129 = vmatmul.mubr.bf16.gmra.mrb[0].mxu0 %v1951
        %v2130 = vpop.f32.mrb[0].mxu0
        %v2131 = vadd.f32 %v1998, %v2130
        %v2132 = vpop.f32.mrb[0].mxu0
        %v2133 = vpop.f32.mrb[0].mxu0
        %v2134 = vadd.f32 %v1998, %v2133
        %v2135 = vpop.f32.mrb[0].mxu0
        %2136 = vmatprep.mubr.bf16.mxu0 0
        %2137 = vmatmul.mubr.bf16.gmra.mrb[0].mxu0 %v1952
        %v2138 = vpop.f32.mrb[0].mxu0
        %v2139 = vadd.f32 %v1998, %v2138
        %v2140 = vpop.f32.mrb[0].mxu0
        %v2141 = vpop.f32.mrb[0].mxu0
        %v2142 = vadd.f32 %v1998, %v2141
        %v2143 = vpop.f32.mrb[0].mxu0
        %2144 = vmatprep.mubr.bf16.mxu0 0
        %2145 = vmatmul.mubr.bf16.gmra.mrb[0].mxu0 %v1953
        %v2146 = vpop.f32.mrb[0].mxu0
        %v2147 = vadd.f32 %v1998, %v2146
        %v2148 = vpop.f32.mrb[0].mxu0
        %v2149 = vpop.f32.mrb[0].mxu0
        %v2150 = vadd.f32 %v1998, %v2149
        %v2151 = vpop.f32.mrb[0].mxu0
        %2152 = vmatprep.mubr.bf16.mxu0 0
        %2153 = vmatmul.mubr.bf16.gmra.mrb[0].mxu0 %v1954
        %v2154 = vpop.f32.mrb[0].mxu0
        %v2155 = vadd.f32 %v1998, %v2154
        %v2156 = vpop.f32.mrb[0].mxu0
        %v2157 = vpop.f32.mrb[0].mxu0
        %v2158 = vadd.f32 %v1998, %v2157
        %v2159 = vpop.f32.mrb[0].mxu0
        %2160 = vmatprep.mubr.bf16.mxu0 0
        %2161 = vmatmul.mubr.bf16.gmra.mrb[0].mxu0 %v1955
        %v2162 = vpop.f32.mrb[0].mxu0
        %v2163 = vadd.f32 %v1998, %v2162
        %v2164 = vpop.f32.mrb[0].mxu0
        %v2165 = vpop.f32.mrb[0].mxu0
        %v2166 = vadd.f32 %v1998, %v2165
        %v2167 = vpop.f32.mrb[0].mxu0
        %2168 = vmatprep.mubr.bf16.mxu0 0
        %2169 = vmatmul.mubr.bf16.gmra.mrb[0].mxu0 %v1956
        %v2170 = vpop.f32.mrb[0].mxu0
        %v2171 = vadd.f32 %v1998, %v2170
        %v2172 = vpop.f32.mrb[0].mxu0
        %v2173 = vpop.f32.mrb[0].mxu0
        %v2174 = vadd.f32 %v1998, %v2173
        %v2175 = vpop.f32.mrb[0].mxu0
        %2176 = vmatprep.mubr.bf16.mxu0 0
        %2177 = vmatmul.mubr.bf16.gmra.mrb[0].mxu0 %v1957
        %v2178 = vpop.f32.mrb[0].mxu0
        %v2179 = vadd.f32 %v1998, %v2178
        %v2180 = vpop.f32.mrb[0].mxu0
        %v2181 = vpop.f32.mrb[0].mxu0
        %v2182 = vadd.f32 %v1998, %v2181
        %v2183 = vpop.f32.mrb[0].mxu0
        %2184 = vmatprep.mubr.bf16.mxu0 0
        %2185 = vmatmul.mubr.bf16.gmra.mrb[0].mxu0 %v1958
        %v2186 = vpop.f32.mrb[0].mxu0
        %v2187 = vadd.f32 %v1998, %v2186
        %v2188 = vpop.f32.mrb[0].mxu0
        %v2189 = vpop.f32.mrb[0].mxu0
        %v2190 = vadd.f32 %v1998, %v2189
        %v2191 = vpop.f32.mrb[0].mxu0
        %2192 = vmatprep.mubr.bf16.mxu0 0
        %2193 = vmatmul.mubr.bf16.gmra.mrb[0].mxu0 %v1959
        %v2194 = vpop.f32.mrb[0].mxu0
        %v2195 = vadd.f32 %v1998, %v2194
        %v2196 = vpop.f32.mrb[0].mxu0
        %v2197 = vpop.f32.mrb[0].mxu0
        %v2198 = vadd.f32 %v1998, %v2197
        %v2199 = vpop.f32.mrb[0].mxu0
        %2200 = vmatprep.mubr.bf16.mxu0 0
        %2201 = vmatmul.mubr.bf16.gmra.mrb[0].mxu0 %v1960
        %v2202 = vpop.f32.mrb[0].mxu0
        %v2203 = vadd.f32 %v1998, %v2202
        %v2204 = vpop.f32.mrb[0].mxu0
        %v2205 = vpop.f32.mrb[0].mxu0
        %v2206 = vadd.f32 %v1998, %v2205
        %v2207 = vpop.f32.mrb[0].mxu0
        %2208 = vmatprep.mubr.bf16.mxu0 0
        %2209 = vmatmul.mubr.bf16.gmra.mrb[0].mxu0 %v1961
        %v2210 = vpop.f32.mrb[0].mxu0
        %v2211 = vadd.f32 %v1998, %v2210
        %v2212 = vpop.f32.mrb[0].mxu0
        %v2213 = vpop.f32.mrb[0].mxu0
        %v2214 = vadd.f32 %v1998, %v2213
        %v2215 = vpop.f32.mrb[0].mxu0
        %2216 = vmatprep.mubr.bf16.mxu0 0
        %2217 = vmatmul.mubr.bf16.gmra.mrb[0].mxu0 %v1962
        %v2218 = vpop.f32.mrb[0].mxu0
        %v2219 = vadd.f32 %v1998, %v2218
        %v2220 = vpop.f32.mrb[0].mxu0
        %v2221 = vpop.f32.mrb[0].mxu0
        %v2222 = vadd.f32 %v1998, %v2221
        %v2223 = vpop.f32.mrb[0].mxu0
        %2224 = vmatprep.mubr.bf16.mxu0 0
        %2225 = vmatmul.mubr.bf16.gmra.mrb[0].mxu0 %v1963
        %v2226 = vpop.f32.mrb[0].mxu0
        %v2227 = vadd.f32 %v1998, %v2226
        %v2228 = vpop.f32.mrb[0].mxu0
        %v2229 = vpop.f32.mrb[0].mxu0
        %v2230 = vadd.f32 %v1998, %v2229
        %v2231 = vpop.f32.mrb[0].mxu0
        %2232 = vmatprep.mubr.bf16.mxu0 0
        %2233 = vmatmul.mubr.bf16.gmra.mrb[0].mxu0 %v1964
        %v2234 = vpop.f32.mrb[0].mxu0
        %v2235 = vadd.f32 %v1998, %v2234
        %v2236 = vpop.f32.mrb[0].mxu0
        %v2237 = vpop.f32.mrb[0].mxu0
        %v2238 = vadd.f32 %v1998, %v2237
        %v2239 = vpop.f32.mrb[0].mxu0
        %2240 = vmatprep.mubr.bf16.mxu0 0
        %2241 = vmatmul.mubr.bf16.gmra.mrb[0].mxu0 %v1965
        %v2242 = vpop.f32.mrb[0].mxu0
        %v2243 = vadd.f32 %v1998, %v2242
        %v2244 = vpop.f32.mrb[0].mxu0
        %v2245 = vpop.f32.mrb[0].mxu0
        %v2246 = vadd.f32 %v1998, %v2245
        %v2247 = vpop.f32.mrb[0].mxu0
        %2248 = vmatprep.mubr.bf16.mxu0 0
        %2249 = vmatmul.mubr.bf16.gmra.mrb[0].mxu0 %v1966
        %v2250 = vpop.f32.mrb[0].mxu0
        %v2251 = vadd.f32 %v1998, %v2250
        %v2252 = vpop.f32.mrb[0].mxu0
        %v2253 = vpop.f32.mrb[0].mxu0
        %v2254 = vadd.f32 %v1998, %v2253
        %v2255 = vpop.f32.mrb[0].mxu0
        %2256 = vmatprep.mubr.bf16.mxu0 0
        %2257 = vmatmul.mubr.bf16.gmra.mrb[0].mxu0 %v1967
        %v2258 = vpop.f32.mrb[0].mxu0
        %v2259 = vadd.f32 %v1998, %v2258
        %v2260 = vpop.f32.mrb[0].mxu0
        %v2261 = vpop.f32.mrb[0].mxu0
        %v2262 = vadd.f32 %v1998, %v2261
        %v2263 = vpop.f32.mrb[0].mxu0
        %2264 = vmatprep.mubr.bf16.mxu0 0
        %2265 = vmatmul.mubr.bf16.gmra.mrb[0].mxu0 %v1968
        %v2266 = vpop.f32.mrb[0].mxu0
        %v2267 = vadd.f32 %v1998, %v2266
        %v2268 = vpop.f32.mrb[0].mxu0
        %v2269 = vpop.f32.mrb[0].mxu0
        %v2270 = vadd.f32 %v1998, %v2269
        %v2271 = vpop.f32.mrb[0].mxu0
        %2272 = vmatprep.mubr.bf16.mxu0 0
        %2273 = vmatmul.mubr.bf16.gmra.mrb[0].mxu0 %v1969
        %v2274 = vpop.f32.mrb[0].mxu0
        %v2275 = vadd.f32 %v1998, %v2274
        %v2276 = vpop.f32.mrb[0].mxu0
        %v2277 = vpop.f32.mrb[0].mxu0
        %v2278 = vadd.f32 %v1998, %v2277
        %v2279 = vpop.f32.mrb[0].mxu0
        %2280 = vmatprep.mubr.bf16.mxu0 0
        %2281 = vmatmul.mubr.bf16.gmra.mrb[0].mxu0 %v1970
        %v2282 = vpop.f32.mrb[0].mxu0
        %v2283 = vadd.f32 %v1998, %v2282
        %v2284 = vpop.f32.mrb[0].mxu0
        %v2285 = vpop.f32.mrb[0].mxu0
        %v2286 = vadd.f32 %v1998, %v2285
        %v2287 = vpop.f32.mrb[0].mxu0
        %2288 = vmatprep.mubr.bf16.mxu0 0
        %2289 = vmatmul.mubr.bf16.gmra.mrb[0].mxu0 %v1971
        %v2290 = vpop.f32.mrb[0].mxu0
        %v2291 = vadd.f32 %v1998, %v2290
        %v2292 = vpop.f32.mrb[0].mxu0
        %v2293 = vpop.f32.mrb[0].mxu0
        %v2294 = vadd.f32 %v1998, %v2293
        %v2295 = vpop.f32.mrb[0].mxu0
        %2296 = vmatprep.mubr.bf16.mxu0 0
        %2297 = vmatmul.mubr.bf16.gmra.mrb[0].mxu0 %v1972
        %v2298 = vpop.f32.mrb[0].mxu0
        %v2299 = vadd.f32 %v1998, %v2298
        %v2300 = vpop.f32.mrb[0].mxu0
        %v2301 = vpop.f32.mrb[0].mxu0
        %v2302 = vadd.f32 %v1998, %v2301
        %v2303 = vpop.f32.mrb[0].mxu0
        %2304 = vmatprep.mubr.bf16.mxu0 0
        %2305 = vmatmul.mubr.bf16.gmra.mrb[0].mxu0 %v1973
        %v2306 = vpop.f32.mrb[0].mxu0
        %v2307 = vadd.f32 %v1998, %v2306
        %v2308 = vpop.f32.mrb[0].mxu0
        %v2309 = vpop.f32.mrb[0].mxu0
        %v2310 = vadd.f32 %v1998, %v2309
        %v2311 = vpop.f32.mrb[0].mxu0
        %2312 = vmatprep.mubr.bf16.mxu0 0
        %2313 = vmatmul.mubr.bf16.gmra.mrb[0].mxu0 %v1974
        %v2314 = vpop.f32.mrb[0].mxu0
        %v2315 = vadd.f32 %v1998, %v2314
        %v2316 = vpop.f32.mrb[0].mxu0
        %v2317 = vpop.f32.mrb[0].mxu0
        %v2318 = vadd.f32 %v1998, %v2317
        %v2319 = vpop.f32.mrb[0].mxu0
        %2320 = vmatprep.mubr.bf16.mxu0 0
        %2321 = vmatmul.mubr.bf16.gmra.mrb[0].mxu0 %v1975
        %v2322 = vpop.f32.mrb[0].mxu0
        %v2323 = vadd.f32 %v1998, %v2322
        %v2324 = vpop.f32.mrb[0].mxu0
        %v2325 = vpop.f32.mrb[0].mxu0
        %v2326 = vadd.f32 %v1998, %v2325
        %v2327 = vpop.f32.mrb[0].mxu0
        %2328 = vmatprep.mubr.bf16.mxu0 0
        %2329 = vmatmul.mubr.bf16.gmra.mrb[0].mxu0 %v1976
        %v2330 = vpop.f32.mrb[0].mxu0
        %v2331 = vadd.f32 %v1998, %v2330
        %v2332 = vpop.f32.mrb[0].mxu0
        %v2333 = vpop.f32.mrb[0].mxu0
        %v2334 = vadd.f32 %v1998, %v2333
        %v2335 = vpop.f32.mrb[0].mxu0
        %2336 = vdwg.mxu0
        %v2337 = vmul.f32 %v2083, 0.5
        %v2338 = vmul.f32 %v2086, 0.5
        %v2339 = vmul.f32 %v2091, 0.5
        %v2340 = vmul.f32 %v2094, 0.5
        %v2341 = vmul.f32 %v2099, 0.5
        %v2342 = vmul.f32 %v2102, 0.5
        %v2343 = vmul.f32 %v2107, 0.5
        %v2344 = vmul.f32 %v2110, 0.5
        %v2345 = vmul.f32 %v2115, 0.5
        %v2346 = vmul.f32 %v2118, 0.5
        %v2347 = vmul.f32 %v2123, 0.5
        %v2348 = vmul.f32 %v2126, 0.5
        %v2349 = vmul.f32 %v2131, 0.5
        %v2350 = vmul.f32 %v2134, 0.5
        %v2351 = vmul.f32 %v2139, 0.5
        %v2352 = vmul.f32 %v2142, 0.5
        %v2353 = vmul.f32 %v2147, 0.5
        %v2354 = vmul.f32 %v2150, 0.5
        %v2355 = vmul.f32 %v2155, 0.5
        %v2356 = vmul.f32 %v2158, 0.5
        %v2357 = vmul.f32 %v2163, 0.5
        %v2358 = vmul.f32 %v2166, 0.5
        %v2359 = vmul.f32 %v2171, 0.5
        %v2360 = vmul.f32 %v2174, 0.5
        %v2361 = vmul.f32 %v2179, 0.5
        %v2362 = vmul.f32 %v2182, 0.5
        %v2363 = vmul.f32 %v2187, 0.5
        %v2364 = vmul.f32 %v2190, 0.5
        %v2365 = vmul.f32 %v2195, 0.5
        %v2366 = vmul.f32 %v2198, 0.5
        %v2367 = vmul.f32 %v2203, 0.5
        %v2368 = vmul.f32 %v2206, 0.5
        %v2369 = vmul.f32 %v2211, 0.5
        %v2370 = vmul.f32 %v2214, 0.5
        %v2371 = vmul.f32 %v2219, 0.5
        %v2372 = vmul.f32 %v2222, 0.5
        %v2373 = vmul.f32 %v2227, 0.5
        %v2374 = vmul.f32 %v2230, 0.5
        %v2375 = vmul.f32 %v2235, 0.5
        %v2376 = vmul.f32 %v2238, 0.5
        %v2377 = vmul.f32 %v2243, 0.5
        %v2378 = vmul.f32 %v2246, 0.5
        %v2379 = vmul.f32 %v2251, 0.5
        %v2380 = vmul.f32 %v2254, 0.5
        %v2381 = vmul.f32 %v2259, 0.5
        %v2382 = vmul.f32 %v2262, 0.5
        %v2383 = vmul.f32 %v2267, 0.5
        %v2384 = vmul.f32 %v2270, 0.5
        %v2385 = vmul.f32 %v2275, 0.5
        %v2386 = vmul.f32 %v2278, 0.5
        %v2387 = vmul.f32 %v2283, 0.5
        %v2388 = vmul.f32 %v2286, 0.5
        %v2389 = vmul.f32 %v2291, 0.5
        %v2390 = vmul.f32 %v2294, 0.5
        %v2391 = vmul.f32 %v2299, 0.5
        %v2392 = vmul.f32 %v2302, 0.5
        %v2393 = vmul.f32 %v2307, 0.5
        %v2394 = vmul.f32 %v2310, 0.5
        %v2395 = vmul.f32 %v2315, 0.5
        %v2396 = vmul.f32 %v2318, 0.5
        %v2397 = vmul.f32 %v2323, 0.5
        %v2398 = vmul.f32 %v2326, 0.5
        %v2399 = vmul.f32 %v2331, 0.5
        %v2400 = vmul.f32 %v2334, 0.5
        %v2401 = vmul.f32 %v2083, 0.70710677
        %v2402 = vmul.f32 %v2086, 0.70710677
        %v2403 = vmul.f32 %v2091, 0.70710677
        %v2404 = vmul.f32 %v2094, 0.70710677
        %v2405 = vmul.f32 %v2099, 0.70710677
        %v2406 = vmul.f32 %v2102, 0.70710677
        %v2407 = vmul.f32 %v2107, 0.70710677
        %v2408 = vmul.f32 %v2110, 0.70710677
        %v2409 = vmul.f32 %v2115, 0.70710677
        %v2410 = vmul.f32 %v2118, 0.70710677
        %v2411 = vmul.f32 %v2123, 0.70710677
        %v2412 = vmul.f32 %v2126, 0.70710677
        %v2413 = vmul.f32 %v2131, 0.70710677
        %v2414 = vmul.f32 %v2134, 0.70710677
        %v2415 = vmul.f32 %v2139, 0.70710677
        %v2416 = vmul.f32 %v2142, 0.70710677
        %v2417 = vmul.f32 %v2147, 0.70710677
        %v2418 = vmul.f32 %v2150, 0.70710677
        %v2419 = vmul.f32 %v2155, 0.70710677
        %v2420 = vmul.f32 %v2158, 0.70710677
        %v2421 = vmul.f32 %v2163, 0.70710677
        %v2422 = vmul.f32 %v2166, 0.70710677
        %v2423 = vmul.f32 %v2171, 0.70710677
        %v2424 = vmul.f32 %v2174, 0.70710677
        %v2425 = vmul.f32 %v2179, 0.70710677
        %v2426 = vmul.f32 %v2182, 0.70710677
        %v2427 = vmul.f32 %v2187, 0.70710677
        %v2428 = vmul.f32 %v2190, 0.70710677
        %v2429 = vmul.f32 %v2195, 0.70710677
        %v2430 = vmul.f32 %v2198, 0.70710677
        %v2431 = vmul.f32 %v2203, 0.70710677
        %v2432 = vmul.f32 %v2206, 0.70710677
        %v2433 = vmul.f32 %v2211, 0.70710677
        %v2434 = vmul.f32 %v2214, 0.70710677
        %v2435 = vmul.f32 %v2219, 0.70710677
        %v2436 = vmul.f32 %v2222, 0.70710677
        %v2437 = vmul.f32 %v2227, 0.70710677
        %v2438 = vmul.f32 %v2230, 0.70710677
        %v2439 = vmul.f32 %v2235, 0.70710677
        %v2440 = vmul.f32 %v2238, 0.70710677
        %v2441 = vmul.f32 %v2243, 0.70710677
        %v2442 = vmul.f32 %v2246, 0.70710677
        %v2443 = vmul.f32 %v2251, 0.70710677
        %v2444 = vmul.f32 %v2254, 0.70710677
        %v2445 = vmul.f32 %v2259, 0.70710677
        %v2446 = vmul.f32 %v2262, 0.70710677
        %v2447 = vmul.f32 %v2267, 0.70710677
        %v2448 = vmul.f32 %v2270, 0.70710677
        %v2449 = vmul.f32 %v2275, 0.70710677
        %v2450 = vmul.f32 %v2278, 0.70710677
        %v2451 = vmul.f32 %v2283, 0.70710677
        %v2452 = vmul.f32 %v2286, 0.70710677
        %v2453 = vmul.f32 %v2291, 0.70710677
        %v2454 = vmul.f32 %v2294, 0.70710677
        %v2455 = vmul.f32 %v2299, 0.70710677
        %v2456 = vmul.f32 %v2302, 0.70710677
        %v2457 = vmul.f32 %v2307, 0.70710677
        %v2458 = vmul.f32 %v2310, 0.70710677
        %v2459 = vmul.f32 %v2315, 0.70710677
        %v2460 = vmul.f32 %v2318, 0.70710677
        %v2461 = vmul.f32 %v2323, 0.70710677
        %v2462 = vmul.f32 %v2326, 0.70710677
        %v2463 = vmul.f32 %v2331, 0.70710677
        %v2464 = vmul.f32 %v2334, 0.70710677
        %v2465 = verf.f32.pop %v2401
        %v2466 = verf.f32.pop %v2402
        %v2467 = verf.f32.pop %v2403
        %v2468 = verf.f32.pop %v2404
        %v2469 = verf.f32.pop %v2405
        %v2470 = verf.f32.pop %v2406
        %v2471 = verf.f32.pop %v2407
        %v2472 = verf.f32.pop %v2408
        %v2473 = verf.f32.pop %v2409
        %v2474 = verf.f32.pop %v2410
        %v2475 = verf.f32.pop %v2411
        %v2476 = verf.f32.pop %v2412
        %v2477 = verf.f32.pop %v2413
        %v2478 = verf.f32.pop %v2414
        %v2479 = verf.f32.pop %v2415
        %v2480 = verf.f32.pop %v2416
        %v2481 = verf.f32.pop %v2417
        %v2482 = verf.f32.pop %v2418
        %v2483 = verf.f32.pop %v2419
        %v2484 = verf.f32.pop %v2420
        %v2485 = verf.f32.pop %v2421
        %v2486 = verf.f32.pop %v2422
        %v2487 = verf.f32.pop %v2423
        %v2488 = verf.f32.pop %v2424
        %v2489 = verf.f32.pop %v2425
        %v2490 = verf.f32.pop %v2426
        %v2491 = verf.f32.pop %v2427
        %v2492 = verf.f32.pop %v2428
        %v2493 = verf.f32.pop %v2429
        %v2494 = verf.f32.pop %v2430
        %v2495 = verf.f32.pop %v2431
        %v2496 = verf.f32.pop %v2432
        %v2497 = verf.f32.pop %v2433
        %v2498 = verf.f32.pop %v2434
        %v2499 = verf.f32.pop %v2435
        %v2500 = verf.f32.pop %v2436
        %v2501 = verf.f32.pop %v2437
        %v2502 = verf.f32.pop %v2438
        %v2503 = verf.f32.pop %v2439
        %v2504 = verf.f32.pop %v2440
        %v2505 = verf.f32.pop %v2441
        %v2506 = verf.f32.pop %v2442
        %v2507 = verf.f32.pop %v2443
        %v2508 = verf.f32.pop %v2444
        %v2509 = verf.f32.pop %v2445
        %v2510 = verf.f32.pop %v2446
        %v2511 = verf.f32.pop %v2447
        %v2512 = verf.f32.pop %v2448
        %v2513 = verf.f32.pop %v2449
        %v2514 = verf.f32.pop %v2450
        %v2515 = verf.f32.pop %v2451
        %v2516 = verf.f32.pop %v2452
        %v2517 = verf.f32.pop %v2453
        %v2518 = verf.f32.pop %v2454
        %v2519 = verf.f32.pop %v2455
        %v2520 = verf.f32.pop %v2456
        %v2521 = verf.f32.pop %v2457
        %v2522 = verf.f32.pop %v2458
        %v2523 = verf.f32.pop %v2459
        %v2524 = verf.f32.pop %v2460
        %v2525 = verf.f32.pop %v2461
        %v2526 = verf.f32.pop %v2462
        %v2527 = verf.f32.pop %v2463
        %v2528 = verf.f32.pop %v2464
        %v2529 = vadd.f32 %v2465, 1.0
        %v2530 = vadd.f32 %v2466, 1.0
        %v2531 = vadd.f32 %v2467, 1.0
        %v2532 = vadd.f32 %v2468, 1.0
        %v2533 = vadd.f32 %v2469, 1.0
        %v2534 = vadd.f32 %v2470, 1.0
        %v2535 = vadd.f32 %v2471, 1.0
        %v2536 = vadd.f32 %v2472, 1.0
        %v2537 = vadd.f32 %v2473, 1.0
        %v2538 = vadd.f32 %v2474, 1.0
        %v2539 = vadd.f32 %v2475, 1.0
        %v2540 = vadd.f32 %v2476, 1.0
        %v2541 = vadd.f32 %v2477, 1.0
        %v2542 = vadd.f32 %v2478, 1.0
        %v2543 = vadd.f32 %v2479, 1.0
        %v2544 = vadd.f32 %v2480, 1.0
        %v2545 = vadd.f32 %v2481, 1.0
        %v2546 = vadd.f32 %v2482, 1.0
        %v2547 = vadd.f32 %v2483, 1.0
        %v2548 = vadd.f32 %v2484, 1.0
        %v2549 = vadd.f32 %v2485, 1.0
        %v2550 = vadd.f32 %v2486, 1.0
        %v2551 = vadd.f32 %v2487, 1.0
        %v2552 = vadd.f32 %v2488, 1.0
        %v2553 = vadd.f32 %v2489, 1.0
        %v2554 = vadd.f32 %v2490, 1.0
        %v2555 = vadd.f32 %v2491, 1.0
        %v2556 = vadd.f32 %v2492, 1.0
        %v2557 = vadd.f32 %v2493, 1.0
        %v2558 = vadd.f32 %v2494, 1.0
        %v2559 = vadd.f32 %v2495, 1.0
        %v2560 = vadd.f32 %v2496, 1.0
        %v2561 = vadd.f32 %v2497, 1.0
        %v2562 = vadd.f32 %v2498, 1.0
        %v2563 = vadd.f32 %v2499, 1.0
        %v2564 = vadd.f32 %v2500, 1.0
        %v2565 = vadd.f32 %v2501, 1.0
        %v2566 = vadd.f32 %v2502, 1.0
        %v2567 = vadd.f32 %v2503, 1.0
        %v2568 = vadd.f32 %v2504, 1.0
        %v2569 = vadd.f32 %v2505, 1.0
        %v2570 = vadd.f32 %v2506, 1.0
        %v2571 = vadd.f32 %v2507, 1.0
        %v2572 = vadd.f32 %v2508, 1.0
        %v2573 = vadd.f32 %v2509, 1.0
        %v2574 = vadd.f32 %v2510, 1.0
        %v2575 = vadd.f32 %v2511, 1.0
        %v2576 = vadd.f32 %v2512, 1.0
        %v2577 = vadd.f32 %v2513, 1.0
        %v2578 = vadd.f32 %v2514, 1.0
        %v2579 = vadd.f32 %v2515, 1.0
        %v2580 = vadd.f32 %v2516, 1.0
        %v2581 = vadd.f32 %v2517, 1.0
        %v2582 = vadd.f32 %v2518, 1.0
        %v2583 = vadd.f32 %v2519, 1.0
        %v2584 = vadd.f32 %v2520, 1.0
        %v2585 = vadd.f32 %v2521, 1.0
        %v2586 = vadd.f32 %v2522, 1.0
        %v2587 = vadd.f32 %v2523, 1.0
        %v2588 = vadd.f32 %v2524, 1.0
        %v2589 = vadd.f32 %v2525, 1.0
        %v2590 = vadd.f32 %v2526, 1.0
        %v2591 = vadd.f32 %v2527, 1.0
        %v2592 = vadd.f32 %v2528, 1.0
        %v2593 = vmul.f32 %v2337, %v2529
        %v2594 = vmul.f32 %v2338, %v2530
        %v2595 = vmul.f32 %v2339, %v2531
        %v2596 = vmul.f32 %v2340, %v2532
        %v2597 = vmul.f32 %v2341, %v2533
        %v2598 = vmul.f32 %v2342, %v2534
        %v2599 = vmul.f32 %v2343, %v2535
        %v2600 = vmul.f32 %v2344, %v2536
        %v2601 = vmul.f32 %v2345, %v2537
        %v2602 = vmul.f32 %v2346, %v2538
        %v2603 = vmul.f32 %v2347, %v2539
        %v2604 = vmul.f32 %v2348, %v2540
        %v2605 = vmul.f32 %v2349, %v2541
        %v2606 = vmul.f32 %v2350, %v2542
        %v2607 = vmul.f32 %v2351, %v2543
        %v2608 = vmul.f32 %v2352, %v2544
        %v2609 = vmul.f32 %v2353, %v2545
        %v2610 = vmul.f32 %v2354, %v2546
        %v2611 = vmul.f32 %v2355, %v2547
        %v2612 = vmul.f32 %v2356, %v2548
        %v2613 = vmul.f32 %v2357, %v2549
        %v2614 = vmul.f32 %v2358, %v2550
        %v2615 = vmul.f32 %v2359, %v2551
        %v2616 = vmul.f32 %v2360, %v2552
        %v2617 = vmul.f32 %v2361, %v2553
        %v2618 = vmul.f32 %v2362, %v2554
        %v2619 = vmul.f32 %v2363, %v2555
        %v2620 = vmul.f32 %v2364, %v2556
        %v2621 = vmul.f32 %v2365, %v2557
        %v2622 = vmul.f32 %v2366, %v2558
        %v2623 = vmul.f32 %v2367, %v2559
        %v2624 = vmul.f32 %v2368, %v2560
        %v2625 = vmul.f32 %v2369, %v2561
        %v2626 = vmul.f32 %v2370, %v2562
        %v2627 = vmul.f32 %v2371, %v2563
        %v2628 = vmul.f32 %v2372, %v2564
        %v2629 = vmul.f32 %v2373, %v2565
        %v2630 = vmul.f32 %v2374, %v2566
        %v2631 = vmul.f32 %v2375, %v2567
        %v2632 = vmul.f32 %v2376, %v2568
        %v2633 = vmul.f32 %v2377, %v2569
        %v2634 = vmul.f32 %v2378, %v2570
        %v2635 = vmul.f32 %v2379, %v2571
        %v2636 = vmul.f32 %v2380, %v2572
        %v2637 = vmul.f32 %v2381, %v2573
        %v2638 = vmul.f32 %v2382, %v2574
        %v2639 = vmul.f32 %v2383, %v2575
        %v2640 = vmul.f32 %v2384, %v2576
        %v2641 = vmul.f32 %v2385, %v2577
        %v2642 = vmul.f32 %v2386, %v2578
        %v2643 = vmul.f32 %v2387, %v2579
        %v2644 = vmul.f32 %v2388, %v2580
        %v2645 = vmul.f32 %v2389, %v2581
        %v2646 = vmul.f32 %v2390, %v2582
        %v2647 = vmul.f32 %v2391, %v2583
        %v2648 = vmul.f32 %v2392, %v2584
        %v2649 = vmul.f32 %v2393, %v2585
        %v2650 = vmul.f32 %v2394, %v2586
        %v2651 = vmul.f32 %v2395, %v2587
        %v2652 = vmul.f32 %v2396, %v2588
        %v2653 = vmul.f32 %v2397, %v2589
        %v2654 = vmul.f32 %v2398, %v2590
        %v2655 = vmul.f32 %v2399, %v2591
        %v2656 = vmul.f32 %v2400, %v2592
        %v2657 = vld [vmem:[%s9] sm:$0x1]
        %v2659 = vlaneseq
        %v2660 = vshrl.u32 %v2659, 7
        %v2661 = vsub.s32 0, %v2660
        %v2662 = vrot.slane %v2657, %v2661
        %v2664 = vmul.f32 %v2593, %v2662
        %v2665 = vmul.f32 %v2594, %v2662
        %v2666 = vmul.f32 %v2595, %v2662
        %v2667 = vmul.f32 %v2596, %v2662
        %v2668 = vmul.f32 %v2597, %v2662
        %v2669 = vmul.f32 %v2598, %v2662
        %v2670 = vmul.f32 %v2599, %v2662
        %v2671 = vmul.f32 %v2600, %v2662
        %v2672 = vmul.f32 %v2601, %v2662
        %v2673 = vmul.f32 %v2602, %v2662
        %v2674 = vmul.f32 %v2603, %v2662
        %v2675 = vmul.f32 %v2604, %v2662
        %v2676 = vmul.f32 %v2605, %v2662
        %v2677 = vmul.f32 %v2606, %v2662
        %v2678 = vmul.f32 %v2607, %v2662
        %v2679 = vmul.f32 %v2608, %v2662
        %v2680 = vmul.f32 %v2609, %v2662
        %v2681 = vmul.f32 %v2610, %v2662
        %v2682 = vmul.f32 %v2611, %v2662
        %v2683 = vmul.f32 %v2612, %v2662
        %v2684 = vmul.f32 %v2613, %v2662
        %v2685 = vmul.f32 %v2614, %v2662
        %v2686 = vmul.f32 %v2615, %v2662
        %v2687 = vmul.f32 %v2616, %v2662
        %v2688 = vmul.f32 %v2617, %v2662
        %v2689 = vmul.f32 %v2618, %v2662
        %v2690 = vmul.f32 %v2619, %v2662
        %v2691 = vmul.f32 %v2620, %v2662
        %v2692 = vmul.f32 %v2621, %v2662
        %v2693 = vmul.f32 %v2622, %v2662
        %v2694 = vmul.f32 %v2623, %v2662
        %v2695 = vmul.f32 %v2624, %v2662
        %v2696 = vmul.f32 %v2625, %v2662
        %v2697 = vmul.f32 %v2626, %v2662
        %v2698 = vmul.f32 %v2627, %v2662
        %v2699 = vmul.f32 %v2628, %v2662
        %v2700 = vmul.f32 %v2629, %v2662
        %v2701 = vmul.f32 %v2630, %v2662
        %v2702 = vmul.f32 %v2631, %v2662
        %v2703 = vmul.f32 %v2632, %v2662
        %v2704 = vmul.f32 %v2633, %v2662
        %v2705 = vmul.f32 %v2634, %v2662
        %v2706 = vmul.f32 %v2635, %v2662
        %v2707 = vmul.f32 %v2636, %v2662
        %v2708 = vmul.f32 %v2637, %v2662
        %v2709 = vmul.f32 %v2638, %v2662
        %v2710 = vmul.f32 %v2639, %v2662
        %v2711 = vmul.f32 %v2640, %v2662
        %v2712 = vmul.f32 %v2641, %v2662
        %v2713 = vmul.f32 %v2642, %v2662
        %v2714 = vmul.f32 %v2643, %v2662
        %v2715 = vmul.f32 %v2644, %v2662
        %v2716 = vmul.f32 %v2645, %v2662
        %v2717 = vmul.f32 %v2646, %v2662
        %v2718 = vmul.f32 %v2647, %v2662
        %v2719 = vmul.f32 %v2648, %v2662
        %v2720 = vmul.f32 %v2649, %v2662
        %v2721 = vmul.f32 %v2650, %v2662
        %v2722 = vmul.f32 %v2651, %v2662
        %v2723 = vmul.f32 %v2652, %v2662
        %v2724 = vmul.f32 %v2653, %v2662
        %v2725 = vmul.f32 %v2654, %v2662
        %v2726 = vmul.f32 %v2655, %v2662
        %v2727 = vmul.f32 %v2656, %v2662
        %2728 = vadd.xlane.f32.xlu0 %v2664
        %v2729 = vpop.xlane.xlu0 %2728
        %2730 = vadd.xlane.f32.xlu0 %v2665
        %v2731 = vpop.xlane.xlu0 %2730
        %2732 = vadd.xlane.f32.xlu0 %v2666
        %v2733 = vpop.xlane.xlu0 %2732
        %2734 = vadd.xlane.f32.xlu0 %v2667
        %v2735 = vpop.xlane.xlu0 %2734
        %2736 = vadd.xlane.f32.xlu0 %v2668
        %v2737 = vpop.xlane.xlu0 %2736
        %2738 = vadd.xlane.f32.xlu0 %v2669
        %v2739 = vpop.xlane.xlu0 %2738
        %2740 = vadd.xlane.f32.xlu0 %v2670
        %v2741 = vpop.xlane.xlu0 %2740
        %2742 = vadd.xlane.f32.xlu0 %v2671
        %v2743 = vpop.xlane.xlu0 %2742
        %2744 = vadd.xlane.f32.xlu0 %v2672
        %v2745 = vpop.xlane.xlu0 %2744
        %2746 = vadd.xlane.f32.xlu0 %v2673
        %v2747 = vpop.xlane.xlu0 %2746
        %2748 = vadd.xlane.f32.xlu0 %v2674
        %v2749 = vpop.xlane.xlu0 %2748
        %2750 = vadd.xlane.f32.xlu0 %v2675
        %v2751 = vpop.xlane.xlu0 %2750
        %2752 = vadd.xlane.f32.xlu0 %v2676
        %v2753 = vpop.xlane.xlu0 %2752
        %2754 = vadd.xlane.f32.xlu0 %v2677
        %v2755 = vpop.xlane.xlu0 %2754
        %2756 = vadd.xlane.f32.xlu0 %v2678
        %v2757 = vpop.xlane.xlu0 %2756
        %2758 = vadd.xlane.f32.xlu0 %v2679
        %v2759 = vpop.xlane.xlu0 %2758
        %2760 = vadd.xlane.f32.xlu0 %v2680
        %v2761 = vpop.xlane.xlu0 %2760
        %2762 = vadd.xlane.f32.xlu0 %v2681
        %v2763 = vpop.xlane.xlu0 %2762
        %2764 = vadd.xlane.f32.xlu0 %v2682
        %v2765 = vpop.xlane.xlu0 %2764
        %2766 = vadd.xlane.f32.xlu0 %v2683
        %v2767 = vpop.xlane.xlu0 %2766
        %2768 = vadd.xlane.f32.xlu0 %v2684
        %v2769 = vpop.xlane.xlu0 %2768
        %2770 = vadd.xlane.f32.xlu0 %v2685
        %v2771 = vpop.xlane.xlu0 %2770
        %2772 = vadd.xlane.f32.xlu0 %v2686
        %v2773 = vpop.xlane.xlu0 %2772
        %2774 = vadd.xlane.f32.xlu0 %v2687
        %v2775 = vpop.xlane.xlu0 %2774
        %2776 = vadd.xlane.f32.xlu0 %v2688
        %v2777 = vpop.xlane.xlu0 %2776
        %2778 = vadd.xlane.f32.xlu0 %v2689
        %v2779 = vpop.xlane.xlu0 %2778
        %2780 = vadd.xlane.f32.xlu0 %v2690
        %v2781 = vpop.xlane.xlu0 %2780
        %2782 = vadd.xlane.f32.xlu0 %v2691
        %v2783 = vpop.xlane.xlu0 %2782
        %2784 = vadd.xlane.f32.xlu0 %v2692
        %v2785 = vpop.xlane.xlu0 %2784
        %2786 = vadd.xlane.f32.xlu0 %v2693
        %v2787 = vpop.xlane.xlu0 %2786
        %2788 = vadd.xlane.f32.xlu0 %v2694
        %v2789 = vpop.xlane.xlu0 %2788
        %2790 = vadd.xlane.f32.xlu0 %v2695
        %v2791 = vpop.xlane.xlu0 %2790
        %2792 = vadd.xlane.f32.xlu0 %v2696
        %v2793 = vpop.xlane.xlu0 %2792
        %2794 = vadd.xlane.f32.xlu0 %v2697
        %v2795 = vpop.xlane.xlu0 %2794
        %2796 = vadd.xlane.f32.xlu0 %v2698
        %v2797 = vpop.xlane.xlu0 %2796
        %2798 = vadd.xlane.f32.xlu0 %v2699
        %v2799 = vpop.xlane.xlu0 %2798
        %2800 = vadd.xlane.f32.xlu0 %v2700
        %v2801 = vpop.xlane.xlu0 %2800
        %2802 = vadd.xlane.f32.xlu0 %v2701
        %v2803 = vpop.xlane.xlu0 %2802
        %2804 = vadd.xlane.f32.xlu0 %v2702
        %v2805 = vpop.xlane.xlu0 %2804
        %2806 = vadd.xlane.f32.xlu0 %v2703
        %v2807 = vpop.xlane.xlu0 %2806
        %2808 = vadd.xlane.f32.xlu0 %v2704
        %v2809 = vpop.xlane.xlu0 %2808
        %2810 = vadd.xlane.f32.xlu0 %v2705
        %v2811 = vpop.xlane.xlu0 %2810
        %2812 = vadd.xlane.f32.xlu0 %v2706
        %v2813 = vpop.xlane.xlu0 %2812
        %2814 = vadd.xlane.f32.xlu0 %v2707
        %v2815 = vpop.xlane.xlu0 %2814
        %2816 = vadd.xlane.f32.xlu0 %v2708
        %v2817 = vpop.xlane.xlu0 %2816
        %2818 = vadd.xlane.f32.xlu0 %v2709
        %v2819 = vpop.xlane.xlu0 %2818
        %2820 = vadd.xlane.f32.xlu0 %v2710
        %v2821 = vpop.xlane.xlu0 %2820
        %2822 = vadd.xlane.f32.xlu0 %v2711
        %v2823 = vpop.xlane.xlu0 %2822
        %2824 = vadd.xlane.f32.xlu0 %v2712
        %v2825 = vpop.xlane.xlu0 %2824
        %2826 = vadd.xlane.f32.xlu0 %v2713
        %v2827 = vpop.xlane.xlu0 %2826
        %2828 = vadd.xlane.f32.xlu0 %v2714
        %v2829 = vpop.xlane.xlu0 %2828
        %2830 = vadd.xlane.f32.xlu0 %v2715
        %v2831 = vpop.xlane.xlu0 %2830
        %2832 = vadd.xlane.f32.xlu0 %v2716
        %v2833 = vpop.xlane.xlu0 %2832
        %2834 = vadd.xlane.f32.xlu0 %v2717
        %v2835 = vpop.xlane.xlu0 %2834
        %2836 = vadd.xlane.f32.xlu0 %v2718
        %v2837 = vpop.xlane.xlu0 %2836
        %2838 = vadd.xlane.f32.xlu0 %v2719
        %v2839 = vpop.xlane.xlu0 %2838
        %2840 = vadd.xlane.f32.xlu0 %v2720
        %v2841 = vpop.xlane.xlu0 %2840
        %2842 = vadd.xlane.f32.xlu0 %v2721
        %v2843 = vpop.xlane.xlu0 %2842
        %2844 = vadd.xlane.f32.xlu0 %v2722
        %v2845 = vpop.xlane.xlu0 %2844
        %2846 = vadd.xlane.f32.xlu0 %v2723
        %v2847 = vpop.xlane.xlu0 %2846
        %2848 = vadd.xlane.f32.xlu0 %v2724
        %v2849 = vpop.xlane.xlu0 %2848
        %2850 = vadd.xlane.f32.xlu0 %v2725
        %v2851 = vpop.xlane.xlu0 %2850
        %2852 = vadd.xlane.f32.xlu0 %v2726
        %v2853 = vpop.xlane.xlu0 %2852
        %2854 = vadd.xlane.f32.xlu0 %v2727
        %v2855 = vpop.xlane.xlu0 %2854
        %v2856 = vstv %s1872
        %v2857 = vadd.f32 %v2729, %v2856
        %v2858 = vadd.f32 %v2731, %v2856
        %v2859 = vadd.f32 %v2733, %v2856
        %v2860 = vadd.f32 %v2735, %v2856
        %v2861 = vadd.f32 %v2737, %v2856
        %v2862 = vadd.f32 %v2739, %v2856
        %v2863 = vadd.f32 %v2741, %v2856
        %v2864 = vadd.f32 %v2743, %v2856
        %v2865 = vadd.f32 %v2745, %v2856
        %v2866 = vadd.f32 %v2747, %v2856
        %v2867 = vadd.f32 %v2749, %v2856
        %v2868 = vadd.f32 %v2751, %v2856
        %v2869 = vadd.f32 %v2753, %v2856
        %v2870 = vadd.f32 %v2755, %v2856
        %v2871 = vadd.f32 %v2757, %v2856
        %v2872 = vadd.f32 %v2759, %v2856
        %v2873 = vadd.f32 %v2761, %v2856
        %v2874 = vadd.f32 %v2763, %v2856
        %v2875 = vadd.f32 %v2765, %v2856
        %v2876 = vadd.f32 %v2767, %v2856
        %v2877 = vadd.f32 %v2769, %v2856
        %v2878 = vadd.f32 %v2771, %v2856
        %v2879 = vadd.f32 %v2773, %v2856
        %v2880 = vadd.f32 %v2775, %v2856
        %v2881 = vadd.f32 %v2777, %v2856
        %v2882 = vadd.f32 %v2779, %v2856
        %v2883 = vadd.f32 %v2781, %v2856
        %v2884 = vadd.f32 %v2783, %v2856
        %v2885 = vadd.f32 %v2785, %v2856
        %v2886 = vadd.f32 %v2787, %v2856
        %v2887 = vadd.f32 %v2789, %v2856
        %v2888 = vadd.f32 %v2791, %v2856
        %v2889 = vadd.f32 %v2793, %v2856
        %v2890 = vadd.f32 %v2795, %v2856
        %v2891 = vadd.f32 %v2797, %v2856
        %v2892 = vadd.f32 %v2799, %v2856
        %v2893 = vadd.f32 %v2801, %v2856
        %v2894 = vadd.f32 %v2803, %v2856
        %v2895 = vadd.f32 %v2805, %v2856
        %v2896 = vadd.f32 %v2807, %v2856
        %v2897 = vadd.f32 %v2809, %v2856
        %v2898 = vadd.f32 %v2811, %v2856
        %v2899 = vadd.f32 %v2813, %v2856
        %v2900 = vadd.f32 %v2815, %v2856
        %v2901 = vadd.f32 %v2817, %v2856
        %v2902 = vadd.f32 %v2819, %v2856
        %v2903 = vadd.f32 %v2821, %v2856
        %v2904 = vadd.f32 %v2823, %v2856
        %v2905 = vadd.f32 %v2825, %v2856
        %v2906 = vadd.f32 %v2827, %v2856
        %v2907 = vadd.f32 %v2829, %v2856
        %v2908 = vadd.f32 %v2831, %v2856
        %v2909 = vadd.f32 %v2833, %v2856
        %v2910 = vadd.f32 %v2835, %v2856
        %v2911 = vadd.f32 %v2837, %v2856
        %v2912 = vadd.f32 %v2839, %v2856
        %v2913 = vadd.f32 %v2841, %v2856
        %v2914 = vadd.f32 %v2843, %v2856
        %v2915 = vadd.f32 %v2845, %v2856
        %v2916 = vadd.f32 %v2847, %v2856
        %v2917 = vadd.f32 %v2849, %v2856
        %v2918 = vadd.f32 %v2851, %v2856
        %v2919 = vadd.f32 %v2853, %v2856
        %v2920 = vadd.f32 %v2855, %v2856
        %v2921 = vsub.f32 0.0, %v2857
        %v2922 = vsub.f32 0.0, %v2858
        %v2923 = vsub.f32 0.0, %v2859
        %v2924 = vsub.f32 0.0, %v2860
        %v2925 = vsub.f32 0.0, %v2861
        %v2926 = vsub.f32 0.0, %v2862
        %v2927 = vsub.f32 0.0, %v2863
        %v2928 = vsub.f32 0.0, %v2864
        %v2929 = vsub.f32 0.0, %v2865
        %v2930 = vsub.f32 0.0, %v2866
        %v2931 = vsub.f32 0.0, %v2867
        %v2932 = vsub.f32 0.0, %v2868
        %v2933 = vsub.f32 0.0, %v2869
        %v2934 = vsub.f32 0.0, %v2870
        %v2935 = vsub.f32 0.0, %v2871
        %v2936 = vsub.f32 0.0, %v2872
        %v2937 = vsub.f32 0.0, %v2873
        %v2938 = vsub.f32 0.0, %v2874
        %v2939 = vsub.f32 0.0, %v2875
        %v2940 = vsub.f32 0.0, %v2876
        %v2941 = vsub.f32 0.0, %v2877
        %v2942 = vsub.f32 0.0, %v2878
        %v2943 = vsub.f32 0.0, %v2879
        %v2944 = vsub.f32 0.0, %v2880
        %v2945 = vsub.f32 0.0, %v2881
        %v2946 = vsub.f32 0.0, %v2882
        %v2947 = vsub.f32 0.0, %v2883
        %v2948 = vsub.f32 0.0, %v2884
        %v2949 = vsub.f32 0.0, %v2885
        %v2950 = vsub.f32 0.0, %v2886
        %v2951 = vsub.f32 0.0, %v2887
        %v2952 = vsub.f32 0.0, %v2888
        %v2953 = vsub.f32 0.0, %v2889
        %v2954 = vsub.f32 0.0, %v2890
        %v2955 = vsub.f32 0.0, %v2891
        %v2956 = vsub.f32 0.0, %v2892
        %v2957 = vsub.f32 0.0, %v2893
        %v2958 = vsub.f32 0.0, %v2894
        %v2959 = vsub.f32 0.0, %v2895
        %v2960 = vsub.f32 0.0, %v2896
        %v2961 = vsub.f32 0.0, %v2897
        %v2962 = vsub.f32 0.0, %v2898
        %v2963 = vsub.f32 0.0, %v2899
        %v2964 = vsub.f32 0.0, %v2900
        %v2965 = vsub.f32 0.0, %v2901
        %v2966 = vsub.f32 0.0, %v2902
        %v2967 = vsub.f32 0.0, %v2903
        %v2968 = vsub.f32 0.0, %v2904
        %v2969 = vsub.f32 0.0, %v2905
        %v2970 = vsub.f32 0.0, %v2906
        %v2971 = vsub.f32 0.0, %v2907
        %v2972 = vsub.f32 0.0, %v2908
        %v2973 = vsub.f32 0.0, %v2909
        %v2974 = vsub.f32 0.0, %v2910
        %v2975 = vsub.f32 0.0, %v2911
        %v2976 = vsub.f32 0.0, %v2912
        %v2977 = vsub.f32 0.0, %v2913
        %v2978 = vsub.f32 0.0, %v2914
        %v2979 = vsub.f32 0.0, %v2915
        %v2980 = vsub.f32 0.0, %v2916
        %v2981 = vsub.f32 0.0, %v2917
        %v2982 = vsub.f32 0.0, %v2918
        %v2983 = vsub.f32 0.0, %v2919
        %v2984 = vsub.f32 0.0, %v2920
        %v2985 = vmul.f32 %v2921, 1.442695
        %v2986 = vpow.pop %v2985
        %v2987 = vmul.f32 %v2922, 1.442695
        %v2988 = vpow.pop %v2987
        %v2989 = vmul.f32 %v2923, 1.442695
        %v2990 = vpow.pop %v2989
        %v2991 = vmul.f32 %v2924, 1.442695
        %v2992 = vpow.pop %v2991
        %v2993 = vmul.f32 %v2925, 1.442695
        %v2994 = vpow.pop %v2993
        %v2995 = vmul.f32 %v2926, 1.442695
        %v2996 = vpow.pop %v2995
        %v2997 = vmul.f32 %v2927, 1.442695
        %v2998 = vpow.pop %v2997
        %v2999 = vmul.f32 %v2928, 1.442695
        %v3000 = vpow.pop %v2999
        %v3001 = vmul.f32 %v2929, 1.442695
        %v3002 = vpow.pop %v3001
        %v3003 = vmul.f32 %v2930, 1.442695
        %v3004 = vpow.pop %v3003
        %v3005 = vmul.f32 %v2931, 1.442695
        %v3006 = vpow.pop %v3005
        %v3007 = vmul.f32 %v2932, 1.442695
        %v3008 = vpow.pop %v3007
        %v3009 = vmul.f32 %v2933, 1.442695
        %v3010 = vpow.pop %v3009
        %v3011 = vmul.f32 %v2934, 1.442695
        %v3012 = vpow.pop %v3011
        %v3013 = vmul.f32 %v2935, 1.442695
        %v3014 = vpow.pop %v3013
        %v3015 = vmul.f32 %v2936, 1.442695
        %v3016 = vpow.pop %v3015
        %v3017 = vmul.f32 %v2937, 1.442695
        %v3018 = vpow.pop %v3017
        %v3019 = vmul.f32 %v2938, 1.442695
        %v3020 = vpow.pop %v3019
        %v3021 = vmul.f32 %v2939, 1.442695
        %v3022 = vpow.pop %v3021
        %v3023 = vmul.f32 %v2940, 1.442695
        %v3024 = vpow.pop %v3023
        %v3025 = vmul.f32 %v2941, 1.442695
        %v3026 = vpow.pop %v3025
        %v3027 = vmul.f32 %v2942, 1.442695
        %v3028 = vpow.pop %v3027
        %v3029 = vmul.f32 %v2943, 1.442695
        %v3030 = vpow.pop %v3029
        %v3031 = vmul.f32 %v2944, 1.442695
        %v3032 = vpow.pop %v3031
        %v3033 = vmul.f32 %v2945, 1.442695
        %v3034 = vpow.pop %v3033
        %v3035 = vmul.f32 %v2946, 1.442695
        %v3036 = vpow.pop %v3035
        %v3037 = vmul.f32 %v2947, 1.442695
        %v3038 = vpow.pop %v3037
        %v3039 = vmul.f32 %v2948, 1.442695
        %v3040 = vpow.pop %v3039
        %v3041 = vmul.f32 %v2949, 1.442695
        %v3042 = vpow.pop %v3041
        %v3043 = vmul.f32 %v2950, 1.442695
        %v3044 = vpow.pop %v3043
        %v3045 = vmul.f32 %v2951, 1.442695
        %v3046 = vpow.pop %v3045
        %v3047 = vmul.f32 %v2952, 1.442695
        %v3048 = vpow.pop %v3047
        %v3049 = vmul.f32 %v2953, 1.442695
        %v3050 = vpow.pop %v3049
        %v3051 = vmul.f32 %v2954, 1.442695
        %v3052 = vpow.pop %v3051
        %v3053 = vmul.f32 %v2955, 1.442695
        %v3054 = vpow.pop %v3053
        %v3055 = vmul.f32 %v2956, 1.442695
        %v3056 = vpow.pop %v3055
        %v3057 = vmul.f32 %v2957, 1.442695
        %v3058 = vpow.pop %v3057
        %v3059 = vmul.f32 %v2958, 1.442695
        %v3060 = vpow.pop %v3059
        %v3061 = vmul.f32 %v2959, 1.442695
        %v3062 = vpow.pop %v3061
        %v3063 = vmul.f32 %v2960, 1.442695
        %v3064 = vpow.pop %v3063
        %v3065 = vmul.f32 %v2961, 1.442695
        %v3066 = vpow.pop %v3065
        %v3067 = vmul.f32 %v2962, 1.442695
        %v3068 = vpow.pop %v3067
        %v3069 = vmul.f32 %v2963, 1.442695
        %v3070 = vpow.pop %v3069
        %v3071 = vmul.f32 %v2964, 1.442695
        %v3072 = vpow.pop %v3071
        %v3073 = vmul.f32 %v2965, 1.442695
        %v3074 = vpow.pop %v3073
        %v3075 = vmul.f32 %v2966, 1.442695
        %v3076 = vpow.pop %v3075
        %v3077 = vmul.f32 %v2967, 1.442695
        %v3078 = vpow.pop %v3077
        %v3079 = vmul.f32 %v2968, 1.442695
        %v3080 = vpow.pop %v3079
        %v3081 = vmul.f32 %v2969, 1.442695
        %v3082 = vpow.pop %v3081
        %v3083 = vmul.f32 %v2970, 1.442695
        %v3084 = vpow.pop %v3083
        %v3085 = vmul.f32 %v2971, 1.442695
        %v3086 = vpow.pop %v3085
        %v3087 = vmul.f32 %v2972, 1.442695
        %v3088 = vpow.pop %v3087
        %v3089 = vmul.f32 %v2973, 1.442695
        %v3090 = vpow.pop %v3089
        %v3091 = vmul.f32 %v2974, 1.442695
        %v3092 = vpow.pop %v3091
        %v3093 = vmul.f32 %v2975, 1.442695
        %v3094 = vpow.pop %v3093
        %v3095 = vmul.f32 %v2976, 1.442695
        %v3096 = vpow.pop %v3095
        %v3097 = vmul.f32 %v2977, 1.442695
        %v3098 = vpow.pop %v3097
        %v3099 = vmul.f32 %v2978, 1.442695
        %v3100 = vpow.pop %v3099
        %v3101 = vmul.f32 %v2979, 1.442695
        %v3102 = vpow.pop %v3101
        %v3103 = vmul.f32 %v2980, 1.442695
        %v3104 = vpow.pop %v3103
        %v3105 = vmul.f32 %v2981, 1.442695
        %v3106 = vpow.pop %v3105
        %v3107 = vmul.f32 %v2982, 1.442695
        %v3108 = vpow.pop %v3107
        %v3109 = vmul.f32 %v2983, 1.442695
        %v3110 = vpow.pop %v3109
        %v3111 = vmul.f32 %v2984, 1.442695
        %v3112 = vpow.pop %v3111
        %v3113 = vadd.f32 %v2986, 1.0
        %v3114 = vadd.f32 %v2988, 1.0
        %v3115 = vadd.f32 %v2990, 1.0
        %v3116 = vadd.f32 %v2992, 1.0
        %v3117 = vadd.f32 %v2994, 1.0
        %v3118 = vadd.f32 %v2996, 1.0
        %v3119 = vadd.f32 %v2998, 1.0
        %v3120 = vadd.f32 %v3000, 1.0
        %v3121 = vadd.f32 %v3002, 1.0
        %v3122 = vadd.f32 %v3004, 1.0
        %v3123 = vadd.f32 %v3006, 1.0
        %v3124 = vadd.f32 %v3008, 1.0
        %v3125 = vadd.f32 %v3010, 1.0
        %v3126 = vadd.f32 %v3012, 1.0
        %v3127 = vadd.f32 %v3014, 1.0
        %v3128 = vadd.f32 %v3016, 1.0
        %v3129 = vadd.f32 %v3018, 1.0
        %v3130 = vadd.f32 %v3020, 1.0
        %v3131 = vadd.f32 %v3022, 1.0
        %v3132 = vadd.f32 %v3024, 1.0
        %v3133 = vadd.f32 %v3026, 1.0
        %v3134 = vadd.f32 %v3028, 1.0
        %v3135 = vadd.f32 %v3030, 1.0
        %v3136 = vadd.f32 %v3032, 1.0
        %v3137 = vadd.f32 %v3034, 1.0
        %v3138 = vadd.f32 %v3036, 1.0
        %v3139 = vadd.f32 %v3038, 1.0
        %v3140 = vadd.f32 %v3040, 1.0
        %v3141 = vadd.f32 %v3042, 1.0
        %v3142 = vadd.f32 %v3044, 1.0
        %v3143 = vadd.f32 %v3046, 1.0
        %v3144 = vadd.f32 %v3048, 1.0
        %v3145 = vadd.f32 %v3050, 1.0
        %v3146 = vadd.f32 %v3052, 1.0
        %v3147 = vadd.f32 %v3054, 1.0
        %v3148 = vadd.f32 %v3056, 1.0
        %v3149 = vadd.f32 %v3058, 1.0
        %v3150 = vadd.f32 %v3060, 1.0
        %v3151 = vadd.f32 %v3062, 1.0
        %v3152 = vadd.f32 %v3064, 1.0
        %v3153 = vadd.f32 %v3066, 1.0
        %v3154 = vadd.f32 %v3068, 1.0
        %v3155 = vadd.f32 %v3070, 1.0
        %v3156 = vadd.f32 %v3072, 1.0
        %v3157 = vadd.f32 %v3074, 1.0
        %v3158 = vadd.f32 %v3076, 1.0
        %v3159 = vadd.f32 %v3078, 1.0
        %v3160 = vadd.f32 %v3080, 1.0
        %v3161 = vadd.f32 %v3082, 1.0
        %v3162 = vadd.f32 %v3084, 1.0
        %v3163 = vadd.f32 %v3086, 1.0
        %v3164 = vadd.f32 %v3088, 1.0
        %v3165 = vadd.f32 %v3090, 1.0
        %v3166 = vadd.f32 %v3092, 1.0
        %v3167 = vadd.f32 %v3094, 1.0
        %v3168 = vadd.f32 %v3096, 1.0
        %v3169 = vadd.f32 %v3098, 1.0
        %v3170 = vadd.f32 %v3100, 1.0
        %v3171 = vadd.f32 %v3102, 1.0
        %v3172 = vadd.f32 %v3104, 1.0
        %v3173 = vadd.f32 %v3106, 1.0
        %v3174 = vadd.f32 %v3108, 1.0
        %v3175 = vadd.f32 %v3110, 1.0
        %v3176 = vadd.f32 %v3112, 1.0
        %v3177 = vrcp.pop %v3113
        %v3178 = vmul.f32 1.0, %v3177
        %v3179 = vrcp.pop %v3114
        %v3180 = vmul.f32 1.0, %v3179
        %v3181 = vrcp.pop %v3115
        %v3182 = vmul.f32 1.0, %v3181
        %v3183 = vrcp.pop %v3116
        %v3184 = vmul.f32 1.0, %v3183
        %v3185 = vrcp.pop %v3117
        %v3186 = vmul.f32 1.0, %v3185
        %v3187 = vrcp.pop %v3118
        %v3188 = vmul.f32 1.0, %v3187
        %v3189 = vrcp.pop %v3119
        %v3190 = vmul.f32 1.0, %v3189
        %v3191 = vrcp.pop %v3120
        %v3192 = vmul.f32 1.0, %v3191
        %v3193 = vrcp.pop %v3121
        %v3194 = vmul.f32 1.0, %v3193
        %v3195 = vrcp.pop %v3122
        %v3196 = vmul.f32 1.0, %v3195
        %v3197 = vrcp.pop %v3123
        %v3198 = vmul.f32 1.0, %v3197
        %v3199 = vrcp.pop %v3124
        %v3200 = vmul.f32 1.0, %v3199
        %v3201 = vrcp.pop %v3125
        %v3202 = vmul.f32 1.0, %v3201
        %v3203 = vrcp.pop %v3126
        %v3204 = vmul.f32 1.0, %v3203
        %v3205 = vrcp.pop %v3127
        %v3206 = vmul.f32 1.0, %v3205
        %v3207 = vrcp.pop %v3128
        %v3208 = vmul.f32 1.0, %v3207
        %v3209 = vrcp.pop %v3129
        %v3210 = vmul.f32 1.0, %v3209
        %v3211 = vrcp.pop %v3130
        %v3212 = vmul.f32 1.0, %v3211
        %v3213 = vrcp.pop %v3131
        %v3214 = vmul.f32 1.0, %v3213
        %v3215 = vrcp.pop %v3132
        %v3216 = vmul.f32 1.0, %v3215
        %v3217 = vrcp.pop %v3133
        %v3218 = vmul.f32 1.0, %v3217
        %v3219 = vrcp.pop %v3134
        %v3220 = vmul.f32 1.0, %v3219
        %v3221 = vrcp.pop %v3135
        %v3222 = vmul.f32 1.0, %v3221
        %v3223 = vrcp.pop %v3136
        %v3224 = vmul.f32 1.0, %v3223
        %v3225 = vrcp.pop %v3137
        %v3226 = vmul.f32 1.0, %v3225
        %v3227 = vrcp.pop %v3138
        %v3228 = vmul.f32 1.0, %v3227
        %v3229 = vrcp.pop %v3139
        %v3230 = vmul.f32 1.0, %v3229
        %v3231 = vrcp.pop %v3140
        %v3232 = vmul.f32 1.0, %v3231
        %v3233 = vrcp.pop %v3141
        %v3234 = vmul.f32 1.0, %v3233
        %v3235 = vrcp.pop %v3142
        %v3236 = vmul.f32 1.0, %v3235
        %v3237 = vrcp.pop %v3143
        %v3238 = vmul.f32 1.0, %v3237
        %v3239 = vrcp.pop %v3144
        %v3240 = vmul.f32 1.0, %v3239
        %v3241 = vrcp.pop %v3145
        %v3242 = vmul.f32 1.0, %v3241
        %v3243 = vrcp.pop %v3146
        %v3244 = vmul.f32 1.0, %v3243
        %v3245 = vrcp.pop %v3147
        %v3246 = vmul.f32 1.0, %v3245
        %v3247 = vrcp.pop %v3148
        %v3248 = vmul.f32 1.0, %v3247
        %v3249 = vrcp.pop %v3149
        %v3250 = vmul.f32 1.0, %v3249
        %v3251 = vrcp.pop %v3150
        %v3252 = vmul.f32 1.0, %v3251
        %v3253 = vrcp.pop %v3151
        %v3254 = vmul.f32 1.0, %v3253
        %v3255 = vrcp.pop %v3152
        %v3256 = vmul.f32 1.0, %v3255
        %v3257 = vrcp.pop %v3153
        %v3258 = vmul.f32 1.0, %v3257
        %v3259 = vrcp.pop %v3154
        %v3260 = vmul.f32 1.0, %v3259
        %v3261 = vrcp.pop %v3155
        %v3262 = vmul.f32 1.0, %v3261
        %v3263 = vrcp.pop %v3156
        %v3264 = vmul.f32 1.0, %v3263
        %v3265 = vrcp.pop %v3157
        %v3266 = vmul.f32 1.0, %v3265
        %v3267 = vrcp.pop %v3158
        %v3268 = vmul.f32 1.0, %v3267
        %v3269 = vrcp.pop %v3159
        %v3270 = vmul.f32 1.0, %v3269
        %v3271 = vrcp.pop %v3160
        %v3272 = vmul.f32 1.0, %v3271
        %v3273 = vrcp.pop %v3161
        %v3274 = vmul.f32 1.0, %v3273
        %v3275 = vrcp.pop %v3162
        %v3276 = vmul.f32 1.0, %v3275
        %v3277 = vrcp.pop %v3163
        %v3278 = vmul.f32 1.0, %v3277
        %v3279 = vrcp.pop %v3164
        %v3280 = vmul.f32 1.0, %v3279
        %v3281 = vrcp.pop %v3165
        %v3282 = vmul.f32 1.0, %v3281
        %v3283 = vrcp.pop %v3166
        %v3284 = vmul.f32 1.0, %v3283
        %v3285 = vrcp.pop %v3167
        %v3286 = vmul.f32 1.0, %v3285
        %v3287 = vrcp.pop %v3168
        %v3288 = vmul.f32 1.0, %v3287
        %v3289 = vrcp.pop %v3169
        %v3290 = vmul.f32 1.0, %v3289
        %v3291 = vrcp.pop %v3170
        %v3292 = vmul.f32 1.0, %v3291
        %v3293 = vrcp.pop %v3171
        %v3294 = vmul.f32 1.0, %v3293
        %v3295 = vrcp.pop %v3172
        %v3296 = vmul.f32 1.0, %v3295
        %v3297 = vrcp.pop %v3173
        %v3298 = vmul.f32 1.0, %v3297
        %v3299 = vrcp.pop %v3174
        %v3300 = vmul.f32 1.0, %v3299
        %v3301 = vrcp.pop %v3175
        %v3302 = vmul.f32 1.0, %v3301
        %v3303 = vrcp.pop %v3176
        %v3304 = vmul.f32 1.0, %v3303
        %v3305 = vlaneseq
        %v3306 = vshrl.u32 %v3305, 7
        %v3307 = vsub.s32 0, %v3306
        %v3308 = vrot.slane %v1871, %v3307
        %v3309 = vmul.f32 %v3308, %v1881
        %v3310 = vmul.f32 %v3308, %v1882
        %v3311 = vmul.f32 %v3308, %v1883
        %v3312 = vmul.f32 %v3308, %v1884
        %v3313 = vmul.f32 %v3308, %v1885
        %v3314 = vmul.f32 %v3308, %v1886
        %v3315 = vmul.f32 %v3308, %v1887
        %v3316 = vmul.f32 %v3308, %v1888
        %v3317 = vmul.f32 %v3308, %v1889
        %v3318 = vmul.f32 %v3308, %v1890
        %v3319 = vmul.f32 %v3308, %v1891
        %v3320 = vmul.f32 %v3308, %v1892
        %v3321 = vmul.f32 %v3308, %v1893
        %v3322 = vmul.f32 %v3308, %v1894
        %v3323 = vmul.f32 %v3308, %v1895
        %v3324 = vmul.f32 %v3308, %v1896
        %v3325 = vmul.f32 %v3308, %v1897
        %v3326 = vmul.f32 %v3308, %v1898
        %v3327 = vmul.f32 %v3308, %v1899
        %v3328 = vmul.f32 %v3308, %v1900
        %v3329 = vmul.f32 %v3308, %v1901
        %v3330 = vmul.f32 %v3308, %v1902
        %v3331 = vmul.f32 %v3308, %v1903
        %v3332 = vmul.f32 %v3308, %v1904
        %v3333 = vmul.f32 %v3308, %v1905
        %v3334 = vmul.f32 %v3308, %v1906
        %v3335 = vmul.f32 %v3308, %v1907
        %v3336 = vmul.f32 %v3308, %v1908
        %v3337 = vmul.f32 %v3308, %v1909
        %v3338 = vmul.f32 %v3308, %v1910
        %v3339 = vmul.f32 %v3308, %v1911
        %v3340 = vmul.f32 %v3308, %v1912
        %v3341 = vmul.f32 %v3308, %v1913
        %v3342 = vmul.f32 %v3308, %v1914
        %v3343 = vmul.f32 %v3308, %v1915
        %v3344 = vmul.f32 %v3308, %v1916
        %v3345 = vmul.f32 %v3308, %v1917
        %v3346 = vmul.f32 %v3308, %v1918
        %v3347 = vmul.f32 %v3308, %v1919
        %v3348 = vmul.f32 %v3308, %v1920
        %v3349 = vmul.f32 %v3308, %v1921
        %v3350 = vmul.f32 %v3308, %v1922
        %v3351 = vmul.f32 %v3308, %v1923
        %v3352 = vmul.f32 %v3308, %v1924
        %v3353 = vmul.f32 %v3308, %v1925
        %v3354 = vmul.f32 %v3308, %v1926
        %v3355 = vmul.f32 %v3308, %v1927
        %v3356 = vmul.f32 %v3308, %v1928
        %v3357 = vmul.f32 %v3308, %v1929
        %v3358 = vmul.f32 %v3308, %v1930
        %v3359 = vmul.f32 %v3308, %v1931
        %v3360 = vmul.f32 %v3308, %v1932
        %v3361 = vmul.f32 %v3308, %v1933
        %v3362 = vmul.f32 %v3308, %v1934
        %v3363 = vmul.f32 %v3308, %v1935
        %v3364 = vmul.f32 %v3308, %v1936
        %v3365 = vmul.f32 %v3308, %v1937
        %v3366 = vmul.f32 %v3308, %v1938
        %v3367 = vmul.f32 %v3308, %v1939
        %v3368 = vmul.f32 %v3308, %v1940
        %v3369 = vmul.f32 %v3308, %v1941
        %v3370 = vmul.f32 %v3308, %v1942
        %v3371 = vmul.f32 %v3308, %v1943
        %v3372 = vmul.f32 %v3308, %v1944
        %v3373 = vmul.f32 %v3178, %v1881
        %v3374 = vmul.f32 %v3180, %v1882
        %v3375 = vmul.f32 %v3182, %v1883
        %v3376 = vmul.f32 %v3184, %v1884
        %v3377 = vmul.f32 %v3186, %v1885
        %v3378 = vmul.f32 %v3188, %v1886
        %v3379 = vmul.f32 %v3190, %v1887
        %v3380 = vmul.f32 %v3192, %v1888
        %v3381 = vmul.f32 %v3194, %v1889
        %v3382 = vmul.f32 %v3196, %v1890
        %v3383 = vmul.f32 %v3198, %v1891
        %v3384 = vmul.f32 %v3200, %v1892
        %v3385 = vmul.f32 %v3202, %v1893
        %v3386 = vmul.f32 %v3204, %v1894
        %v3387 = vmul.f32 %v3206, %v1895
        %v3388 = vmul.f32 %v3208, %v1896
        %v3389 = vmul.f32 %v3210, %v1897
        %v3390 = vmul.f32 %v3212, %v1898
        %v3391 = vmul.f32 %v3214, %v1899
        %v3392 = vmul.f32 %v3216, %v1900
        %v3393 = vmul.f32 %v3218, %v1901
        %v3394 = vmul.f32 %v3220, %v1902
        %v3395 = vmul.f32 %v3222, %v1903
        %v3396 = vmul.f32 %v3224, %v1904
        %v3397 = vmul.f32 %v3226, %v1905
        %v3398 = vmul.f32 %v3228, %v1906
        %v3399 = vmul.f32 %v3230, %v1907
        %v3400 = vmul.f32 %v3232, %v1908
        %v3401 = vmul.f32 %v3234, %v1909
        %v3402 = vmul.f32 %v3236, %v1910
        %v3403 = vmul.f32 %v3238, %v1911
        %v3404 = vmul.f32 %v3240, %v1912
        %v3405 = vmul.f32 %v3242, %v1913
        %v3406 = vmul.f32 %v3244, %v1914
        %v3407 = vmul.f32 %v3246, %v1915
        %v3408 = vmul.f32 %v3248, %v1916
        %v3409 = vmul.f32 %v3250, %v1917
        %v3410 = vmul.f32 %v3252, %v1918
        %v3411 = vmul.f32 %v3254, %v1919
        %v3412 = vmul.f32 %v3256, %v1920
        %v3413 = vmul.f32 %v3258, %v1921
        %v3414 = vmul.f32 %v3260, %v1922
        %v3415 = vmul.f32 %v3262, %v1923
        %v3416 = vmul.f32 %v3264, %v1924
        %v3417 = vmul.f32 %v3266, %v1925
        %v3418 = vmul.f32 %v3268, %v1926
        %v3419 = vmul.f32 %v3270, %v1927
        %v3420 = vmul.f32 %v3272, %v1928
        %v3421 = vmul.f32 %v3274, %v1929
        %v3422 = vmul.f32 %v3276, %v1930
        %v3423 = vmul.f32 %v3278, %v1931
        %v3424 = vmul.f32 %v3280, %v1932
        %v3425 = vmul.f32 %v3282, %v1933
        %v3426 = vmul.f32 %v3284, %v1934
        %v3427 = vmul.f32 %v3286, %v1935
        %v3428 = vmul.f32 %v3288, %v1936
        %v3429 = vmul.f32 %v3290, %v1937
        %v3430 = vmul.f32 %v3292, %v1938
        %v3431 = vmul.f32 %v3294, %v1939
        %v3432 = vmul.f32 %v3296, %v1940
        %v3433 = vmul.f32 %v3298, %v1941
        %v3434 = vmul.f32 %v3300, %v1942
        %v3435 = vmul.f32 %v3302, %v1943
        %v3436 = vmul.f32 %v3304, %v1944
        %v3437 = vpack.c.bf16 %v3310, %v3309
        %v3438 = vpack.c.bf16 %v3374, %v3373
        %v3439 = vpack.c.bf16 %v3312, %v3311
        %v3440 = vpack.c.bf16 %v3376, %v3375
        %v3441 = vpack.c.bf16 %v3314, %v3313
        %v3442 = vpack.c.bf16 %v3378, %v3377
        %v3443 = vpack.c.bf16 %v3316, %v3315
        %v3444 = vpack.c.bf16 %v3380, %v3379
        %v3445 = vpack.c.bf16 %v3318, %v3317
        %v3446 = vpack.c.bf16 %v3382, %v3381
        %v3447 = vpack.c.bf16 %v3320, %v3319
        %v3448 = vpack.c.bf16 %v3384, %v3383
        %v3449 = vpack.c.bf16 %v3322, %v3321
        %v3450 = vpack.c.bf16 %v3386, %v3385
        %v3451 = vpack.c.bf16 %v3324, %v3323
        %v3452 = vpack.c.bf16 %v3388, %v3387
        %v3453 = vpack.c.bf16 %v3326, %v3325
        %v3454 = vpack.c.bf16 %v3390, %v3389
        %v3455 = vpack.c.bf16 %v3328, %v3327
        %v3456 = vpack.c.bf16 %v3392, %v3391
        %v3457 = vpack.c.bf16 %v3330, %v3329
        %v3458 = vpack.c.bf16 %v3394, %v3393
        %v3459 = vpack.c.bf16 %v3332, %v3331
        %v3460 = vpack.c.bf16 %v3396, %v3395
        %v3461 = vpack.c.bf16 %v3334, %v3333
        %v3462 = vpack.c.bf16 %v3398, %v3397
        %v3463 = vpack.c.bf16 %v3336, %v3335
        %v3464 = vpack.c.bf16 %v3400, %v3399
        %v3465 = vpack.c.bf16 %v3338, %v3337
        %v3466 = vpack.c.bf16 %v3402, %v3401
        %v3467 = vpack.c.bf16 %v3340, %v3339
        %v3468 = vpack.c.bf16 %v3404, %v3403
        %v3469 = vpack.c.bf16 %v3342, %v3341
        %v3470 = vpack.c.bf16 %v3406, %v3405
        %v3471 = vpack.c.bf16 %v3344, %v3343
        %v3472 = vpack.c.bf16 %v3408, %v3407
        %v3473 = vpack.c.bf16 %v3346, %v3345
        %v3474 = vpack.c.bf16 %v3410, %v3409
        %v3475 = vpack.c.bf16 %v3348, %v3347
        %v3476 = vpack.c.bf16 %v3412, %v3411
        %v3477 = vpack.c.bf16 %v3350, %v3349
        %v3478 = vpack.c.bf16 %v3414, %v3413
        %v3479 = vpack.c.bf16 %v3352, %v3351
        %v3480 = vpack.c.bf16 %v3416, %v3415
        %v3481 = vpack.c.bf16 %v3354, %v3353
        %v3482 = vpack.c.bf16 %v3418, %v3417
        %v3483 = vpack.c.bf16 %v3356, %v3355
        %v3484 = vpack.c.bf16 %v3420, %v3419
        %v3485 = vpack.c.bf16 %v3358, %v3357
        %v3486 = vpack.c.bf16 %v3422, %v3421
        %v3487 = vpack.c.bf16 %v3360, %v3359
        %v3488 = vpack.c.bf16 %v3424, %v3423
        %v3489 = vpack.c.bf16 %v3362, %v3361
        %v3490 = vpack.c.bf16 %v3426, %v3425
        %v3491 = vpack.c.bf16 %v3364, %v3363
        %v3492 = vpack.c.bf16 %v3428, %v3427
        %v3493 = vpack.c.bf16 %v3366, %v3365
        %v3494 = vpack.c.bf16 %v3430, %v3429
        %v3495 = vpack.c.bf16 %v3368, %v3367
        %v3496 = vpack.c.bf16 %v3432, %v3431
        %v3497 = vpack.c.bf16 %v3370, %v3369
        %v3498 = vpack.c.bf16 %v3434, %v3433
        %v3499 = vpack.c.bf16 %v3372, %v3371
        %v3500 = vpack.c.bf16 %v3436, %v3435
        %v3501 = vld [vmem:[%s10] sm:$0xff]
        %v3502 = vld [vmem:[%s10 + $0x8] sm:$0xff]
        %v3503 = vld [vmem:[%s10 + $0x10] sm:$0xff]
        %v3504 = vld [vmem:[%s10 + $0x18] sm:$0xff]
        %v3505 = vld [vmem:[%s10 + $0x20] sm:$0xff]
        %v3506 = vld [vmem:[%s10 + $0x28] sm:$0xff]
        %v3507 = vld [vmem:[%s10 + $0x30] sm:$0xff]
        %v3508 = vld [vmem:[%s10 + $0x38] sm:$0xff]
        %v3509 = vld [vmem:[%s10 + $0x40] sm:$0xff]
        %v3510 = vld [vmem:[%s10 + $0x48] sm:$0xff]
        %v3511 = vld [vmem:[%s10 + $0x50] sm:$0xff]
        %v3512 = vld [vmem:[%s10 + $0x58] sm:$0xff]
        %v3513 = vld [vmem:[%s10 + $0x60] sm:$0xff]
        %v3514 = vld [vmem:[%s10 + $0x68] sm:$0xff]
        %v3515 = vld [vmem:[%s10 + $0x70] sm:$0xff]
        %v3516 = vld [vmem:[%s10 + $0x78] sm:$0xff]
        %v3517 = vld [vmem:[%s10 + $0x80] sm:$0xff]
        %v3518 = vld [vmem:[%s10 + $0x88] sm:$0xff]
        %v3519 = vld [vmem:[%s10 + $0x90] sm:$0xff]
        %v3520 = vld [vmem:[%s10 + $0x98] sm:$0xff]
        %v3521 = vld [vmem:[%s10 + $0xa0] sm:$0xff]
        %v3522 = vld [vmem:[%s10 + $0xa8] sm:$0xff]
        %v3523 = vld [vmem:[%s10 + $0xb0] sm:$0xff]
        %v3524 = vld [vmem:[%s10 + $0xb8] sm:$0xff]
        %v3525 = vld [vmem:[%s10 + $0xc0] sm:$0xff]
        %v3526 = vld [vmem:[%s10 + $0xc8] sm:$0xff]
        %v3527 = vld [vmem:[%s10 + $0xd0] sm:$0xff]
        %v3528 = vld [vmem:[%s10 + $0xd8] sm:$0xff]
        %v3529 = vld [vmem:[%s10 + $0xe0] sm:$0xff]
        %v3530 = vld [vmem:[%s10 + $0xe8] sm:$0xff]
        %v3531 = vld [vmem:[%s10 + $0xf0] sm:$0xff]
        %v3532 = vld [vmem:[%s10 + $0xf8] sm:$0xff]
        %v3533 = vld [vmem:[%s11] sm:$0x3]
        %v3535 = vlaneseq
        %v3536 = vshrl.u32 %v3535, 7
        %v3537 = vsub.s32 0, %v3536
        %v3538 = vrot.slane %v3533, %v3537
        %v3539 = vlaneseq
        %v3540 = vshrl.u32 %v3539, 7
        %v3541 = vsub.s32 1, %v3540
        %v3542 = vrot.slane %v3533, %v3541
        %v3577 = vunpack.c.l.b16 %v3501
        %v3578 = vunpack.c.h.b16 %v3501
        %v3579 = vunpack.c.l.b16 %v3502
        %v3580 = vunpack.c.h.b16 %v3502
        %v3581 = vunpack.c.l.b16 %v3503
        %v3582 = vunpack.c.h.b16 %v3503
        %v3583 = vunpack.c.l.b16 %v3504
        %v3584 = vunpack.c.h.b16 %v3504
        %v3585 = vunpack.c.l.b16 %v3505
        %v3586 = vunpack.c.h.b16 %v3505
        %v3587 = vunpack.c.l.b16 %v3506
        %v3588 = vunpack.c.h.b16 %v3506
        %v3589 = vunpack.c.l.b16 %v3507
        %v3590 = vunpack.c.h.b16 %v3507
        %v3591 = vunpack.c.l.b16 %v3508
        %v3592 = vunpack.c.h.b16 %v3508
        %v3593 = vunpack.c.l.b16 %v3509
        %v3594 = vunpack.c.h.b16 %v3509
        %v3595 = vunpack.c.l.b16 %v3510
        %v3596 = vunpack.c.h.b16 %v3510
        %v3597 = vunpack.c.l.b16 %v3511
        %v3598 = vunpack.c.h.b16 %v3511
        %v3599 = vunpack.c.l.b16 %v3512
        %v3600 = vunpack.c.h.b16 %v3512
        %v3601 = vunpack.c.l.b16 %v3513
        %v3602 = vunpack.c.h.b16 %v3513
        %v3603 = vunpack.c.l.b16 %v3514
        %v3604 = vunpack.c.h.b16 %v3514
        %v3605 = vunpack.c.l.b16 %v3515
        %v3606 = vunpack.c.h.b16 %v3515
        %v3607 = vunpack.c.l.b16 %v3516
        %v3608 = vunpack.c.h.b16 %v3516
        %v3609 = vunpack.c.l.b16 %v3517
        %v3610 = vunpack.c.h.b16 %v3517
        %v3611 = vunpack.c.l.b16 %v3518
        %v3612 = vunpack.c.h.b16 %v3518
        %v3613 = vunpack.c.l.b16 %v3519
        %v3614 = vunpack.c.h.b16 %v3519
        %v3615 = vunpack.c.l.b16 %v3520
        %v3616 = vunpack.c.h.b16 %v3520
        %v3617 = vunpack.c.l.b16 %v3521
        %v3618 = vunpack.c.h.b16 %v3521
        %v3619 = vunpack.c.l.b16 %v3522
        %v3620 = vunpack.c.h.b16 %v3522
        %v3621 = vunpack.c.l.b16 %v3523
        %v3622 = vunpack.c.h.b16 %v3523
        %v3623 = vunpack.c.l.b16 %v3524
        %v3624 = vunpack.c.h.b16 %v3524
        %v3625 = vunpack.c.l.b16 %v3525
        %v3626 = vunpack.c.h.b16 %v3525
        %v3627 = vunpack.c.l.b16 %v3526
        %v3628 = vunpack.c.h.b16 %v3526
        %v3629 = vunpack.c.l.b16 %v3527
        %v3630 = vunpack.c.h.b16 %v3527
        %v3631 = vunpack.c.l.b16 %v3528
        %v3632 = vunpack.c.h.b16 %v3528
        %v3633 = vunpack.c.l.b16 %v3529
        %v3634 = vunpack.c.h.b16 %v3529
        %v3635 = vunpack.c.l.b16 %v3530
        %v3636 = vunpack.c.h.b16 %v3530
        %v3637 = vunpack.c.l.b16 %v3531
        %v3638 = vunpack.c.h.b16 %v3531
        %v3639 = vunpack.c.l.b16 %v3532
        %v3640 = vunpack.c.h.b16 %v3532
        %v3641 = vpack.c.b16 %v3579, %v3577
        %v3642 = vpack.c.b16 %v3580, %v3578
        %v3643 = vpack.c.b16 %v3583, %v3581
        %v3644 = vpack.c.b16 %v3584, %v3582
        %v3645 = vpack.c.b16 %v3587, %v3585
        %v3646 = vpack.c.b16 %v3588, %v3586
        %v3647 = vpack.c.b16 %v3591, %v3589
        %v3648 = vpack.c.b16 %v3592, %v3590
        %v3649 = vpack.c.b16 %v3595, %v3593
        %v3650 = vpack.c.b16 %v3596, %v3594
        %v3651 = vpack.c.b16 %v3599, %v3597
        %v3652 = vpack.c.b16 %v3600, %v3598
        %v3653 = vpack.c.b16 %v3603, %v3601
        %v3654 = vpack.c.b16 %v3604, %v3602
        %v3655 = vpack.c.b16 %v3607, %v3605
        %v3656 = vpack.c.b16 %v3608, %v3606
        %v3657 = vpack.c.b16 %v3611, %v3609
        %v3658 = vpack.c.b16 %v3612, %v3610
        %v3659 = vpack.c.b16 %v3615, %v3613
        %v3660 = vpack.c.b16 %v3616, %v3614
        %v3661 = vpack.c.b16 %v3619, %v3617
        %v3662 = vpack.c.b16 %v3620, %v3618
        %v3663 = vpack.c.b16 %v3623, %v3621
        %v3664 = vpack.c.b16 %v3624, %v3622
        %v3665 = vpack.c.b16 %v3627, %v3625
        %v3666 = vpack.c.b16 %v3628, %v3626
        %v3667 = vpack.c.b16 %v3631, %v3629
        %v3668 = vpack.c.b16 %v3632, %v3630
        %v3669 = vpack.c.b16 %v3635, %v3633
        %v3670 = vpack.c.b16 %v3636, %v3634
        %v3671 = vpack.c.b16 %v3639, %v3637
        %v3672 = vpack.c.b16 %v3640, %v3638
        %3705 = vmatprep.subr.bf16.mxu0 %v3642
        %3706 = vmatpush1.bf16.msra.mxu0 %v3641
        %3707 = vmatprep.subr.bf16.mxu0 %v3644
        %3708 = vmatpush1.bf16.msra.mxu0 %v3643
        %3709 = vmatprep.subr.bf16.mxu0 %v3646
        %3710 = vmatpush1.bf16.msra.mxu0 %v3645
        %3711 = vmatprep.subr.bf16.mxu0 %v3648
        %3712 = vmatpush1.bf16.msra.mxu0 %v3647
        %3713 = vmatprep.subr.bf16.mxu0 %v3650
        %3714 = vmatpush1.bf16.msra.mxu0 %v3649
        %3715 = vmatprep.subr.bf16.mxu0 %v3652
        %3716 = vmatpush1.bf16.msra.mxu0 %v3651
        %3717 = vmatprep.subr.bf16.mxu0 %v3654
        %3718 = vmatpush1.bf16.msra.mxu0 %v3653
        %3719 = vmatprep.subr.bf16.mxu0 %v3656
        %3720 = vmatpush1.bf16.msra.mxu0 %v3655
        %3721 = vmatprep.subr.bf16.mxu0 %v3658
        %3722 = vmatpush1.bf16.msra.mxu0 %v3657
        %3723 = vmatprep.subr.bf16.mxu0 %v3660
        %3724 = vmatpush1.bf16.msra.mxu0 %v3659
        %3725 = vmatprep.subr.bf16.mxu0 %v3662
        %3726 = vmatpush1.bf16.msra.mxu0 %v3661
        %3727 = vmatprep.subr.bf16.mxu0 %v3664
        %3728 = vmatpush1.bf16.msra.mxu0 %v3663
        %3729 = vmatprep.subr.bf16.mxu0 %v3666
        %3730 = vmatpush1.bf16.msra.mxu0 %v3665
        %3731 = vmatprep.subr.bf16.mxu0 %v3668
        %3732 = vmatpush1.bf16.msra.mxu0 %v3667
        %3733 = vmatprep.subr.bf16.mxu0 %v3670
        %3734 = vmatpush1.bf16.msra.mxu0 %v3669
        %3735 = vmatprep.subr.bf16.mxu0 %v3672
        %3736 = vmatpush1.bf16.msra.mxu0 %v3671
        %3737 = vmatprep.mubr.bf16.mxu0 %v3438
        %3738 = vmatmul.mubr.bf16.gmra.mrb[0].mxu0 %v3437
        %v3739 = vpop.f32.mrb[0].mxu0
        %v3740 = vadd.f32 %v3538, %v3739
        %v3741 = vpop.f32.mrb[0].mxu0
        %v3742 = vadd.f32 %v3542, %v3741
        %v3743 = vpop.f32.mrb[0].mxu0
        %v3744 = vadd.f32 %v3538, %v3743
        %v3745 = vpop.f32.mrb[0].mxu0
        %v3746 = vadd.f32 %v3542, %v3745
        %3747 = vmatprep.mubr.bf16.mxu0 %v3440
        %3748 = vmatmul.mubr.bf16.gmra.mrb[0].mxu0 %v3439
        %v3749 = vpop.f32.mrb[0].mxu0
        %v3750 = vadd.f32 %v3538, %v3749
        %v3751 = vpop.f32.mrb[0].mxu0
        %v3752 = vadd.f32 %v3542, %v3751
        %v3753 = vpop.f32.mrb[0].mxu0
        %v3754 = vadd.f32 %v3538, %v3753
        %v3755 = vpop.f32.mrb[0].mxu0
        %v3756 = vadd.f32 %v3542, %v3755
        %3757 = vmatprep.mubr.bf16.mxu0 %v3442
        %3758 = vmatmul.mubr.bf16.gmra.mrb[0].mxu0 %v3441
        %v3759 = vpop.f32.mrb[0].mxu0
        %v3760 = vadd.f32 %v3538, %v3759
        %v3761 = vpop.f32.mrb[0].mxu0
        %v3762 = vadd.f32 %v3542, %v3761
        %v3763 = vpop.f32.mrb[0].mxu0
        %v3764 = vadd.f32 %v3538, %v3763
        %v3765 = vpop.f32.mrb[0].mxu0
        %v3766 = vadd.f32 %v3542, %v3765
        %3767 = vmatprep.mubr.bf16.mxu0 %v3444
        %3768 = vmatmul.mubr.bf16.gmra.mrb[0].mxu0 %v3443
        %v3769 = vpop.f32.mrb[0].mxu0
        %v3770 = vadd.f32 %v3538, %v3769
        %v3771 = vpop.f32.mrb[0].mxu0
        %v3772 = vadd.f32 %v3542, %v3771
        %v3773 = vpop.f32.mrb[0].mxu0
        %v3774 = vadd.f32 %v3538, %v3773
        %v3775 = vpop.f32.mrb[0].mxu0
        %v3776 = vadd.f32 %v3542, %v3775
        %3777 = vmatprep.mubr.bf16.mxu0 %v3446
        %3778 = vmatmul.mubr.bf16.gmra.mrb[0].mxu0 %v3445
        %v3779 = vpop.f32.mrb[0].mxu0
        %v3780 = vadd.f32 %v3538, %v3779
        %v3781 = vpop.f32.mrb[0].mxu0
        %v3782 = vadd.f32 %v3542, %v3781
        %v3783 = vpop.f32.mrb[0].mxu0
        %v3784 = vadd.f32 %v3538, %v3783
        %v3785 = vpop.f32.mrb[0].mxu0
        %v3786 = vadd.f32 %v3542, %v3785
        %3787 = vmatprep.mubr.bf16.mxu0 %v3448
        %3788 = vmatmul.mubr.bf16.gmra.mrb[0].mxu0 %v3447
        %v3789 = vpop.f32.mrb[0].mxu0
        %v3790 = vadd.f32 %v3538, %v3789
        %v3791 = vpop.f32.mrb[0].mxu0
        %v3792 = vadd.f32 %v3542, %v3791
        %v3793 = vpop.f32.mrb[0].mxu0
        %v3794 = vadd.f32 %v3538, %v3793
        %v3795 = vpop.f32.mrb[0].mxu0
        %v3796 = vadd.f32 %v3542, %v3795
        %3797 = vmatprep.mubr.bf16.mxu0 %v3450
        %3798 = vmatmul.mubr.bf16.gmra.mrb[0].mxu0 %v3449
        %v3799 = vpop.f32.mrb[0].mxu0
        %v3800 = vadd.f32 %v3538, %v3799
        %v3801 = vpop.f32.mrb[0].mxu0
        %v3802 = vadd.f32 %v3542, %v3801
        %v3803 = vpop.f32.mrb[0].mxu0
        %v3804 = vadd.f32 %v3538, %v3803
        %v3805 = vpop.f32.mrb[0].mxu0
        %v3806 = vadd.f32 %v3542, %v3805
        %3807 = vmatprep.mubr.bf16.mxu0 %v3452
        %3808 = vmatmul.mubr.bf16.gmra.mrb[0].mxu0 %v3451
        %v3809 = vpop.f32.mrb[0].mxu0
        %v3810 = vadd.f32 %v3538, %v3809
        %v3811 = vpop.f32.mrb[0].mxu0
        %v3812 = vadd.f32 %v3542, %v3811
        %v3813 = vpop.f32.mrb[0].mxu0
        %v3814 = vadd.f32 %v3538, %v3813
        %v3815 = vpop.f32.mrb[0].mxu0
        %v3816 = vadd.f32 %v3542, %v3815
        %3817 = vmatprep.mubr.bf16.mxu0 %v3454
        %3818 = vmatmul.mubr.bf16.gmra.mrb[0].mxu0 %v3453
        %v3819 = vpop.f32.mrb[0].mxu0
        %v3820 = vadd.f32 %v3538, %v3819
        %v3821 = vpop.f32.mrb[0].mxu0
        %v3822 = vadd.f32 %v3542, %v3821
        %v3823 = vpop.f32.mrb[0].mxu0
        %v3824 = vadd.f32 %v3538, %v3823
        %v3825 = vpop.f32.mrb[0].mxu0
        %v3826 = vadd.f32 %v3542, %v3825
        %3827 = vmatprep.mubr.bf16.mxu0 %v3456
        %3828 = vmatmul.mubr.bf16.gmra.mrb[0].mxu0 %v3455
        %v3829 = vpop.f32.mrb[0].mxu0
        %v3830 = vadd.f32 %v3538, %v3829
        %v3831 = vpop.f32.mrb[0].mxu0
        %v3832 = vadd.f32 %v3542, %v3831
        %v3833 = vpop.f32.mrb[0].mxu0
        %v3834 = vadd.f32 %v3538, %v3833
        %v3835 = vpop.f32.mrb[0].mxu0
        %v3836 = vadd.f32 %v3542, %v3835
        %3837 = vmatprep.mubr.bf16.mxu0 %v3458
        %3838 = vmatmul.mubr.bf16.gmra.mrb[0].mxu0 %v3457
        %v3839 = vpop.f32.mrb[0].mxu0
        %v3840 = vadd.f32 %v3538, %v3839
        %v3841 = vpop.f32.mrb[0].mxu0
        %v3842 = vadd.f32 %v3542, %v3841
        %v3843 = vpop.f32.mrb[0].mxu0
        %v3844 = vadd.f32 %v3538, %v3843
        %v3845 = vpop.f32.mrb[0].mxu0
        %v3846 = vadd.f32 %v3542, %v3845
        %3847 = vmatprep.mubr.bf16.mxu0 %v3460
        %3848 = vmatmul.mubr.bf16.gmra.mrb[0].mxu0 %v3459
        %v3849 = vpop.f32.mrb[0].mxu0
        %v3850 = vadd.f32 %v3538, %v3849
        %v3851 = vpop.f32.mrb[0].mxu0
        %v3852 = vadd.f32 %v3542, %v3851
        %v3853 = vpop.f32.mrb[0].mxu0
        %v3854 = vadd.f32 %v3538, %v3853
        %v3855 = vpop.f32.mrb[0].mxu0
        %v3856 = vadd.f32 %v3542, %v3855
        %3857 = vmatprep.mubr.bf16.mxu0 %v3462
        %3858 = vmatmul.mubr.bf16.gmra.mrb[0].mxu0 %v3461
        %v3859 = vpop.f32.mrb[0].mxu0
        %v3860 = vadd.f32 %v3538, %v3859
        %v3861 = vpop.f32.mrb[0].mxu0
        %v3862 = vadd.f32 %v3542, %v3861
        %v3863 = vpop.f32.mrb[0].mxu0
        %v3864 = vadd.f32 %v3538, %v3863
        %v3865 = vpop.f32.mrb[0].mxu0
        %v3866 = vadd.f32 %v3542, %v3865
        %3867 = vmatprep.mubr.bf16.mxu0 %v3464
        %3868 = vmatmul.mubr.bf16.gmra.mrb[0].mxu0 %v3463
        %v3869 = vpop.f32.mrb[0].mxu0
        %v3870 = vadd.f32 %v3538, %v3869
        %v3871 = vpop.f32.mrb[0].mxu0
        %v3872 = vadd.f32 %v3542, %v3871
        %v3873 = vpop.f32.mrb[0].mxu0
        %v3874 = vadd.f32 %v3538, %v3873
        %v3875 = vpop.f32.mrb[0].mxu0
        %v3876 = vadd.f32 %v3542, %v3875
        %3877 = vmatprep.mubr.bf16.mxu0 %v3466
        %3878 = vmatmul.mubr.bf16.gmra.mrb[0].mxu0 %v3465
        %v3879 = vpop.f32.mrb[0].mxu0
        %v3880 = vadd.f32 %v3538, %v3879
        %v3881 = vpop.f32.mrb[0].mxu0
        %v3882 = vadd.f32 %v3542, %v3881
        %v3883 = vpop.f32.mrb[0].mxu0
        %v3884 = vadd.f32 %v3538, %v3883
        %v3885 = vpop.f32.mrb[0].mxu0
        %v3886 = vadd.f32 %v3542, %v3885
        %3887 = vmatprep.mubr.bf16.mxu0 %v3468
        %3888 = vmatmul.mubr.bf16.gmra.mrb[0].mxu0 %v3467
        %v3889 = vpop.f32.mrb[0].mxu0
        %v3890 = vadd.f32 %v3538, %v3889
        %v3891 = vpop.f32.mrb[0].mxu0
        %v3892 = vadd.f32 %v3542, %v3891
        %v3893 = vpop.f32.mrb[0].mxu0
        %v3894 = vadd.f32 %v3538, %v3893
        %v3895 = vpop.f32.mrb[0].mxu0
        %v3896 = vadd.f32 %v3542, %v3895
        %3897 = vmatprep.mubr.bf16.mxu0 %v3470
        %3898 = vmatmul.mubr.bf16.gmra.mrb[0].mxu0 %v3469
        %v3899 = vpop.f32.mrb[0].mxu0
        %v3900 = vadd.f32 %v3538, %v3899
        %v3901 = vpop.f32.mrb[0].mxu0
        %v3902 = vadd.f32 %v3542, %v3901
        %v3903 = vpop.f32.mrb[0].mxu0
        %v3904 = vadd.f32 %v3538, %v3903
        %v3905 = vpop.f32.mrb[0].mxu0
        %v3906 = vadd.f32 %v3542, %v3905
        %3907 = vmatprep.mubr.bf16.mxu0 %v3472
        %3908 = vmatmul.mubr.bf16.gmra.mrb[0].mxu0 %v3471
        %v3909 = vpop.f32.mrb[0].mxu0
        %v3910 = vadd.f32 %v3538, %v3909
        %v3911 = vpop.f32.mrb[0].mxu0
        %v3912 = vadd.f32 %v3542, %v3911
        %v3913 = vpop.f32.mrb[0].mxu0
        %v3914 = vadd.f32 %v3538, %v3913
        %v3915 = vpop.f32.mrb[0].mxu0
        %v3916 = vadd.f32 %v3542, %v3915
        %3917 = vmatprep.mubr.bf16.mxu0 %v3474
        %3918 = vmatmul.mubr.bf16.gmra.mrb[0].mxu0 %v3473
        %v3919 = vpop.f32.mrb[0].mxu0
        %v3920 = vadd.f32 %v3538, %v3919
        %v3921 = vpop.f32.mrb[0].mxu0
        %v3922 = vadd.f32 %v3542, %v3921
        %v3923 = vpop.f32.mrb[0].mxu0
        %v3924 = vadd.f32 %v3538, %v3923
        %v3925 = vpop.f32.mrb[0].mxu0
        %v3926 = vadd.f32 %v3542, %v3925
        %3927 = vmatprep.mubr.bf16.mxu0 %v3476
        %3928 = vmatmul.mubr.bf16.gmra.mrb[0].mxu0 %v3475
        %v3929 = vpop.f32.mrb[0].mxu0
        %v3930 = vadd.f32 %v3538, %v3929
        %v3931 = vpop.f32.mrb[0].mxu0
        %v3932 = vadd.f32 %v3542, %v3931
        %v3933 = vpop.f32.mrb[0].mxu0
        %v3934 = vadd.f32 %v3538, %v3933
        %v3935 = vpop.f32.mrb[0].mxu0
        %v3936 = vadd.f32 %v3542, %v3935
        %3937 = vmatprep.mubr.bf16.mxu0 %v3478
        %3938 = vmatmul.mubr.bf16.gmra.mrb[0].mxu0 %v3477
        %v3939 = vpop.f32.mrb[0].mxu0
        %v3940 = vadd.f32 %v3538, %v3939
        %v3941 = vpop.f32.mrb[0].mxu0
        %v3942 = vadd.f32 %v3542, %v3941
        %v3943 = vpop.f32.mrb[0].mxu0
        %v3944 = vadd.f32 %v3538, %v3943
        %v3945 = vpop.f32.mrb[0].mxu0
        %v3946 = vadd.f32 %v3542, %v3945
        %3947 = vmatprep.mubr.bf16.mxu0 %v3480
        %3948 = vmatmul.mubr.bf16.gmra.mrb[0].mxu0 %v3479
        %v3949 = vpop.f32.mrb[0].mxu0
        %v3950 = vadd.f32 %v3538, %v3949
        %v3951 = vpop.f32.mrb[0].mxu0
        %v3952 = vadd.f32 %v3542, %v3951
        %v3953 = vpop.f32.mrb[0].mxu0
        %v3954 = vadd.f32 %v3538, %v3953
        %v3955 = vpop.f32.mrb[0].mxu0
        %v3956 = vadd.f32 %v3542, %v3955
        %3957 = vmatprep.mubr.bf16.mxu0 %v3482
        %3958 = vmatmul.mubr.bf16.gmra.mrb[0].mxu0 %v3481
        %v3959 = vpop.f32.mrb[0].mxu0
        %v3960 = vadd.f32 %v3538, %v3959
        %v3961 = vpop.f32.mrb[0].mxu0
        %v3962 = vadd.f32 %v3542, %v3961
        %v3963 = vpop.f32.mrb[0].mxu0
        %v3964 = vadd.f32 %v3538, %v3963
        %v3965 = vpop.f32.mrb[0].mxu0
        %v3966 = vadd.f32 %v3542, %v3965
        %3967 = vmatprep.mubr.bf16.mxu0 %v3484
        %3968 = vmatmul.mubr.bf16.gmra.mrb[0].mxu0 %v3483
        %v3969 = vpop.f32.mrb[0].mxu0
        %v3970 = vadd.f32 %v3538, %v3969
        %v3971 = vpop.f32.mrb[0].mxu0
        %v3972 = vadd.f32 %v3542, %v3971
        %v3973 = vpop.f32.mrb[0].mxu0
        %v3974 = vadd.f32 %v3538, %v3973
        %v3975 = vpop.f32.mrb[0].mxu0
        %v3976 = vadd.f32 %v3542, %v3975
        %3977 = vmatprep.mubr.bf16.mxu0 %v3486
        %3978 = vmatmul.mubr.bf16.gmra.mrb[0].mxu0 %v3485
        %v3979 = vpop.f32.mrb[0].mxu0
        %v3980 = vadd.f32 %v3538, %v3979
        %v3981 = vpop.f32.mrb[0].mxu0
        %v3982 = vadd.f32 %v3542, %v3981
        %v3983 = vpop.f32.mrb[0].mxu0
        %v3984 = vadd.f32 %v3538, %v3983
        %v3985 = vpop.f32.mrb[0].mxu0
        %v3986 = vadd.f32 %v3542, %v3985
        %3987 = vmatprep.mubr.bf16.mxu0 %v3488
        %3988 = vmatmul.mubr.bf16.gmra.mrb[0].mxu0 %v3487
        %v3989 = vpop.f32.mrb[0].mxu0
        %v3990 = vadd.f32 %v3538, %v3989
        %v3991 = vpop.f32.mrb[0].mxu0
        %v3992 = vadd.f32 %v3542, %v3991
        %v3993 = vpop.f32.mrb[0].mxu0
        %v3994 = vadd.f32 %v3538, %v3993
        %v3995 = vpop.f32.mrb[0].mxu0
        %v3996 = vadd.f32 %v3542, %v3995
        %3997 = vmatprep.mubr.bf16.mxu0 %v3490
        %3998 = vmatmul.mubr.bf16.gmra.mrb[0].mxu0 %v3489
        %v3999 = vpop.f32.mrb[0].mxu0
        %v4000 = vadd.f32 %v3538, %v3999
        %v4001 = vpop.f32.mrb[0].mxu0
        %v4002 = vadd.f32 %v3542, %v4001
        %v4003 = vpop.f32.mrb[0].mxu0
        %v4004 = vadd.f32 %v3538, %v4003
        %v4005 = vpop.f32.mrb[0].mxu0
        %v4006 = vadd.f32 %v3542, %v4005
        %4007 = vmatprep.mubr.bf16.mxu0 %v3492
        %4008 = vmatmul.mubr.bf16.gmra.mrb[0].mxu0 %v3491
        %v4009 = vpop.f32.mrb[0].mxu0
        %v4010 = vadd.f32 %v3538, %v4009
        %v4011 = vpop.f32.mrb[0].mxu0
        %v4012 = vadd.f32 %v3542, %v4011
        %v4013 = vpop.f32.mrb[0].mxu0
        %v4014 = vadd.f32 %v3538, %v4013
        %v4015 = vpop.f32.mrb[0].mxu0
        %v4016 = vadd.f32 %v3542, %v4015
        %4017 = vmatprep.mubr.bf16.mxu0 %v3494
        %4018 = vmatmul.mubr.bf16.gmra.mrb[0].mxu0 %v3493
        %v4019 = vpop.f32.mrb[0].mxu0
        %v4020 = vadd.f32 %v3538, %v4019
        %v4021 = vpop.f32.mrb[0].mxu0
        %v4022 = vadd.f32 %v3542, %v4021
        %v4023 = vpop.f32.mrb[0].mxu0
        %v4024 = vadd.f32 %v3538, %v4023
        %v4025 = vpop.f32.mrb[0].mxu0
        %v4026 = vadd.f32 %v3542, %v4025
        %4027 = vmatprep.mubr.bf16.mxu0 %v3496
        %4028 = vmatmul.mubr.bf16.gmra.mrb[0].mxu0 %v3495
        %v4029 = vpop.f32.mrb[0].mxu0
        %v4030 = vadd.f32 %v3538, %v4029
        %v4031 = vpop.f32.mrb[0].mxu0
        %v4032 = vadd.f32 %v3542, %v4031
        %v4033 = vpop.f32.mrb[0].mxu0
        %v4034 = vadd.f32 %v3538, %v4033
        %v4035 = vpop.f32.mrb[0].mxu0
        %v4036 = vadd.f32 %v3542, %v4035
        %4037 = vmatprep.mubr.bf16.mxu0 %v3498
        %4038 = vmatmul.mubr.bf16.gmra.mrb[0].mxu0 %v3497
        %v4039 = vpop.f32.mrb[0].mxu0
        %v4040 = vadd.f32 %v3538, %v4039
        %v4041 = vpop.f32.mrb[0].mxu0
        %v4042 = vadd.f32 %v3542, %v4041
        %v4043 = vpop.f32.mrb[0].mxu0
        %v4044 = vadd.f32 %v3538, %v4043
        %v4045 = vpop.f32.mrb[0].mxu0
        %v4046 = vadd.f32 %v3542, %v4045
        %4047 = vmatprep.mubr.bf16.mxu0 %v3500
        %4048 = vmatmul.mubr.bf16.gmra.mrb[0].mxu0 %v3499
        %v4049 = vpop.f32.mrb[0].mxu0
        %v4050 = vadd.f32 %v3538, %v4049
        %v4051 = vpop.f32.mrb[0].mxu0
        %v4052 = vadd.f32 %v3542, %v4051
        %v4053 = vpop.f32.mrb[0].mxu0
        %v4054 = vadd.f32 %v3538, %v4053
        %v4055 = vpop.f32.mrb[0].mxu0
        %v4056 = vadd.f32 %v3542, %v4055
        %4057 = vdwg.mxu0
        %v4058 = vmul.f32 %v3740, 0.5
        %v4059 = vmul.f32 %v3742, 0.5
        %v4060 = vmul.f32 %v3744, 0.5
        %v4061 = vmul.f32 %v3746, 0.5
        %v4062 = vmul.f32 %v3750, 0.5
        %v4063 = vmul.f32 %v3752, 0.5
        %v4064 = vmul.f32 %v3754, 0.5
        %v4065 = vmul.f32 %v3756, 0.5
        %v4066 = vmul.f32 %v3760, 0.5
        %v4067 = vmul.f32 %v3762, 0.5
        %v4068 = vmul.f32 %v3764, 0.5
        %v4069 = vmul.f32 %v3766, 0.5
        %v4070 = vmul.f32 %v3770, 0.5
        %v4071 = vmul.f32 %v3772, 0.5
        %v4072 = vmul.f32 %v3774, 0.5
        %v4073 = vmul.f32 %v3776, 0.5
        %v4074 = vmul.f32 %v3780, 0.5
        %v4075 = vmul.f32 %v3782, 0.5
        %v4076 = vmul.f32 %v3784, 0.5
        %v4077 = vmul.f32 %v3786, 0.5
        %v4078 = vmul.f32 %v3790, 0.5
        %v4079 = vmul.f32 %v3792, 0.5
        %v4080 = vmul.f32 %v3794, 0.5
        %v4081 = vmul.f32 %v3796, 0.5
        %v4082 = vmul.f32 %v3800, 0.5
        %v4083 = vmul.f32 %v3802, 0.5
        %v4084 = vmul.f32 %v3804, 0.5
        %v4085 = vmul.f32 %v3806, 0.5
        %v4086 = vmul.f32 %v3810, 0.5
        %v4087 = vmul.f32 %v3812, 0.5
        %v4088 = vmul.f32 %v3814, 0.5
        %v4089 = vmul.f32 %v3816, 0.5
        %v4090 = vmul.f32 %v3820, 0.5
        %v4091 = vmul.f32 %v3822, 0.5
        %v4092 = vmul.f32 %v3824, 0.5
        %v4093 = vmul.f32 %v3826, 0.5
        %v4094 = vmul.f32 %v3830, 0.5
        %v4095 = vmul.f32 %v3832, 0.5
        %v4096 = vmul.f32 %v3834, 0.5
        %v4097 = vmul.f32 %v3836, 0.5
        %v4098 = vmul.f32 %v3840, 0.5
        %v4099 = vmul.f32 %v3842, 0.5
        %v4100 = vmul.f32 %v3844, 0.5
        %v4101 = vmul.f32 %v3846, 0.5
        %v4102 = vmul.f32 %v3850, 0.5
        %v4103 = vmul.f32 %v3852, 0.5
        %v4104 = vmul.f32 %v3854, 0.5
        %v4105 = vmul.f32 %v3856, 0.5
        %v4106 = vmul.f32 %v3860, 0.5
        %v4107 = vmul.f32 %v3862, 0.5
        %v4108 = vmul.f32 %v3864, 0.5
        %v4109 = vmul.f32 %v3866, 0.5
        %v4110 = vmul.f32 %v3870, 0.5
        %v4111 = vmul.f32 %v3872, 0.5
        %v4112 = vmul.f32 %v3874, 0.5
        %v4113 = vmul.f32 %v3876, 0.5
        %v4114 = vmul.f32 %v3880, 0.5
        %v4115 = vmul.f32 %v3882, 0.5
        %v4116 = vmul.f32 %v3884, 0.5
        %v4117 = vmul.f32 %v3886, 0.5
        %v4118 = vmul.f32 %v3890, 0.5
        %v4119 = vmul.f32 %v3892, 0.5
        %v4120 = vmul.f32 %v3894, 0.5
        %v4121 = vmul.f32 %v3896, 0.5
        %v4122 = vmul.f32 %v3900, 0.5
        %v4123 = vmul.f32 %v3902, 0.5
        %v4124 = vmul.f32 %v3904, 0.5
        %v4125 = vmul.f32 %v3906, 0.5
        %v4126 = vmul.f32 %v3910, 0.5
        %v4127 = vmul.f32 %v3912, 0.5
        %v4128 = vmul.f32 %v3914, 0.5
        %v4129 = vmul.f32 %v3916, 0.5
        %v4130 = vmul.f32 %v3920, 0.5
        %v4131 = vmul.f32 %v3922, 0.5
        %v4132 = vmul.f32 %v3924, 0.5
        %v4133 = vmul.f32 %v3926, 0.5
        %v4134 = vmul.f32 %v3930, 0.5
        %v4135 = vmul.f32 %v3932, 0.5
        %v4136 = vmul.f32 %v3934, 0.5
        %v4137 = vmul.f32 %v3936, 0.5
        %v4138 = vmul.f32 %v3940, 0.5
        %v4139 = vmul.f32 %v3942, 0.5
        %v4140 = vmul.f32 %v3944, 0.5
        %v4141 = vmul.f32 %v3946, 0.5
        %v4142 = vmul.f32 %v3950, 0.5
        %v4143 = vmul.f32 %v3952, 0.5
        %v4144 = vmul.f32 %v3954, 0.5
        %v4145 = vmul.f32 %v3956, 0.5
        %v4146 = vmul.f32 %v3960, 0.5
        %v4147 = vmul.f32 %v3962, 0.5
        %v4148 = vmul.f32 %v3964, 0.5
        %v4149 = vmul.f32 %v3966, 0.5
        %v4150 = vmul.f32 %v3970, 0.5
        %v4151 = vmul.f32 %v3972, 0.5
        %v4152 = vmul.f32 %v3974, 0.5
        %v4153 = vmul.f32 %v3976, 0.5
        %v4154 = vmul.f32 %v3980, 0.5
        %v4155 = vmul.f32 %v3982, 0.5
        %v4156 = vmul.f32 %v3984, 0.5
        %v4157 = vmul.f32 %v3986, 0.5
        %v4158 = vmul.f32 %v3990, 0.5
        %v4159 = vmul.f32 %v3992, 0.5
        %v4160 = vmul.f32 %v3994, 0.5
        %v4161 = vmul.f32 %v3996, 0.5
        %v4162 = vmul.f32 %v4000, 0.5
        %v4163 = vmul.f32 %v4002, 0.5
        %v4164 = vmul.f32 %v4004, 0.5
        %v4165 = vmul.f32 %v4006, 0.5
        %v4166 = vmul.f32 %v4010, 0.5
        %v4167 = vmul.f32 %v4012, 0.5
        %v4168 = vmul.f32 %v4014, 0.5
        %v4169 = vmul.f32 %v4016, 0.5
        %v4170 = vmul.f32 %v4020, 0.5
        %v4171 = vmul.f32 %v4022, 0.5
        %v4172 = vmul.f32 %v4024, 0.5
        %v4173 = vmul.f32 %v4026, 0.5
        %v4174 = vmul.f32 %v4030, 0.5
        %v4175 = vmul.f32 %v4032, 0.5
        %v4176 = vmul.f32 %v4034, 0.5
        %v4177 = vmul.f32 %v4036, 0.5
        %v4178 = vmul.f32 %v4040, 0.5
        %v4179 = vmul.f32 %v4042, 0.5
        %v4180 = vmul.f32 %v4044, 0.5
        %v4181 = vmul.f32 %v4046, 0.5
        %v4182 = vmul.f32 %v4050, 0.5
        %v4183 = vmul.f32 %v4052, 0.5
        %v4184 = vmul.f32 %v4054, 0.5
        %v4185 = vmul.f32 %v4056, 0.5
        %v4186 = vmul.f32 %v3740, 0.70710677
        %v4187 = vmul.f32 %v3742, 0.70710677
        %v4188 = vmul.f32 %v3744, 0.70710677
        %v4189 = vmul.f32 %v3746, 0.70710677
        %v4190 = vmul.f32 %v3750, 0.70710677
        %v4191 = vmul.f32 %v3752, 0.70710677
        %v4192 = vmul.f32 %v3754, 0.70710677
        %v4193 = vmul.f32 %v3756, 0.70710677
        %v4194 = vmul.f32 %v3760, 0.70710677
        %v4195 = vmul.f32 %v3762, 0.70710677
        %v4196 = vmul.f32 %v3764, 0.70710677
        %v4197 = vmul.f32 %v3766, 0.70710677
        %v4198 = vmul.f32 %v3770, 0.70710677
        %v4199 = vmul.f32 %v3772, 0.70710677
        %v4200 = vmul.f32 %v3774, 0.70710677
        %v4201 = vmul.f32 %v3776, 0.70710677
        %v4202 = vmul.f32 %v3780, 0.70710677
        %v4203 = vmul.f32 %v3782, 0.70710677
        %v4204 = vmul.f32 %v3784, 0.70710677
        %v4205 = vmul.f32 %v3786, 0.70710677
        %v4206 = vmul.f32 %v3790, 0.70710677
        %v4207 = vmul.f32 %v3792, 0.70710677
        %v4208 = vmul.f32 %v3794, 0.70710677
        %v4209 = vmul.f32 %v3796, 0.70710677
        %v4210 = vmul.f32 %v3800, 0.70710677
        %v4211 = vmul.f32 %v3802, 0.70710677
        %v4212 = vmul.f32 %v3804, 0.70710677
        %v4213 = vmul.f32 %v3806, 0.70710677
        %v4214 = vmul.f32 %v3810, 0.70710677
        %v4215 = vmul.f32 %v3812, 0.70710677
        %v4216 = vmul.f32 %v3814, 0.70710677
        %v4217 = vmul.f32 %v3816, 0.70710677
        %v4218 = vmul.f32 %v3820, 0.70710677
        %v4219 = vmul.f32 %v3822, 0.70710677
        %v4220 = vmul.f32 %v3824, 0.70710677
        %v4221 = vmul.f32 %v3826, 0.70710677
        %v4222 = vmul.f32 %v3830, 0.70710677
        %v4223 = vmul.f32 %v3832, 0.70710677
        %v4224 = vmul.f32 %v3834, 0.70710677
        %v4225 = vmul.f32 %v3836, 0.70710677
        %v4226 = vmul.f32 %v3840, 0.70710677
        %v4227 = vmul.f32 %v3842, 0.70710677
        %v4228 = vmul.f32 %v3844, 0.70710677
        %v4229 = vmul.f32 %v3846, 0.70710677
        %v4230 = vmul.f32 %v3850, 0.70710677
        %v4231 = vmul.f32 %v3852, 0.70710677
        %v4232 = vmul.f32 %v3854, 0.70710677
        %v4233 = vmul.f32 %v3856, 0.70710677
        %v4234 = vmul.f32 %v3860, 0.70710677
        %v4235 = vmul.f32 %v3862, 0.70710677
        %v4236 = vmul.f32 %v3864, 0.70710677
        %v4237 = vmul.f32 %v3866, 0.70710677
        %v4238 = vmul.f32 %v3870, 0.70710677
        %v4239 = vmul.f32 %v3872, 0.70710677
        %v4240 = vmul.f32 %v3874, 0.70710677
        %v4241 = vmul.f32 %v3876, 0.70710677
        %v4242 = vmul.f32 %v3880, 0.70710677
        %v4243 = vmul.f32 %v3882, 0.70710677
        %v4244 = vmul.f32 %v3884, 0.70710677
        %v4245 = vmul.f32 %v3886, 0.70710677
        %v4246 = vmul.f32 %v3890, 0.70710677
        %v4247 = vmul.f32 %v3892, 0.70710677
        %v4248 = vmul.f32 %v3894, 0.70710677
        %v4249 = vmul.f32 %v3896, 0.70710677
        %v4250 = vmul.f32 %v3900, 0.70710677
        %v4251 = vmul.f32 %v3902, 0.70710677
        %v4252 = vmul.f32 %v3904, 0.70710677
        %v4253 = vmul.f32 %v3906, 0.70710677
        %v4254 = vmul.f32 %v3910, 0.70710677
        %v4255 = vmul.f32 %v3912, 0.70710677
        %v4256 = vmul.f32 %v3914, 0.70710677
        %v4257 = vmul.f32 %v3916, 0.70710677
        %v4258 = vmul.f32 %v3920, 0.70710677
        %v4259 = vmul.f32 %v3922, 0.70710677
        %v4260 = vmul.f32 %v3924, 0.70710677
        %v4261 = vmul.f32 %v3926, 0.70710677
        %v4262 = vmul.f32 %v3930, 0.70710677
        %v4263 = vmul.f32 %v3932, 0.70710677
        %v4264 = vmul.f32 %v3934, 0.70710677
        %v4265 = vmul.f32 %v3936, 0.70710677
        %v4266 = vmul.f32 %v3940, 0.70710677
        %v4267 = vmul.f32 %v3942, 0.70710677
        %v4268 = vmul.f32 %v3944, 0.70710677
        %v4269 = vmul.f32 %v3946, 0.70710677
        %v4270 = vmul.f32 %v3950, 0.70710677
        %v4271 = vmul.f32 %v3952, 0.70710677
        %v4272 = vmul.f32 %v3954, 0.70710677
        %v4273 = vmul.f32 %v3956, 0.70710677
        %v4274 = vmul.f32 %v3960, 0.70710677
        %v4275 = vmul.f32 %v3962, 0.70710677
        %v4276 = vmul.f32 %v3964, 0.70710677
        %v4277 = vmul.f32 %v3966, 0.70710677
        %v4278 = vmul.f32 %v3970, 0.70710677
        %v4279 = vmul.f32 %v3972, 0.70710677
        %v4280 = vmul.f32 %v3974, 0.70710677
        %v4281 = vmul.f32 %v3976, 0.70710677
        %v4282 = vmul.f32 %v3980, 0.70710677
        %v4283 = vmul.f32 %v3982, 0.70710677
        %v4284 = vmul.f32 %v3984, 0.70710677
        %v4285 = vmul.f32 %v3986, 0.70710677
        %v4286 = vmul.f32 %v3990, 0.70710677
        %v4287 = vmul.f32 %v3992, 0.70710677
        %v4288 = vmul.f32 %v3994, 0.70710677
        %v4289 = vmul.f32 %v3996, 0.70710677
        %v4290 = vmul.f32 %v4000, 0.70710677
        %v4291 = vmul.f32 %v4002, 0.70710677
        %v4292 = vmul.f32 %v4004, 0.70710677
        %v4293 = vmul.f32 %v4006, 0.70710677
        %v4294 = vmul.f32 %v4010, 0.70710677
        %v4295 = vmul.f32 %v4012, 0.70710677
        %v4296 = vmul.f32 %v4014, 0.70710677
        %v4297 = vmul.f32 %v4016, 0.70710677
        %v4298 = vmul.f32 %v4020, 0.70710677
        %v4299 = vmul.f32 %v4022, 0.70710677
        %v4300 = vmul.f32 %v4024, 0.70710677
        %v4301 = vmul.f32 %v4026, 0.70710677
        %v4302 = vmul.f32 %v4030, 0.70710677
        %v4303 = vmul.f32 %v4032, 0.70710677
        %v4304 = vmul.f32 %v4034, 0.70710677
        %v4305 = vmul.f32 %v4036, 0.70710677
        %v4306 = vmul.f32 %v4040, 0.70710677
        %v4307 = vmul.f32 %v4042, 0.70710677
        %v4308 = vmul.f32 %v4044, 0.70710677
        %v4309 = vmul.f32 %v4046, 0.70710677
        %v4310 = vmul.f32 %v4050, 0.70710677
        %v4311 = vmul.f32 %v4052, 0.70710677
        %v4312 = vmul.f32 %v4054, 0.70710677
        %v4313 = vmul.f32 %v4056, 0.70710677
        %v4314 = verf.f32.pop %v4186
        %v4315 = verf.f32.pop %v4187
        %v4316 = verf.f32.pop %v4188
        %v4317 = verf.f32.pop %v4189
        %v4318 = verf.f32.pop %v4190
        %v4319 = verf.f32.pop %v4191
        %v4320 = verf.f32.pop %v4192
        %v4321 = verf.f32.pop %v4193
        %v4322 = verf.f32.pop %v4194
        %v4323 = verf.f32.pop %v4195
        %v4324 = verf.f32.pop %v4196
        %v4325 = verf.f32.pop %v4197
        %v4326 = verf.f32.pop %v4198
        %v4327 = verf.f32.pop %v4199
        %v4328 = verf.f32.pop %v4200
        %v4329 = verf.f32.pop %v4201
        %v4330 = verf.f32.pop %v4202
        %v4331 = verf.f32.pop %v4203
        %v4332 = verf.f32.pop %v4204
        %v4333 = verf.f32.pop %v4205
        %v4334 = verf.f32.pop %v4206
        %v4335 = verf.f32.pop %v4207
        %v4336 = verf.f32.pop %v4208
        %v4337 = verf.f32.pop %v4209
        %v4338 = verf.f32.pop %v4210
        %v4339 = verf.f32.pop %v4211
        %v4340 = verf.f32.pop %v4212
        %v4341 = verf.f32.pop %v4213
        %v4342 = verf.f32.pop %v4214
        %v4343 = verf.f32.pop %v4215
        %v4344 = verf.f32.pop %v4216
        %v4345 = verf.f32.pop %v4217
        %v4346 = verf.f32.pop %v4218
        %v4347 = verf.f32.pop %v4219
        %v4348 = verf.f32.pop %v4220
        %v4349 = verf.f32.pop %v4221
        %v4350 = verf.f32.pop %v4222
        %v4351 = verf.f32.pop %v4223
        %v4352 = verf.f32.pop %v4224
        %v4353 = verf.f32.pop %v4225
        %v4354 = verf.f32.pop %v4226
        %v4355 = verf.f32.pop %v4227
        %v4356 = verf.f32.pop %v4228
        %v4357 = verf.f32.pop %v4229
        %v4358 = verf.f32.pop %v4230
        %v4359 = verf.f32.pop %v4231
        %v4360 = verf.f32.pop %v4232
        %v4361 = verf.f32.pop %v4233
        %v4362 = verf.f32.pop %v4234
        %v4363 = verf.f32.pop %v4235
        %v4364 = verf.f32.pop %v4236
        %v4365 = verf.f32.pop %v4237
        %v4366 = verf.f32.pop %v4238
        %v4367 = verf.f32.pop %v4239
        %v4368 = verf.f32.pop %v4240
        %v4369 = verf.f32.pop %v4241
        %v4370 = verf.f32.pop %v4242
        %v4371 = verf.f32.pop %v4243
        %v4372 = verf.f32.pop %v4244
        %v4373 = verf.f32.pop %v4245
        %v4374 = verf.f32.pop %v4246
        %v4375 = verf.f32.pop %v4247
        %v4376 = verf.f32.pop %v4248
        %v4377 = verf.f32.pop %v4249
        %v4378 = verf.f32.pop %v4250
        %v4379 = verf.f32.pop %v4251
        %v4380 = verf.f32.pop %v4252
        %v4381 = verf.f32.pop %v4253
        %v4382 = verf.f32.pop %v4254
        %v4383 = verf.f32.pop %v4255
        %v4384 = verf.f32.pop %v4256
        %v4385 = verf.f32.pop %v4257
        %v4386 = verf.f32.pop %v4258
        %v4387 = verf.f32.pop %v4259
        %v4388 = verf.f32.pop %v4260
        %v4389 = verf.f32.pop %v4261
        %v4390 = verf.f32.pop %v4262
        %v4391 = verf.f32.pop %v4263
        %v4392 = verf.f32.pop %v4264
        %v4393 = verf.f32.pop %v4265
        %v4394 = verf.f32.pop %v4266
        %v4395 = verf.f32.pop %v4267
        %v4396 = verf.f32.pop %v4268
        %v4397 = verf.f32.pop %v4269
        %v4398 = verf.f32.pop %v4270
        %v4399 = verf.f32.pop %v4271
        %v4400 = verf.f32.pop %v4272
        %v4401 = verf.f32.pop %v4273
        %v4402 = verf.f32.pop %v4274
        %v4403 = verf.f32.pop %v4275
        %v4404 = verf.f32.pop %v4276
        %v4405 = verf.f32.pop %v4277
        %v4406 = verf.f32.pop %v4278
        %v4407 = verf.f32.pop %v4279
        %v4408 = verf.f32.pop %v4280
        %v4409 = verf.f32.pop %v4281
        %v4410 = verf.f32.pop %v4282
        %v4411 = verf.f32.pop %v4283
        %v4412 = verf.f32.pop %v4284
        %v4413 = verf.f32.pop %v4285
        %v4414 = verf.f32.pop %v4286
        %v4415 = verf.f32.pop %v4287
        %v4416 = verf.f32.pop %v4288
        %v4417 = verf.f32.pop %v4289
        %v4418 = verf.f32.pop %v4290
        %v4419 = verf.f32.pop %v4291
        %v4420 = verf.f32.pop %v4292
        %v4421 = verf.f32.pop %v4293
        %v4422 = verf.f32.pop %v4294
        %v4423 = verf.f32.pop %v4295
        %v4424 = verf.f32.pop %v4296
        %v4425 = verf.f32.pop %v4297
        %v4426 = verf.f32.pop %v4298
        %v4427 = verf.f32.pop %v4299
        %v4428 = verf.f32.pop %v4300
        %v4429 = verf.f32.pop %v4301
        %v4430 = verf.f32.pop %v4302
        %v4431 = verf.f32.pop %v4303
        %v4432 = verf.f32.pop %v4304
        %v4433 = verf.f32.pop %v4305
        %v4434 = verf.f32.pop %v4306
        %v4435 = verf.f32.pop %v4307
        %v4436 = verf.f32.pop %v4308
        %v4437 = verf.f32.pop %v4309
        %v4438 = verf.f32.pop %v4310
        %v4439 = verf.f32.pop %v4311
        %v4440 = verf.f32.pop %v4312
        %v4441 = verf.f32.pop %v4313
        %v4442 = vadd.f32 %v4314, 1.0
        %v4443 = vadd.f32 %v4315, 1.0
        %v4444 = vadd.f32 %v4316, 1.0
        %v4445 = vadd.f32 %v4317, 1.0
        %v4446 = vadd.f32 %v4318, 1.0
        %v4447 = vadd.f32 %v4319, 1.0
        %v4448 = vadd.f32 %v4320, 1.0
        %v4449 = vadd.f32 %v4321, 1.0
        %v4450 = vadd.f32 %v4322, 1.0
        %v4451 = vadd.f32 %v4323, 1.0
        %v4452 = vadd.f32 %v4324, 1.0
        %v4453 = vadd.f32 %v4325, 1.0
        %v4454 = vadd.f32 %v4326, 1.0
        %v4455 = vadd.f32 %v4327, 1.0
        %v4456 = vadd.f32 %v4328, 1.0
        %v4457 = vadd.f32 %v4329, 1.0
        %v4458 = vadd.f32 %v4330, 1.0
        %v4459 = vadd.f32 %v4331, 1.0
        %v4460 = vadd.f32 %v4332, 1.0
        %v4461 = vadd.f32 %v4333, 1.0
        %v4462 = vadd.f32 %v4334, 1.0
        %v4463 = vadd.f32 %v4335, 1.0
        %v4464 = vadd.f32 %v4336, 1.0
        %v4465 = vadd.f32 %v4337, 1.0
        %v4466 = vadd.f32 %v4338, 1.0
        %v4467 = vadd.f32 %v4339, 1.0
        %v4468 = vadd.f32 %v4340, 1.0
        %v4469 = vadd.f32 %v4341, 1.0
        %v4470 = vadd.f32 %v4342, 1.0
        %v4471 = vadd.f32 %v4343, 1.0
        %v4472 = vadd.f32 %v4344, 1.0
        %v4473 = vadd.f32 %v4345, 1.0
        %v4474 = vadd.f32 %v4346, 1.0
        %v4475 = vadd.f32 %v4347, 1.0
        %v4476 = vadd.f32 %v4348, 1.0
        %v4477 = vadd.f32 %v4349, 1.0
        %v4478 = vadd.f32 %v4350, 1.0
        %v4479 = vadd.f32 %v4351, 1.0
        %v4480 = vadd.f32 %v4352, 1.0
        %v4481 = vadd.f32 %v4353, 1.0
        %v4482 = vadd.f32 %v4354, 1.0
        %v4483 = vadd.f32 %v4355, 1.0
        %v4484 = vadd.f32 %v4356, 1.0
        %v4485 = vadd.f32 %v4357, 1.0
        %v4486 = vadd.f32 %v4358, 1.0
        %v4487 = vadd.f32 %v4359, 1.0
        %v4488 = vadd.f32 %v4360, 1.0
        %v4489 = vadd.f32 %v4361, 1.0
        %v4490 = vadd.f32 %v4362, 1.0
        %v4491 = vadd.f32 %v4363, 1.0
        %v4492 = vadd.f32 %v4364, 1.0
        %v4493 = vadd.f32 %v4365, 1.0
        %v4494 = vadd.f32 %v4366, 1.0
        %v4495 = vadd.f32 %v4367, 1.0
        %v4496 = vadd.f32 %v4368, 1.0
        %v4497 = vadd.f32 %v4369, 1.0
        %v4498 = vadd.f32 %v4370, 1.0
        %v4499 = vadd.f32 %v4371, 1.0
        %v4500 = vadd.f32 %v4372, 1.0
        %v4501 = vadd.f32 %v4373, 1.0
        %v4502 = vadd.f32 %v4374, 1.0
        %v4503 = vadd.f32 %v4375, 1.0
        %v4504 = vadd.f32 %v4376, 1.0
        %v4505 = vadd.f32 %v4377, 1.0
        %v4506 = vadd.f32 %v4378, 1.0
        %v4507 = vadd.f32 %v4379, 1.0
        %v4508 = vadd.f32 %v4380, 1.0
        %v4509 = vadd.f32 %v4381, 1.0
        %v4510 = vadd.f32 %v4382, 1.0
        %v4511 = vadd.f32 %v4383, 1.0
        %v4512 = vadd.f32 %v4384, 1.0
        %v4513 = vadd.f32 %v4385, 1.0
        %v4514 = vadd.f32 %v4386, 1.0
        %v4515 = vadd.f32 %v4387, 1.0
        %v4516 = vadd.f32 %v4388, 1.0
        %v4517 = vadd.f32 %v4389, 1.0
        %v4518 = vadd.f32 %v4390, 1.0
        %v4519 = vadd.f32 %v4391, 1.0
        %v4520 = vadd.f32 %v4392, 1.0
        %v4521 = vadd.f32 %v4393, 1.0
        %v4522 = vadd.f32 %v4394, 1.0
        %v4523 = vadd.f32 %v4395, 1.0
        %v4524 = vadd.f32 %v4396, 1.0
        %v4525 = vadd.f32 %v4397, 1.0
        %v4526 = vadd.f32 %v4398, 1.0
        %v4527 = vadd.f32 %v4399, 1.0
        %v4528 = vadd.f32 %v4400, 1.0
        %v4529 = vadd.f32 %v4401, 1.0
        %v4530 = vadd.f32 %v4402, 1.0
        %v4531 = vadd.f32 %v4403, 1.0
        %v4532 = vadd.f32 %v4404, 1.0
        %v4533 = vadd.f32 %v4405, 1.0
        %v4534 = vadd.f32 %v4406, 1.0
        %v4535 = vadd.f32 %v4407, 1.0
        %v4536 = vadd.f32 %v4408, 1.0
        %v4537 = vadd.f32 %v4409, 1.0
        %v4538 = vadd.f32 %v4410, 1.0
        %v4539 = vadd.f32 %v4411, 1.0
        %v4540 = vadd.f32 %v4412, 1.0
        %v4541 = vadd.f32 %v4413, 1.0
        %v4542 = vadd.f32 %v4414, 1.0
        %v4543 = vadd.f32 %v4415, 1.0
        %v4544 = vadd.f32 %v4416, 1.0
        %v4545 = vadd.f32 %v4417, 1.0
        %v4546 = vadd.f32 %v4418, 1.0
        %v4547 = vadd.f32 %v4419, 1.0
        %v4548 = vadd.f32 %v4420, 1.0
        %v4549 = vadd.f32 %v4421, 1.0
        %v4550 = vadd.f32 %v4422, 1.0
        %v4551 = vadd.f32 %v4423, 1.0
        %v4552 = vadd.f32 %v4424, 1.0
        %v4553 = vadd.f32 %v4425, 1.0
        %v4554 = vadd.f32 %v4426, 1.0
        %v4555 = vadd.f32 %v4427, 1.0
        %v4556 = vadd.f32 %v4428, 1.0
        %v4557 = vadd.f32 %v4429, 1.0
        %v4558 = vadd.f32 %v4430, 1.0
        %v4559 = vadd.f32 %v4431, 1.0
        %v4560 = vadd.f32 %v4432, 1.0
        %v4561 = vadd.f32 %v4433, 1.0
        %v4562 = vadd.f32 %v4434, 1.0
        %v4563 = vadd.f32 %v4435, 1.0
        %v4564 = vadd.f32 %v4436, 1.0
        %v4565 = vadd.f32 %v4437, 1.0
        %v4566 = vadd.f32 %v4438, 1.0
        %v4567 = vadd.f32 %v4439, 1.0
        %v4568 = vadd.f32 %v4440, 1.0
        %v4569 = vadd.f32 %v4441, 1.0
        %v4570 = vmul.f32 %v4058, %v4442
        %v4571 = vmul.f32 %v4059, %v4443
        %v4572 = vmul.f32 %v4060, %v4444
        %v4573 = vmul.f32 %v4061, %v4445
        %v4574 = vmul.f32 %v4062, %v4446
        %v4575 = vmul.f32 %v4063, %v4447
        %v4576 = vmul.f32 %v4064, %v4448
        %v4577 = vmul.f32 %v4065, %v4449
        %v4578 = vmul.f32 %v4066, %v4450
        %v4579 = vmul.f32 %v4067, %v4451
        %v4580 = vmul.f32 %v4068, %v4452
        %v4581 = vmul.f32 %v4069, %v4453
        %v4582 = vmul.f32 %v4070, %v4454
        %v4583 = vmul.f32 %v4071, %v4455
        %v4584 = vmul.f32 %v4072, %v4456
        %v4585 = vmul.f32 %v4073, %v4457
        %v4586 = vmul.f32 %v4074, %v4458
        %v4587 = vmul.f32 %v4075, %v4459
        %v4588 = vmul.f32 %v4076, %v4460
        %v4589 = vmul.f32 %v4077, %v4461
        %v4590 = vmul.f32 %v4078, %v4462
        %v4591 = vmul.f32 %v4079, %v4463
        %v4592 = vmul.f32 %v4080, %v4464
        %v4593 = vmul.f32 %v4081, %v4465
        %v4594 = vmul.f32 %v4082, %v4466
        %v4595 = vmul.f32 %v4083, %v4467
        %v4596 = vmul.f32 %v4084, %v4468
        %v4597 = vmul.f32 %v4085, %v4469
        %v4598 = vmul.f32 %v4086, %v4470
        %v4599 = vmul.f32 %v4087, %v4471
        %v4600 = vmul.f32 %v4088, %v4472
        %v4601 = vmul.f32 %v4089, %v4473
        %v4602 = vmul.f32 %v4090, %v4474
        %v4603 = vmul.f32 %v4091, %v4475
        %v4604 = vmul.f32 %v4092, %v4476
        %v4605 = vmul.f32 %v4093, %v4477
        %v4606 = vmul.f32 %v4094, %v4478
        %v4607 = vmul.f32 %v4095, %v4479
        %v4608 = vmul.f32 %v4096, %v4480
        %v4609 = vmul.f32 %v4097, %v4481
        %v4610 = vmul.f32 %v4098, %v4482
        %v4611 = vmul.f32 %v4099, %v4483
        %v4612 = vmul.f32 %v4100, %v4484
        %v4613 = vmul.f32 %v4101, %v4485
        %v4614 = vmul.f32 %v4102, %v4486
        %v4615 = vmul.f32 %v4103, %v4487
        %v4616 = vmul.f32 %v4104, %v4488
        %v4617 = vmul.f32 %v4105, %v4489
        %v4618 = vmul.f32 %v4106, %v4490
        %v4619 = vmul.f32 %v4107, %v4491
        %v4620 = vmul.f32 %v4108, %v4492
        %v4621 = vmul.f32 %v4109, %v4493
        %v4622 = vmul.f32 %v4110, %v4494
        %v4623 = vmul.f32 %v4111, %v4495
        %v4624 = vmul.f32 %v4112, %v4496
        %v4625 = vmul.f32 %v4113, %v4497
        %v4626 = vmul.f32 %v4114, %v4498
        %v4627 = vmul.f32 %v4115, %v4499
        %v4628 = vmul.f32 %v4116, %v4500
        %v4629 = vmul.f32 %v4117, %v4501
        %v4630 = vmul.f32 %v4118, %v4502
        %v4631 = vmul.f32 %v4119, %v4503
        %v4632 = vmul.f32 %v4120, %v4504
        %v4633 = vmul.f32 %v4121, %v4505
        %v4634 = vmul.f32 %v4122, %v4506
        %v4635 = vmul.f32 %v4123, %v4507
        %v4636 = vmul.f32 %v4124, %v4508
        %v4637 = vmul.f32 %v4125, %v4509
        %v4638 = vmul.f32 %v4126, %v4510
        %v4639 = vmul.f32 %v4127, %v4511
        %v4640 = vmul.f32 %v4128, %v4512
        %v4641 = vmul.f32 %v4129, %v4513
        %v4642 = vmul.f32 %v4130, %v4514
        %v4643 = vmul.f32 %v4131, %v4515
        %v4644 = vmul.f32 %v4132, %v4516
        %v4645 = vmul.f32 %v4133, %v4517
        %v4646 = vmul.f32 %v4134, %v4518
        %v4647 = vmul.f32 %v4135, %v4519
        %v4648 = vmul.f32 %v4136, %v4520
        %v4649 = vmul.f32 %v4137, %v4521
        %v4650 = vmul.f32 %v4138, %v4522
        %v4651 = vmul.f32 %v4139, %v4523
        %v4652 = vmul.f32 %v4140, %v4524
        %v4653 = vmul.f32 %v4141, %v4525
        %v4654 = vmul.f32 %v4142, %v4526
        %v4655 = vmul.f32 %v4143, %v4527
        %v4656 = vmul.f32 %v4144, %v4528
        %v4657 = vmul.f32 %v4145, %v4529
        %v4658 = vmul.f32 %v4146, %v4530
        %v4659 = vmul.f32 %v4147, %v4531
        %v4660 = vmul.f32 %v4148, %v4532
        %v4661 = vmul.f32 %v4149, %v4533
        %v4662 = vmul.f32 %v4150, %v4534
        %v4663 = vmul.f32 %v4151, %v4535
        %v4664 = vmul.f32 %v4152, %v4536
        %v4665 = vmul.f32 %v4153, %v4537
        %v4666 = vmul.f32 %v4154, %v4538
        %v4667 = vmul.f32 %v4155, %v4539
        %v4668 = vmul.f32 %v4156, %v4540
        %v4669 = vmul.f32 %v4157, %v4541
        %v4670 = vmul.f32 %v4158, %v4542
        %v4671 = vmul.f32 %v4159, %v4543
        %v4672 = vmul.f32 %v4160, %v4544
        %v4673 = vmul.f32 %v4161, %v4545
        %v4674 = vmul.f32 %v4162, %v4546
        %v4675 = vmul.f32 %v4163, %v4547
        %v4676 = vmul.f32 %v4164, %v4548
        %v4677 = vmul.f32 %v4165, %v4549
        %v4678 = vmul.f32 %v4166, %v4550
        %v4679 = vmul.f32 %v4167, %v4551
        %v4680 = vmul.f32 %v4168, %v4552
        %v4681 = vmul.f32 %v4169, %v4553
        %v4682 = vmul.f32 %v4170, %v4554
        %v4683 = vmul.f32 %v4171, %v4555
        %v4684 = vmul.f32 %v4172, %v4556
        %v4685 = vmul.f32 %v4173, %v4557
        %v4686 = vmul.f32 %v4174, %v4558
        %v4687 = vmul.f32 %v4175, %v4559
        %v4688 = vmul.f32 %v4176, %v4560
        %v4689 = vmul.f32 %v4177, %v4561
        %v4690 = vmul.f32 %v4178, %v4562
        %v4691 = vmul.f32 %v4179, %v4563
        %v4692 = vmul.f32 %v4180, %v4564
        %v4693 = vmul.f32 %v4181, %v4565
        %v4694 = vmul.f32 %v4182, %v4566
        %v4695 = vmul.f32 %v4183, %v4567
        %v4696 = vmul.f32 %v4184, %v4568
        %v4697 = vmul.f32 %v4185, %v4569
        %v4698 = vpack.c.bf16 %v4572, %v4570
        %v4699 = vpack.c.bf16 %v4573, %v4571
        %v4700 = vpack.c.bf16 %v4576, %v4574
        %v4701 = vpack.c.bf16 %v4577, %v4575
        %v4702 = vpack.c.bf16 %v4580, %v4578
        %v4703 = vpack.c.bf16 %v4581, %v4579
        %v4704 = vpack.c.bf16 %v4584, %v4582
        %v4705 = vpack.c.bf16 %v4585, %v4583
        %v4706 = vpack.c.bf16 %v4588, %v4586
        %v4707 = vpack.c.bf16 %v4589, %v4587
        %v4708 = vpack.c.bf16 %v4592, %v4590
        %v4709 = vpack.c.bf16 %v4593, %v4591
        %v4710 = vpack.c.bf16 %v4596, %v4594
        %v4711 = vpack.c.bf16 %v4597, %v4595
        %v4712 = vpack.c.bf16 %v4600, %v4598
        %v4713 = vpack.c.bf16 %v4601, %v4599
        %v4714 = vpack.c.bf16 %v4604, %v4602
        %v4715 = vpack.c.bf16 %v4605, %v4603
        %v4716 = vpack.c.bf16 %v4608, %v4606
        %v4717 = vpack.c.bf16 %v4609, %v4607
        %v4718 = vpack.c.bf16 %v4612, %v4610
        %v4719 = vpack.c.bf16 %v4613, %v4611
        %v4720 = vpack.c.bf16 %v4616, %v4614
        %v4721 = vpack.c.bf16 %v4617, %v4615
        %v4722 = vpack.c.bf16 %v4620, %v4618
        %v4723 = vpack.c.bf16 %v4621, %v4619
        %v4724 = vpack.c.bf16 %v4624, %v4622
        %v4725 = vpack.c.bf16 %v4625, %v4623
        %v4726 = vpack.c.bf16 %v4628, %v4626
        %v4727 = vpack.c.bf16 %v4629, %v4627
        %v4728 = vpack.c.bf16 %v4632, %v4630
        %v4729 = vpack.c.bf16 %v4633, %v4631
        %v4730 = vpack.c.bf16 %v4636, %v4634
        %v4731 = vpack.c.bf16 %v4637, %v4635
        %v4732 = vpack.c.bf16 %v4640, %v4638
        %v4733 = vpack.c.bf16 %v4641, %v4639
        %v4734 = vpack.c.bf16 %v4644, %v4642
        %v4735 = vpack.c.bf16 %v4645, %v4643
        %v4736 = vpack.c.bf16 %v4648, %v4646
        %v4737 = vpack.c.bf16 %v4649, %v4647
        %v4738 = vpack.c.bf16 %v4652, %v4650
        %v4739 = vpack.c.bf16 %v4653, %v4651
        %v4740 = vpack.c.bf16 %v4656, %v4654
        %v4741 = vpack.c.bf16 %v4657, %v4655
        %v4742 = vpack.c.bf16 %v4660, %v4658
        %v4743 = vpack.c.bf16 %v4661, %v4659
        %v4744 = vpack.c.bf16 %v4664, %v4662
        %v4745 = vpack.c.bf16 %v4665, %v4663
        %v4746 = vpack.c.bf16 %v4668, %v4666
        %v4747 = vpack.c.bf16 %v4669, %v4667
        %v4748 = vpack.c.bf16 %v4672, %v4670
        %v4749 = vpack.c.bf16 %v4673, %v4671
        %v4750 = vpack.c.bf16 %v4676, %v4674
        %v4751 = vpack.c.bf16 %v4677, %v4675
        %v4752 = vpack.c.bf16 %v4680, %v4678
        %v4753 = vpack.c.bf16 %v4681, %v4679
        %v4754 = vpack.c.bf16 %v4684, %v4682
        %v4755 = vpack.c.bf16 %v4685, %v4683
        %v4756 = vpack.c.bf16 %v4688, %v4686
        %v4757 = vpack.c.bf16 %v4689, %v4687
        %v4758 = vpack.c.bf16 %v4692, %v4690
        %v4759 = vpack.c.bf16 %v4693, %v4691
        %v4760 = vpack.c.bf16 %v4696, %v4694
        %v4761 = vpack.c.bf16 %v4697, %v4695
        %v4762 = vld [vmem:[%s12] sm:$0xf]
        %v4763 = vld [vmem:[%s12 + $0x4] sm:$0xf]
        %v4764 = vld [vmem:[%s12 + $0x8] sm:$0xf]
        %v4765 = vld [vmem:[%s12 + $0xc] sm:$0xf]
        %v4766 = vld [vmem:[%s12 + $0x10] sm:$0xf]
        %v4767 = vld [vmem:[%s12 + $0x14] sm:$0xf]
        %v4768 = vld [vmem:[%s12 + $0x18] sm:$0xf]
        %v4769 = vld [vmem:[%s12 + $0x1c] sm:$0xf]
        %v4770 = vld [vmem:[%s12 + $0x20] sm:$0xf]
        %v4771 = vld [vmem:[%s12 + $0x24] sm:$0xf]
        %v4772 = vld [vmem:[%s12 + $0x28] sm:$0xf]
        %v4773 = vld [vmem:[%s12 + $0x2c] sm:$0xf]
        %v4774 = vld [vmem:[%s12 + $0x30] sm:$0xf]
        %v4775 = vld [vmem:[%s12 + $0x34] sm:$0xf]
        %v4776 = vld [vmem:[%s12 + $0x38] sm:$0xf]
        %v4777 = vld [vmem:[%s12 + $0x3c] sm:$0xf]
        %v4778 = vld [vmem:[%s12 + $0x40] sm:$0xf]
        %v4779 = vld [vmem:[%s12 + $0x44] sm:$0xf]
        %v4780 = vld [vmem:[%s12 + $0x48] sm:$0xf]
        %v4781 = vld [vmem:[%s12 + $0x4c] sm:$0xf]
        %v4782 = vld [vmem:[%s12 + $0x50] sm:$0xf]
        %v4783 = vld [vmem:[%s12 + $0x54] sm:$0xf]
        %v4784 = vld [vmem:[%s12 + $0x58] sm:$0xf]
        %v4785 = vld [vmem:[%s12 + $0x5c] sm:$0xf]
        %v4786 = vld [vmem:[%s12 + $0x60] sm:$0xf]
        %v4787 = vld [vmem:[%s12 + $0x64] sm:$0xf]
        %v4788 = vld [vmem:[%s12 + $0x68] sm:$0xf]
        %v4789 = vld [vmem:[%s12 + $0x6c] sm:$0xf]
        %v4790 = vld [vmem:[%s12 + $0x70] sm:$0xf]
        %v4791 = vld [vmem:[%s12 + $0x74] sm:$0xf]
        %v4792 = vld [vmem:[%s12 + $0x78] sm:$0xf]
        %v4793 = vld [vmem:[%s12 + $0x7c] sm:$0xf]
        %v4794 = vld [vmem:[%s13] sm:$0x1]
        %v4796 = vlaneseq
        %v4797 = vshrl.u32 %v4796, 7
        %v4798 = vsub.s32 0, %v4797
        %v4799 = vrot.slane %v4794, %v4798
        %v4833 = vunpack.c.l.b16 %v4762
        %v4834 = vunpack.c.l.b16 %v4763
        %v4835 = vunpack.c.l.b16 %v4764
        %v4836 = vunpack.c.l.b16 %v4765
        %v4837 = vunpack.c.l.b16 %v4766
        %v4838 = vunpack.c.l.b16 %v4767
        %v4839 = vunpack.c.l.b16 %v4768
        %v4840 = vunpack.c.l.b16 %v4769
        %v4841 = vunpack.c.l.b16 %v4770
        %v4842 = vunpack.c.l.b16 %v4771
        %v4843 = vunpack.c.l.b16 %v4772
        %v4844 = vunpack.c.l.b16 %v4773
        %v4845 = vunpack.c.l.b16 %v4774
        %v4846 = vunpack.c.l.b16 %v4775
        %v4847 = vunpack.c.l.b16 %v4776
        %v4848 = vunpack.c.l.b16 %v4777
        %v4849 = vunpack.c.l.b16 %v4778
        %v4850 = vunpack.c.l.b16 %v4779
        %v4851 = vunpack.c.l.b16 %v4780
        %v4852 = vunpack.c.l.b16 %v4781
        %v4853 = vunpack.c.l.b16 %v4782
        %v4854 = vunpack.c.l.b16 %v4783
        %v4855 = vunpack.c.l.b16 %v4784
        %v4856 = vunpack.c.l.b16 %v4785
        %v4857 = vunpack.c.l.b16 %v4786
        %v4858 = vunpack.c.l.b16 %v4787
        %v4859 = vunpack.c.l.b16 %v4788
        %v4860 = vunpack.c.l.b16 %v4789
        %v4861 = vunpack.c.l.b16 %v4790
        %v4862 = vunpack.c.l.b16 %v4791
        %v4863 = vunpack.c.l.b16 %v4792
        %v4864 = vunpack.c.l.b16 %v4793
        %v4865 = vpack.c.b16 %v4834, %v4833
        %v4866 = vpack.c.b16 %v4836, %v4835
        %v4867 = vpack.c.b16 %v4838, %v4837
        %v4868 = vpack.c.b16 %v4840, %v4839
        %v4869 = vpack.c.b16 %v4842, %v4841
        %v4870 = vpack.c.b16 %v4844, %v4843
        %v4871 = vpack.c.b16 %v4846, %v4845
        %v4872 = vpack.c.b16 %v4848, %v4847
        %v4873 = vpack.c.b16 %v4850, %v4849
        %v4874 = vpack.c.b16 %v4852, %v4851
        %v4875 = vpack.c.b16 %v4854, %v4853
        %v4876 = vpack.c.b16 %v4856, %v4855
        %v4877 = vpack.c.b16 %v4858, %v4857
        %v4878 = vpack.c.b16 %v4860, %v4859
        %v4879 = vpack.c.b16 %v4862, %v4861
        %v4880 = vpack.c.b16 %v4864, %v4863
        %4897 = vmatprep.subr.bf16.mxu0 0
        %4898 = vmatpush1.bf16.msra.mxu0 %v4865
        %4899 = vmatprep.subr.bf16.mxu0 0
        %4900 = vmatpush1.bf16.msra.mxu0 %v4866
        %4901 = vmatprep.subr.bf16.mxu0 0
        %4902 = vmatpush1.bf16.msra.mxu0 %v4867
        %4903 = vmatprep.subr.bf16.mxu0 0
        %4904 = vmatpush1.bf16.msra.mxu0 %v4868
        %4905 = vmatprep.subr.bf16.mxu0 0
        %4906 = vmatpush1.bf16.msra.mxu0 %v4869
        %4907 = vmatprep.subr.bf16.mxu0 0
        %4908 = vmatpush1.bf16.msra.mxu0 %v4870
        %4909 = vmatprep.subr.bf16.mxu0 0
        %4910 = vmatpush1.bf16.msra.mxu0 %v4871
        %4911 = vmatprep.subr.bf16.mxu0 0
        %4912 = vmatpush1.bf16.msra.mxu0 %v4872
        %4913 = vmatprep.subr.bf16.mxu0 0
        %4914 = vmatpush1.bf16.msra.mxu0 %v4873
        %4915 = vmatprep.subr.bf16.mxu0 0
        %4916 = vmatpush1.bf16.msra.mxu0 %v4874
        %4917 = vmatprep.subr.bf16.mxu0 0
        %4918 = vmatpush1.bf16.msra.mxu0 %v4875
        %4919 = vmatprep.subr.bf16.mxu0 0
        %4920 = vmatpush1.bf16.msra.mxu0 %v4876
        %4921 = vmatprep.subr.bf16.mxu0 0
        %4922 = vmatpush1.bf16.msra.mxu0 %v4877
        %4923 = vmatprep.subr.bf16.mxu0 0
        %4924 = vmatpush1.bf16.msra.mxu0 %v4878
        %4925 = vmatprep.subr.bf16.mxu0 0
        %4926 = vmatpush1.bf16.msra.mxu0 %v4879
        %4927 = vmatprep.subr.bf16.mxu0 0
        %4928 = vmatpush1.bf16.msra.mxu0 %v4880
        %4929 = vmatprep.mubr.bf16.mxu0 %v4699
        %4930 = vmatmul.mubr.bf16.gmra.mrb[0].mxu0 %v4698
        %v4931 = vpop.f32.mrb[0].mxu0
        %v4932 = vadd.f32 %v4799, %v4931
        %v4933 = vpop.f32.mrb[0].mxu0
        %v4934 = vpop.f32.mrb[0].mxu0
        %v4935 = vadd.f32 %v4799, %v4934
        %v4936 = vpop.f32.mrb[0].mxu0
        %4937 = vmatprep.mubr.bf16.mxu0 %v4701
        %4938 = vmatmul.mubr.bf16.gmra.mrb[0].mxu0 %v4700
        %v4939 = vpop.f32.mrb[0].mxu0
        %v4940 = vadd.f32 %v4799, %v4939
        %v4941 = vpop.f32.mrb[0].mxu0
        %v4942 = vpop.f32.mrb[0].mxu0
        %v4943 = vadd.f32 %v4799, %v4942
        %v4944 = vpop.f32.mrb[0].mxu0
        %4945 = vmatprep.mubr.bf16.mxu0 %v4703
        %4946 = vmatmul.mubr.bf16.gmra.mrb[0].mxu0 %v4702
        %v4947 = vpop.f32.mrb[0].mxu0
        %v4948 = vadd.f32 %v4799, %v4947
        %v4949 = vpop.f32.mrb[0].mxu0
        %v4950 = vpop.f32.mrb[0].mxu0
        %v4951 = vadd.f32 %v4799, %v4950
        %v4952 = vpop.f32.mrb[0].mxu0
        %4953 = vmatprep.mubr.bf16.mxu0 %v4705
        %4954 = vmatmul.mubr.bf16.gmra.mrb[0].mxu0 %v4704
        %v4955 = vpop.f32.mrb[0].mxu0
        %v4956 = vadd.f32 %v4799, %v4955
        %v4957 = vpop.f32.mrb[0].mxu0
        %v4958 = vpop.f32.mrb[0].mxu0
        %v4959 = vadd.f32 %v4799, %v4958
        %v4960 = vpop.f32.mrb[0].mxu0
        %4961 = vmatprep.mubr.bf16.mxu0 %v4707
        %4962 = vmatmul.mubr.bf16.gmra.mrb[0].mxu0 %v4706
        %v4963 = vpop.f32.mrb[0].mxu0
        %v4964 = vadd.f32 %v4799, %v4963
        %v4965 = vpop.f32.mrb[0].mxu0
        %v4966 = vpop.f32.mrb[0].mxu0
        %v4967 = vadd.f32 %v4799, %v4966
        %v4968 = vpop.f32.mrb[0].mxu0
        %4969 = vmatprep.mubr.bf16.mxu0 %v4709
        %4970 = vmatmul.mubr.bf16.gmra.mrb[0].mxu0 %v4708
        %v4971 = vpop.f32.mrb[0].mxu0
        %v4972 = vadd.f32 %v4799, %v4971
        %v4973 = vpop.f32.mrb[0].mxu0
        %v4974 = vpop.f32.mrb[0].mxu0
        %v4975 = vadd.f32 %v4799, %v4974
        %v4976 = vpop.f32.mrb[0].mxu0
        %4977 = vmatprep.mubr.bf16.mxu0 %v4711
        %4978 = vmatmul.mubr.bf16.gmra.mrb[0].mxu0 %v4710
        %v4979 = vpop.f32.mrb[0].mxu0
        %v4980 = vadd.f32 %v4799, %v4979
        %v4981 = vpop.f32.mrb[0].mxu0
        %v4982 = vpop.f32.mrb[0].mxu0
        %v4983 = vadd.f32 %v4799, %v4982
        %v4984 = vpop.f32.mrb[0].mxu0
        %4985 = vmatprep.mubr.bf16.mxu0 %v4713
        %4986 = vmatmul.mubr.bf16.gmra.mrb[0].mxu0 %v4712
        %v4987 = vpop.f32.mrb[0].mxu0
        %v4988 = vadd.f32 %v4799, %v4987
        %v4989 = vpop.f32.mrb[0].mxu0
        %v4990 = vpop.f32.mrb[0].mxu0
        %v4991 = vadd.f32 %v4799, %v4990
        %v4992 = vpop.f32.mrb[0].mxu0
        %4993 = vmatprep.mubr.bf16.mxu0 %v4715
        %4994 = vmatmul.mubr.bf16.gmra.mrb[0].mxu0 %v4714
        %v4995 = vpop.f32.mrb[0].mxu0
        %v4996 = vadd.f32 %v4799, %v4995
        %v4997 = vpop.f32.mrb[0].mxu0
        %v4998 = vpop.f32.mrb[0].mxu0
        %v4999 = vadd.f32 %v4799, %v4998
        %v5000 = vpop.f32.mrb[0].mxu0
        %5001 = vmatprep.mubr.bf16.mxu0 %v4717
        %5002 = vmatmul.mubr.bf16.gmra.mrb[0].mxu0 %v4716
        %v5003 = vpop.f32.mrb[0].mxu0
        %v5004 = vadd.f32 %v4799, %v5003
        %v5005 = vpop.f32.mrb[0].mxu0
        %v5006 = vpop.f32.mrb[0].mxu0
        %v5007 = vadd.f32 %v4799, %v5006
        %v5008 = vpop.f32.mrb[0].mxu0
        %5009 = vmatprep.mubr.bf16.mxu0 %v4719
        %5010 = vmatmul.mubr.bf16.gmra.mrb[0].mxu0 %v4718
        %v5011 = vpop.f32.mrb[0].mxu0
        %v5012 = vadd.f32 %v4799, %v5011
        %v5013 = vpop.f32.mrb[0].mxu0
        %v5014 = vpop.f32.mrb[0].mxu0
        %v5015 = vadd.f32 %v4799, %v5014
        %v5016 = vpop.f32.mrb[0].mxu0
        %5017 = vmatprep.mubr.bf16.mxu0 %v4721
        %5018 = vmatmul.mubr.bf16.gmra.mrb[0].mxu0 %v4720
        %v5019 = vpop.f32.mrb[0].mxu0
        %v5020 = vadd.f32 %v4799, %v5019
        %v5021 = vpop.f32.mrb[0].mxu0
        %v5022 = vpop.f32.mrb[0].mxu0
        %v5023 = vadd.f32 %v4799, %v5022
        %v5024 = vpop.f32.mrb[0].mxu0
        %5025 = vmatprep.mubr.bf16.mxu0 %v4723
        %5026 = vmatmul.mubr.bf16.gmra.mrb[0].mxu0 %v4722
        %v5027 = vpop.f32.mrb[0].mxu0
        %v5028 = vadd.f32 %v4799, %v5027
        %v5029 = vpop.f32.mrb[0].mxu0
        %v5030 = vpop.f32.mrb[0].mxu0
        %v5031 = vadd.f32 %v4799, %v5030
        %v5032 = vpop.f32.mrb[0].mxu0
        %5033 = vmatprep.mubr.bf16.mxu0 %v4725
        %5034 = vmatmul.mubr.bf16.gmra.mrb[0].mxu0 %v4724
        %v5035 = vpop.f32.mrb[0].mxu0
        %v5036 = vadd.f32 %v4799, %v5035
        %v5037 = vpop.f32.mrb[0].mxu0
        %v5038 = vpop.f32.mrb[0].mxu0
        %v5039 = vadd.f32 %v4799, %v5038
        %v5040 = vpop.f32.mrb[0].mxu0
        %5041 = vmatprep.mubr.bf16.mxu0 %v4727
        %5042 = vmatmul.mubr.bf16.gmra.mrb[0].mxu0 %v4726
        %v5043 = vpop.f32.mrb[0].mxu0
        %v5044 = vadd.f32 %v4799, %v5043
        %v5045 = vpop.f32.mrb[0].mxu0
        %v5046 = vpop.f32.mrb[0].mxu0
        %v5047 = vadd.f32 %v4799, %v5046
        %v5048 = vpop.f32.mrb[0].mxu0
        %5049 = vmatprep.mubr.bf16.mxu0 %v4729
        %5050 = vmatmul.mubr.bf16.gmra.mrb[0].mxu0 %v4728
        %v5051 = vpop.f32.mrb[0].mxu0
        %v5052 = vadd.f32 %v4799, %v5051
        %v5053 = vpop.f32.mrb[0].mxu0
        %v5054 = vpop.f32.mrb[0].mxu0
        %v5055 = vadd.f32 %v4799, %v5054
        %v5056 = vpop.f32.mrb[0].mxu0
        %5057 = vmatprep.mubr.bf16.mxu0 %v4731
        %5058 = vmatmul.mubr.bf16.gmra.mrb[0].mxu0 %v4730
        %v5059 = vpop.f32.mrb[0].mxu0
        %v5060 = vadd.f32 %v4799, %v5059
        %v5061 = vpop.f32.mrb[0].mxu0
        %v5062 = vpop.f32.mrb[0].mxu0
        %v5063 = vadd.f32 %v4799, %v5062
        %v5064 = vpop.f32.mrb[0].mxu0
        %5065 = vmatprep.mubr.bf16.mxu0 %v4733
        %5066 = vmatmul.mubr.bf16.gmra.mrb[0].mxu0 %v4732
        %v5067 = vpop.f32.mrb[0].mxu0
        %v5068 = vadd.f32 %v4799, %v5067
        %v5069 = vpop.f32.mrb[0].mxu0
        %v5070 = vpop.f32.mrb[0].mxu0
        %v5071 = vadd.f32 %v4799, %v5070
        %v5072 = vpop.f32.mrb[0].mxu0
        %5073 = vmatprep.mubr.bf16.mxu0 %v4735
        %5074 = vmatmul.mubr.bf16.gmra.mrb[0].mxu0 %v4734
        %v5075 = vpop.f32.mrb[0].mxu0
        %v5076 = vadd.f32 %v4799, %v5075
        %v5077 = vpop.f32.mrb[0].mxu0
        %v5078 = vpop.f32.mrb[0].mxu0
        %v5079 = vadd.f32 %v4799, %v5078
        %v5080 = vpop.f32.mrb[0].mxu0
        %5081 = vmatprep.mubr.bf16.mxu0 %v4737
        %5082 = vmatmul.mubr.bf16.gmra.mrb[0].mxu0 %v4736
        %v5083 = vpop.f32.mrb[0].mxu0
        %v5084 = vadd.f32 %v4799, %v5083
        %v5085 = vpop.f32.mrb[0].mxu0
        %v5086 = vpop.f32.mrb[0].mxu0
        %v5087 = vadd.f32 %v4799, %v5086
        %v5088 = vpop.f32.mrb[0].mxu0
        %5089 = vmatprep.mubr.bf16.mxu0 %v4739
        %5090 = vmatmul.mubr.bf16.gmra.mrb[0].mxu0 %v4738
        %v5091 = vpop.f32.mrb[0].mxu0
        %v5092 = vadd.f32 %v4799, %v5091
        %v5093 = vpop.f32.mrb[0].mxu0
        %v5094 = vpop.f32.mrb[0].mxu0
        %v5095 = vadd.f32 %v4799, %v5094
        %v5096 = vpop.f32.mrb[0].mxu0
        %5097 = vmatprep.mubr.bf16.mxu0 %v4741
        %5098 = vmatmul.mubr.bf16.gmra.mrb[0].mxu0 %v4740
        %v5099 = vpop.f32.mrb[0].mxu0
        %v5100 = vadd.f32 %v4799, %v5099
        %v5101 = vpop.f32.mrb[0].mxu0
        %v5102 = vpop.f32.mrb[0].mxu0
        %v5103 = vadd.f32 %v4799, %v5102
        %v5104 = vpop.f32.mrb[0].mxu0
        %5105 = vmatprep.mubr.bf16.mxu0 %v4743
        %5106 = vmatmul.mubr.bf16.gmra.mrb[0].mxu0 %v4742
        %v5107 = vpop.f32.mrb[0].mxu0
        %v5108 = vadd.f32 %v4799, %v5107
        %v5109 = vpop.f32.mrb[0].mxu0
        %v5110 = vpop.f32.mrb[0].mxu0
        %v5111 = vadd.f32 %v4799, %v5110
        %v5112 = vpop.f32.mrb[0].mxu0
        %5113 = vmatprep.mubr.bf16.mxu0 %v4745
        %5114 = vmatmul.mubr.bf16.gmra.mrb[0].mxu0 %v4744
        %v5115 = vpop.f32.mrb[0].mxu0
        %v5116 = vadd.f32 %v4799, %v5115
        %v5117 = vpop.f32.mrb[0].mxu0
        %v5118 = vpop.f32.mrb[0].mxu0
        %v5119 = vadd.f32 %v4799, %v5118
        %v5120 = vpop.f32.mrb[0].mxu0
        %5121 = vmatprep.mubr.bf16.mxu0 %v4747
        %5122 = vmatmul.mubr.bf16.gmra.mrb[0].mxu0 %v4746
        %v5123 = vpop.f32.mrb[0].mxu0
        %v5124 = vadd.f32 %v4799, %v5123
        %v5125 = vpop.f32.mrb[0].mxu0
        %v5126 = vpop.f32.mrb[0].mxu0
        %v5127 = vadd.f32 %v4799, %v5126
        %v5128 = vpop.f32.mrb[0].mxu0
        %5129 = vmatprep.mubr.bf16.mxu0 %v4749
        %5130 = vmatmul.mubr.bf16.gmra.mrb[0].mxu0 %v4748
        %v5131 = vpop.f32.mrb[0].mxu0
        %v5132 = vadd.f32 %v4799, %v5131
        %v5133 = vpop.f32.mrb[0].mxu0
        %v5134 = vpop.f32.mrb[0].mxu0
        %v5135 = vadd.f32 %v4799, %v5134
        %v5136 = vpop.f32.mrb[0].mxu0
        %5137 = vmatprep.mubr.bf16.mxu0 %v4751
        %5138 = vmatmul.mubr.bf16.gmra.mrb[0].mxu0 %v4750
        %v5139 = vpop.f32.mrb[0].mxu0
        %v5140 = vadd.f32 %v4799, %v5139
        %v5141 = vpop.f32.mrb[0].mxu0
        %v5142 = vpop.f32.mrb[0].mxu0
        %v5143 = vadd.f32 %v4799, %v5142
        %v5144 = vpop.f32.mrb[0].mxu0
        %5145 = vmatprep.mubr.bf16.mxu0 %v4753
        %5146 = vmatmul.mubr.bf16.gmra.mrb[0].mxu0 %v4752
        %v5147 = vpop.f32.mrb[0].mxu0
        %v5148 = vadd.f32 %v4799, %v5147
        %v5149 = vpop.f32.mrb[0].mxu0
        %v5150 = vpop.f32.mrb[0].mxu0
        %v5151 = vadd.f32 %v4799, %v5150
        %v5152 = vpop.f32.mrb[0].mxu0
        %5153 = vmatprep.mubr.bf16.mxu0 %v4755
        %5154 = vmatmul.mubr.bf16.gmra.mrb[0].mxu0 %v4754
        %v5155 = vpop.f32.mrb[0].mxu0
        %v5156 = vadd.f32 %v4799, %v5155
        %v5157 = vpop.f32.mrb[0].mxu0
        %v5158 = vpop.f32.mrb[0].mxu0
        %v5159 = vadd.f32 %v4799, %v5158
        %v5160 = vpop.f32.mrb[0].mxu0
        %5161 = vmatprep.mubr.bf16.mxu0 %v4757
        %5162 = vmatmul.mubr.bf16.gmra.mrb[0].mxu0 %v4756
        %v5163 = vpop.f32.mrb[0].mxu0
        %v5164 = vadd.f32 %v4799, %v5163
        %v5165 = vpop.f32.mrb[0].mxu0
        %v5166 = vpop.f32.mrb[0].mxu0
        %v5167 = vadd.f32 %v4799, %v5166
        %v5168 = vpop.f32.mrb[0].mxu0
        %5169 = vmatprep.mubr.bf16.mxu0 %v4759
        %5170 = vmatmul.mubr.bf16.gmra.mrb[0].mxu0 %v4758
        %v5171 = vpop.f32.mrb[0].mxu0
        %v5172 = vadd.f32 %v4799, %v5171
        %v5173 = vpop.f32.mrb[0].mxu0
        %v5174 = vpop.f32.mrb[0].mxu0
        %v5175 = vadd.f32 %v4799, %v5174
        %v5176 = vpop.f32.mrb[0].mxu0
        %5177 = vmatprep.mubr.bf16.mxu0 %v4761
        %5178 = vmatmul.mubr.bf16.gmra.mrb[0].mxu0 %v4760
        %v5179 = vpop.f32.mrb[0].mxu0
        %v5180 = vadd.f32 %v4799, %v5179
        %v5181 = vpop.f32.mrb[0].mxu0
        %v5182 = vpop.f32.mrb[0].mxu0
        %v5183 = vadd.f32 %v4799, %v5182
        %v5184 = vpop.f32.mrb[0].mxu0
        %5185 = vdwg.mxu0
        %5186 = vxpose.xlu0.b32.start [1/16] %v4932, 128
        %5187 = vxpose.xlu0.b32.cont [2/16] %v4935, 128
        %5188 = vxpose.xlu0.b32.cont [3/16] %v4940, 128
        %5189 = vxpose.xlu0.b32.cont [4/16] %v4943, 128
        %5190 = vxpose.xlu0.b32.cont [5/16] %v4948, 128
        %5191 = vxpose.xlu0.b32.cont [6/16] %v4951, 128
        %5192 = vxpose.xlu0.b32.cont [7/16] %v4956, 128
        %5193 = vxpose.xlu0.b32.cont [8/16] %v4959, 128
        %5194 = vxpose.xlu0.b32.cont [9/16] %v4964, 128
        %5195 = vxpose.xlu0.b32.cont [10/16] %v4967, 128
        %5196 = vxpose.xlu0.b32.cont [11/16] %v4972, 128
        %5197 = vxpose.xlu0.b32.cont [12/16] %v4975, 128
        %5198 = vxpose.xlu0.b32.cont [13/16] %v4980, 128
        %5199 = vxpose.xlu0.b32.cont [14/16] %v4983, 128
        %5200 = vxpose.xlu0.b32.cont [15/16] %v4988, 128
        %5201 = vxpose.xlu0.b32.end [16/16] %v4991, 128
        %v5202 = vpop.trf.xlu0
        %v5203 = vpop.trf.xlu0
        %v5204 = vpop.trf.xlu0
        %v5205 = vpop.trf.xlu0
        %v5206 = vpop.trf.xlu0
        %v5207 = vpop.trf.xlu0
        %v5208 = vpop.trf.xlu0
        %v5209 = vpop.trf.xlu0
        %v5210 = vpop.trf.xlu0
        %v5211 = vpop.trf.xlu0
        %v5212 = vpop.trf.xlu0
        %v5213 = vpop.trf.xlu0
        %v5214 = vpop.trf.xlu0
        %v5215 = vpop.trf.xlu0
        %v5216 = vpop.trf.xlu0
        %v5217 = vpop.trf.xlu0
        %5218 = vxpose.xlu0.b32.start [1/16] %v4996, 128
        %5219 = vxpose.xlu0.b32.cont [2/16] %v4999, 128
        %5220 = vxpose.xlu0.b32.cont [3/16] %v5004, 128
        %5221 = vxpose.xlu0.b32.cont [4/16] %v5007, 128
        %5222 = vxpose.xlu0.b32.cont [5/16] %v5012, 128
        %5223 = vxpose.xlu0.b32.cont [6/16] %v5015, 128
        %5224 = vxpose.xlu0.b32.cont [7/16] %v5020, 128
        %5225 = vxpose.xlu0.b32.cont [8/16] %v5023, 128
        %5226 = vxpose.xlu0.b32.cont [9/16] %v5028, 128
        %5227 = vxpose.xlu0.b32.cont [10/16] %v5031, 128
        %5228 = vxpose.xlu0.b32.cont [11/16] %v5036, 128
        %5229 = vxpose.xlu0.b32.cont [12/16] %v5039, 128
        %5230 = vxpose.xlu0.b32.cont [13/16] %v5044, 128
        %5231 = vxpose.xlu0.b32.cont [14/16] %v5047, 128
        %5232 = vxpose.xlu0.b32.cont [15/16] %v5052, 128
        %5233 = vxpose.xlu0.b32.end [16/16] %v5055, 128
        %v5234 = vpop.trf.xlu0
        %v5235 = vpop.trf.xlu0
        %v5236 = vpop.trf.xlu0
        %v5237 = vpop.trf.xlu0
        %v5238 = vpop.trf.xlu0
        %v5239 = vpop.trf.xlu0
        %v5240 = vpop.trf.xlu0
        %v5241 = vpop.trf.xlu0
        %v5242 = vpop.trf.xlu0
        %v5243 = vpop.trf.xlu0
        %v5244 = vpop.trf.xlu0
        %v5245 = vpop.trf.xlu0
        %v5246 = vpop.trf.xlu0
        %v5247 = vpop.trf.xlu0
        %v5248 = vpop.trf.xlu0
        %v5249 = vpop.trf.xlu0
        %5250 = vxpose.xlu0.b32.start [1/16] %v5060, 128
        %5251 = vxpose.xlu0.b32.cont [2/16] %v5063, 128
        %5252 = vxpose.xlu0.b32.cont [3/16] %v5068, 128
        %5253 = vxpose.xlu0.b32.cont [4/16] %v5071, 128
        %5254 = vxpose.xlu0.b32.cont [5/16] %v5076, 128
        %5255 = vxpose.xlu0.b32.cont [6/16] %v5079, 128
        %5256 = vxpose.xlu0.b32.cont [7/16] %v5084, 128
        %5257 = vxpose.xlu0.b32.cont [8/16] %v5087, 128
        %5258 = vxpose.xlu0.b32.cont [9/16] %v5092, 128
        %5259 = vxpose.xlu0.b32.cont [10/16] %v5095, 128
        %5260 = vxpose.xlu0.b32.cont [11/16] %v5100, 128
        %5261 = vxpose.xlu0.b32.cont [12/16] %v5103, 128
        %5262 = vxpose.xlu0.b32.cont [13/16] %v5108, 128
        %5263 = vxpose.xlu0.b32.cont [14/16] %v5111, 128
        %5264 = vxpose.xlu0.b32.cont [15/16] %v5116, 128
        %5265 = vxpose.xlu0.b32.end [16/16] %v5119, 128
        %v5266 = vpop.trf.xlu0
        %v5267 = vpop.trf.xlu0
        %v5268 = vpop.trf.xlu0
        %v5269 = vpop.trf.xlu0
        %v5270 = vpop.trf.xlu0
        %v5271 = vpop.trf.xlu0
        %v5272 = vpop.trf.xlu0
        %v5273 = vpop.trf.xlu0
        %v5274 = vpop.trf.xlu0
        %v5275 = vpop.trf.xlu0
        %v5276 = vpop.trf.xlu0
        %v5277 = vpop.trf.xlu0
        %v5278 = vpop.trf.xlu0
        %v5279 = vpop.trf.xlu0
        %v5280 = vpop.trf.xlu0
        %v5281 = vpop.trf.xlu0
        %5282 = vxpose.xlu0.b32.start [1/16] %v5124, 128
        %5283 = vxpose.xlu0.b32.cont [2/16] %v5127, 128
        %5284 = vxpose.xlu0.b32.cont [3/16] %v5132, 128
        %5285 = vxpose.xlu0.b32.cont [4/16] %v5135, 128
        %5286 = vxpose.xlu0.b32.cont [5/16] %v5140, 128
        %5287 = vxpose.xlu0.b32.cont [6/16] %v5143, 128
        %5288 = vxpose.xlu0.b32.cont [7/16] %v5148, 128
        %5289 = vxpose.xlu0.b32.cont [8/16] %v5151, 128
        %5290 = vxpose.xlu0.b32.cont [9/16] %v5156, 128
        %5291 = vxpose.xlu0.b32.cont [10/16] %v5159, 128
        %5292 = vxpose.xlu0.b32.cont [11/16] %v5164, 128
        %5293 = vxpose.xlu0.b32.cont [12/16] %v5167, 128
        %5294 = vxpose.xlu0.b32.cont [13/16] %v5172, 128
        %5295 = vxpose.xlu0.b32.cont [14/16] %v5175, 128
        %5296 = vxpose.xlu0.b32.cont [15/16] %v5180, 128
        %5297 = vxpose.xlu0.b32.end [16/16] %v5183, 128
        %v5298 = vpop.trf.xlu0
        %v5299 = vpop.trf.xlu0
        %v5300 = vpop.trf.xlu0
        %v5301 = vpop.trf.xlu0
        %v5302 = vpop.trf.xlu0
        %v5303 = vpop.trf.xlu0
        %v5304 = vpop.trf.xlu0
        %v5305 = vpop.trf.xlu0
        %v5306 = vpop.trf.xlu0
        %v5307 = vpop.trf.xlu0
        %v5308 = vpop.trf.xlu0
        %v5309 = vpop.trf.xlu0
        %v5310 = vpop.trf.xlu0
        %v5311 = vpop.trf.xlu0
        %v5312 = vpop.trf.xlu0
        %v5313 = vpop.trf.xlu0
        %s5314 = sshra.s32 %s1879, 7
        %s5315 = sand.u32 %s1879, 127
        %s5316 = smul.addr %s5314, 8
        %s5317 = scalar_lea.vmem %s495, %s5316
        %5318 = vst [vmem:[%s5317] sm:$0xff] %v5202
        %5319 = vst [vmem:[%s5317 + $0x8] sm:$0xff] %v5234
        %5320 = vst [vmem:[%s5317 + $0x10] sm:$0xff] %v5266
        %5321 = vst [vmem:[%s5317 + $0x18] sm:$0xff] %v5298
        %5322 = vst [vmem:[%s5317 + $0x40] sm:$0xff] %v5203
        %5323 = vst [vmem:[%s5317 + $0x48] sm:$0xff] %v5235
        %5324 = vst [vmem:[%s5317 + $0x50] sm:$0xff] %v5267
        %5325 = vst [vmem:[%s5317 + $0x58] sm:$0xff] %v5299
        %5326 = vst [vmem:[%s5317 + $0x80] sm:$0xff] %v5204
        %5327 = vst [vmem:[%s5317 + $0x88] sm:$0xff] %v5236
        %5328 = vst [vmem:[%s5317 + $0x90] sm:$0xff] %v5268
        %5329 = vst [vmem:[%s5317 + $0x98] sm:$0xff] %v5300
        %5330 = vst [vmem:[%s5317 + $0xc0] sm:$0xff] %v5205
        %5331 = vst [vmem:[%s5317 + $0xc8] sm:$0xff] %v5237
        %5332 = vst [vmem:[%s5317 + $0xd0] sm:$0xff] %v5269
        %5333 = vst [vmem:[%s5317 + $0xd8] sm:$0xff] %v5301
        %5334 = vst [vmem:[%s5317 + $0x100] sm:$0xff] %v5206
        %5335 = vst [vmem:[%s5317 + $0x108] sm:$0xff] %v5238
        %5336 = vst [vmem:[%s5317 + $0x110] sm:$0xff] %v5270
        %5337 = vst [vmem:[%s5317 + $0x118] sm:$0xff] %v5302
        %5338 = vst [vmem:[%s5317 + $0x140] sm:$0xff] %v5207
        %5339 = vst [vmem:[%s5317 + $0x148] sm:$0xff] %v5239
        %5340 = vst [vmem:[%s5317 + $0x150] sm:$0xff] %v5271
        %5341 = vst [vmem:[%s5317 + $0x158] sm:$0xff] %v5303
        %5342 = vst [vmem:[%s5317 + $0x180] sm:$0xff] %v5208
        %5343 = vst [vmem:[%s5317 + $0x188] sm:$0xff] %v5240
        %5344 = vst [vmem:[%s5317 + $0x190] sm:$0xff] %v5272
        %5345 = vst [vmem:[%s5317 + $0x198] sm:$0xff] %v5304
        %5346 = vst [vmem:[%s5317 + $0x1c0] sm:$0xff] %v5209
        %5347 = vst [vmem:[%s5317 + $0x1c8] sm:$0xff] %v5241
        %5348 = vst [vmem:[%s5317 + $0x1d0] sm:$0xff] %v5273
        %5349 = vst [vmem:[%s5317 + $0x1d8] sm:$0xff] %v5305
        %5350 = vst [vmem:[%s5317 + $0x200] sm:$0xff] %v5210
        %5351 = vst [vmem:[%s5317 + $0x208] sm:$0xff] %v5242
        %5352 = vst [vmem:[%s5317 + $0x210] sm:$0xff] %v5274
        %5353 = vst [vmem:[%s5317 + $0x218] sm:$0xff] %v5306
        %5354 = vst [vmem:[%s5317 + $0x240] sm:$0xff] %v5211
        %5355 = vst [vmem:[%s5317 + $0x248] sm:$0xff] %v5243
        %5356 = vst [vmem:[%s5317 + $0x250] sm:$0xff] %v5275
        %5357 = vst [vmem:[%s5317 + $0x258] sm:$0xff] %v5307
        %5358 = vst [vmem:[%s5317 + $0x280] sm:$0xff] %v5212
        %5359 = vst [vmem:[%s5317 + $0x288] sm:$0xff] %v5244
        %5360 = vst [vmem:[%s5317 + $0x290] sm:$0xff] %v5276
        %5361 = vst [vmem:[%s5317 + $0x298] sm:$0xff] %v5308
        %5362 = vst [vmem:[%s5317 + $0x2c0] sm:$0xff] %v5213
        %5363 = vst [vmem:[%s5317 + $0x2c8] sm:$0xff] %v5245
        %5364 = vst [vmem:[%s5317 + $0x2d0] sm:$0xff] %v5277
        %5365 = vst [vmem:[%s5317 + $0x2d8] sm:$0xff] %v5309
        %5366 = vst [vmem:[%s5317 + $0x300] sm:$0xff] %v5214
        %5367 = vst [vmem:[%s5317 + $0x308] sm:$0xff] %v5246
        %5368 = vst [vmem:[%s5317 + $0x310] sm:$0xff] %v5278
        %5369 = vst [vmem:[%s5317 + $0x318] sm:$0xff] %v5310
        %5370 = vst [vmem:[%s5317 + $0x340] sm:$0xff] %v5215
        %5371 = vst [vmem:[%s5317 + $0x348] sm:$0xff] %v5247
        %5372 = vst [vmem:[%s5317 + $0x350] sm:$0xff] %v5279
        %5373 = vst [vmem:[%s5317 + $0x358] sm:$0xff] %v5311
        %5374 = vst [vmem:[%s5317 + $0x380] sm:$0xff] %v5216
        %5375 = vst [vmem:[%s5317 + $0x388] sm:$0xff] %v5248
        %5376 = vst [vmem:[%s5317 + $0x390] sm:$0xff] %v5280
        %5377 = vst [vmem:[%s5317 + $0x398] sm:$0xff] %v5312
        %5378 = vst [vmem:[%s5317 + $0x3c0] sm:$0xff] %v5217
        %5379 = vst [vmem:[%s5317 + $0x3c8] sm:$0xff] %v5249
        %5380 = vst [vmem:[%s5317 + $0x3d0] sm:$0xff] %v5281
        %5381 = vst [vmem:[%s5317 + $0x3d8] sm:$0xff] %v5313
      $region92: #{ffn_pallas.1} parent=79 // loop_footer
        %s1878 = sadd.s32 1, %s1874
      $region93: #{ffn_pallas.1} parent=79 // loop_footer_branch
        %1873 = sbr.rel target = $region89
      $region94: #{ffn_pallas.1} parent=79 // loop_exit
        _
      %p5382 = scmp.lt.s32.totalorder %s27, 1
      %s5383 = scalar_select %p5382, %s27, 1
      %s5384 = smul.addr %s5383, 128
      %s5385 = smul.addr %s5384, 8
      %s5386 = scalar_lea.vmem %s15, %s5385
      // Predicated region
      $region95: #{ffn_pallas.1} parent=79 // pred_check
        %p5387 = pneg %p365
      $region96: #{ffn_pallas.1} parent=79 // pred_check_branch
        %5389 = sbr.rel (%p5387) target = $region98
      $region97: #{ffn_pallas.1} parent=79 // pred_region
        _
      $region98: #{ffn_pallas.1} parent=79 // pred_fallthru
        _
    $region80: #{ffn_pallas.1} parent=5 // pred_fallthru
      _
    %p5390 = scmp.le.s32.totalorder 2, %s22
    // Predicated region
    $region99: #{ffn_pallas.1} parent=5 // pred_check
      %p5391 = pneg %p5390
    $region100: #{ffn_pallas.1} parent=5 // pred_check_branch
      %5393 = sbr.rel (%p5391) target = $region102
    $region101: #{ffn_pallas.1} parent=5 // pred_region
      %s5394 = ssub.s32 %s22, 2
      // Predicated region
      $region103: #{ffn_pallas.1} parent=101 // pred_check
        %p5395 = pneg %p371
      $region104: #{ffn_pallas.1} parent=101 // pred_check_branch
        %5397 = sbr.rel (%p5395) target = $region106
      $region105: #{ffn_pallas.1} parent=101 // pred_region
        %p5398 = scmp.lt.s32.totalorder %s28, 1
        %s5399 = scalar_select %p5398, %s28, 1
        %s5400 = smul.addr %s5399, 128
        %s5401 = smul.addr %s5400, 8
        %s5402 = scalar_lea.vmem %s15, %s5401
      $region106: #{ffn_pallas.1} parent=101 // pred_fallthru
        _
    $region102: #{ffn_pallas.1} parent=5 // pred_fallthru
      _
  $region6: #{ffn_pallas.1} parent=0 // loop_footer
    %s26 = sadd.s32 1, %s22
  $region7: #{ffn_pallas.1} parent=0 // loop_footer_branch
    %21 = sbr.rel target = $region3
  $region8: #{ffn_pallas.1} parent=0 // loop_exit
    _

</llo_original>
